<compile_context>
chip_gen: v7x
topology: tpu7x:2x2x1
jax: 0.10.0
libtpu: 0.0.40
codegen_flags: <defaults>
</compile_context>

<pallas_src>
import collections
import functools

import numpy as np

import jax
import jax.numpy as jnp
from jax.experimental import pallas as pl
from jax.experimental.pallas import tpu as pltpu


Meta = collections.namedtuple(
    "Meta",
    ["batch", "in_ch", "in_hw", "n_actions",
     "s1", "s2", "s3", "c1", "c2", "c3", "hdim",
     "kk2", "kk3", "blk2", "blk3", "real2", "npos", "mrows", "qpad"])


def _round_up(x, m):
    return (x + m - 1) // m * m


# ----------------------------- fused Pallas kernel ------------------------- #

def _dqn_fused_kernel(cols1_ref, w1_ref, b1_ref,
                      g2_ref, w2_ref, b2_ref,
                      g3_ref, w3_ref, b3_ref,
                      w4_ref, b4_ref,
                      w5_ref, b5_ref,
                      q_ref, *, meta):
    m = meta
    f32 = jnp.float32
    dot = functools.partial(jnp.dot, preferred_element_type=f32)

    # ---- conv1 (+bias+ReLU): one matmul on the precomputed im2col. --------
    h1 = jnp.maximum(dot(cols1_ref[...], w1_ref[...]) + b1_ref[...], 0.0)

    # ---- conv2 -------------------------------------------------------------
    # One merged gather matmul covering all 16 kernel offsets, then the
    # 8-aligned 56-row blocks are lane-concatenated into the full
    # (blk2, 16*c1) im2col matrix so the weight matmul is a single wide-K op.
    slab2 = dot(g2_ref[...].astype(f32), h1)                  # (kk2*blk2, c1)
    cols2 = jnp.concatenate(
        [slab2[t * m.blk2:(t + 1) * m.blk2, :] for t in range(m.kk2)], axis=1)
    h2 = jnp.maximum(dot(cols2, w2_ref[...]) + b2_ref[...], 0.0)
    # Zero the spatial-pad rows explicitly (they would otherwise hold
    # relu(bias)); removes the fragile "nobody reads them" invariant.
    row2 = jax.lax.broadcasted_iota(jnp.int32, (m.blk2, 1), 0)
    h2 = jnp.where(row2 < m.real2, h2, 0.0)

    # ---- conv3 (same structure; rows are position-major 8-row blocks) ------
    slab3 = dot(g3_ref[...].astype(f32), h2)                  # (kk3*blk3, c2)
    cols3 = jnp.concatenate(
        [slab3[t * m.blk3:(t + 1) * m.blk3, :] for t in range(m.kk3)], axis=1)
    h3 = jnp.maximum(dot(cols3, w3_ref[...]) + b3_ref[...], 0.0)
    # Rows are (position * 8 + b); zero the b >= batch padding rows.
    row3 = jax.lax.broadcasted_iota(jnp.int32, (m.blk3, 1), 0)
    h3 = jnp.where((row3 % m.mrows) < m.batch, h3, 0.0)

    # ---- dense1: lane-concat the per-position 8-row blocks -> ONE matmul ---
    # (the PyTorch NCHW flatten permutation is folded into w4m's row order)
    cols4 = jnp.concatenate(
        [h3[p * m.mrows:(p + 1) * m.mrows, :] for p in range(m.npos)], axis=1)
    hid = jnp.maximum(dot(cols4, w4_ref[...]) + b4_ref[...], 0.0)

    # ---- dense2: 128-lane padded output -> unmasked, lane-dense store ------
    q_ref[...] = (dot(hid, w5_ref[...]) + b5_ref[...]).astype(q_ref.dtype)


def _fused_dqn_call(p, cols1, meta):
    kernel = functools.partial(_dqn_fused_kernel, meta=meta)

    args = (cols1, p["w1m"], p["b1"],
            p["g2"], p["w2m"], p["b2"],
            p["g3"], p["w3m"], p["b3"],
            p["w4m"], p["b4"],
            p["w5m"], p["b5"])

    def full_spec(a):
        nd = a.ndim
        return pl.BlockSpec(a.shape, lambda i: (0,) * nd)

    return pl.pallas_call(
        kernel,
        out_shape=jax.ShapeDtypeStruct((meta.mrows, meta.qpad), jnp.float32),
        grid=(1,),
        in_specs=[full_spec(a) for a in args],
        out_specs=pl.BlockSpec((meta.mrows, meta.qpad), lambda i: (0, 0)),
        compiler_params=pltpu.CompilerParams(
            dimension_semantics=("arbitrary",)),
    )(*args)


# --------------------- one-time parameter preparation ---------------------- #

def prepare_params(params, batch, in_hw, in_ch, n_actions):
    """One-time conversion of PyTorch-layout parameters into matmul-ready,
    kernel-friendly constants (weights, biases, im2col gather matrices)."""
    mrows = 8                                  # sublane-aligned rows/position
    assert batch <= mrows, ("fused kernel packs the batch into 8-row sublane "
                            "blocks; batch must be <= 8")

    s1 = (in_hw - 8) // 4 + 1                  # conv1 output spatial
    s2 = (s1 - 4) // 2 + 1                     # conv2 output spatial
    s3 = (s2 - 3) // 1 + 1                     # conv3 output spatial
    assert s1 > 0 and s2 > 0 and s3 > 0, "input spatial size too small"
    c1 = params["w1"].shape[0]
    c2 = params["w2"].shape[0]
    c3 = params["w3"].shape[0]
    hdim = params["w4"].shape[0]
    kk2, kk3 = 4 * 4, 3 * 3
    real2 = batch * s2 * s2
    blk2 = _round_up(real2, mrows)
    npos = s3 * s3
    blk3 = npos * mrows
    qpad = max(128, _round_up(n_actions, 128))

    f32 = jnp.float32
    # Conv weights: OIHW -> (i, j, cin, cout), flattened so row = (i*k+j)*cin+c,
    # matching the im2col / lane-concat feature order used in the kernel.
    w1m = jnp.transpose(params["w1"], (2, 3, 1, 0)).reshape(8 * 8 * in_ch, c1)
    w2m = jnp.transpose(params["w2"], (2, 3, 1, 0)).reshape(4 * 4 * c1, c2)
    w3m = jnp.transpose(params["w3"], (2, 3, 1, 0)).reshape(3 * 3 * c2, c3)
    # Dense1: fold the PyTorch NCHW flatten (index = c*npos + p) into the
    # weight row order (p*c3 + c) so the kernel consumes h3 position blocks.
    w4m = (params["w4"].reshape(hdim, c3, npos)
           .transpose(2, 1, 0).reshape(npos * c3, hdim))
    # Dense2: pad the action dim to 128 lanes for an unmasked output store.
    w5m = jnp.zeros((hdim, qpad), f32).at[:, :n_actions].set(params["w5"].T)
    b5p = jnp.zeros((1, qpad), f32).at[0, :n_actions].set(params["b5"])

    # conv2 gather matrix: one row per (kernel offset t, output position r2),
    # picking the needed h1 row. h1 rows are (b*s1 + h)*s1 + w.
    g2 = np.zeros((kk2 * blk2, batch * s1 * s1), np.float32)
    for i in range(4):
        for j in range(4):
            t = i * 4 + j
            for b in range(batch):
                for oh in range(s2):
                    for ow in range(s2):
                        r = t * blk2 + (b * s2 + oh) * s2 + ow
                        col = (b * s1 + 2 * oh + i) * s1 + (2 * ow + j)
                        g2[r, col] = 1.0

    # conv3 gather matrix: output rows are grouped into one 8-row block per
    # spatial position (row = p*8 + b) so dense1 needs only aligned slices.
    g3 = np.zeros((kk3 * blk3, blk2), np.float32)
    for i in range(3):
        for j in range(3):
            t = i * 3 + j
            for b in range(batch):
                for oh in range(s3):
                    for ow in range(s3):
                        pidx = oh * s3 + ow
                        r = t * blk3 + pidx * mrows + b
                        col = (b * s2 + oh + i) * s2 + (ow + j)
                        g3[r, col] = 1.0

    prepared = {
        "w1m": w1m.astype(f32), "b1": params["b1"].reshape(1, c1).astype(f32),
        # 0/1 gather matrices are exact in bf16 -> halves their per-call DMA.
        "g2": jnp.asarray(g2, jnp.bfloat16),
        "w2m": w2m.astype(f32), "b2": params["b2"].reshape(1, c2).astype(f32),
        "g3": jnp.asarray(g3, jnp.bfloat16),
        "w3m": w3m.astype(f32), "b3": params["b3"].reshape(1, c3).astype(f32),
        "w4m": w4m.astype(f32), "b4": params["b4"].reshape(1, hdim).astype(f32),
        "w5m": w5m, "b5": b5p,
    }
    meta = Meta(batch=batch, in_ch=in_ch, in_hw=in_hw, n_actions=n_actions,
                s1=s1, s2=s2, s3=s3, c1=c1, c2=c2, c3=c3, hdim=hdim,
                kk2=kk2, kk3=kk3, blk2=blk2, blk3=blk3, real2=real2,
                npos=npos, mrows=mrows, qpad=qpad)
    return prepared, meta


# ------------------------------- forward pass ------------------------------ #

def _im2col(x_nhwc, kh, kw, stride):
    """im2col of the raw NHWC input (one small XLA fusion before the single
    fused kernel). Feature order is (i*kw + j)*cin + c, matching w1m."""
    n, h, w, c = x_nhwc.shape
    ho = (h - kh) // stride + 1
    wo = (w - kw) // stride + 1
    patches = []
    for i in range(kh):
        for j in range(kw):
            patches.append(
                x_nhwc[:, i:i + stride * ho:stride, j:j + stride * wo:stride, :])
    patches = jnp.stack(patches, axis=3)              # (n, ho, wo, kh*kw, c)
    return patches.reshape(n * ho * wo, kh * kw * c)


@functools.partial(jax.jit, static_argnums=(2,))
def dqn_forward(prepared, x_nchw, meta):
    assert x_nchw.shape[0] == meta.batch
    x = jnp.transpose(x_nchw, (0, 2, 3, 1)).astype(jnp.float32)  # NCHW -> NHWC
    # TODO(synk): the NCHW->NHWC transpose + conv1 im2col still run as a tiny
    # XLA pre-op; an in-kernel version needs overlapping 4-D strided slicing
    # that has no clean/robust Pallas lowering.
    cols1 = _im2col(x, 8, 8, 4)
    q_pad = _fused_dqn_call(prepared, cols1, meta)    # (8, 128) padded
    return q_pad[:meta.batch, :meta.n_actions]


# --------------------------- pure-JAX reference ---------------------------- #

def dqn_reference(params, x_nchw):
    def conv(x, w, b, stride):
        y = jax.lax.conv_general_dilated(
            x, w, window_strides=(stride, stride), padding="VALID",
            dimension_numbers=("NCHW", "OIHW", "NCHW"))
        return jax.nn.relu(y + b[None, :, None, None])

    x = conv(x_nchw, params["w1"], params["b1"], 4)
    x = conv(x, params["w2"], params["b2"], 2)
    x = conv(x, params["w3"], params["b3"], 1)
    flat = x.reshape(x.shape[0], -1)                  # PyTorch view(B, -1)
    h = jax.nn.relu(flat @ params["w4"].T + params["b4"])
    return h @ params["w5"].T + params["b5"]


# --------------------------------- main ------------------------------------ #

def init_params(key, in_ch, n_actions, conv_out_size):
    ks = jax.random.split(key, 10)

    def w(k, shape, fan_in):
        return jax.random.normal(k, shape, jnp.float32) / jnp.sqrt(fan_in)

    return {
        "w1": w(ks[0], (32, in_ch, 8, 8), in_ch * 64),
        "b1": 0.01 * jax.random.normal(ks[1], (32,), jnp.float32),
        "w2": w(ks[2], (64, 32, 4, 4), 32 * 16),
        "b2": 0.01 * jax.random.normal(ks[3], (64,), jnp.float32),
        "w3": w(ks[4], (64, 64, 3, 3), 64 * 9),
        "b3": 0.01 * jax.random.normal(ks[5], (64,), jnp.float32),
        "w4": w(ks[6], (512, conv_out_size), conv_out_size),  # nn.Linear (out, in)
        "b4": 0.01 * jax.random.normal(ks[7], (512,), jnp.float32),
        "w5": w(ks[8], (n_actions, 512), 512),
        "b5": 0.01 * jax.random.normal(ks[9], (n_actions,), jnp.float32),
    }


if __name__ == "__main__":
    batch, in_ch, hw, n_actions = 2, 4, 52, 6
    # Conv spatial trace: 52 -> 12 -> 5 -> 3; conv_out_size = 64 * 3 * 3 = 576
    conv_out_size = 64 * 3 * 3

    key = jax.random.PRNGKey(0)
    k_params, k_x = jax.random.split(key)
    params = init_params(k_params, in_ch, n_actions, conv_out_size)
    prepared, meta = prepare_params(params, batch, hw, in_ch, n_actions)
    x = jax.random.normal(k_x, (batch, in_ch, hw, hw), jnp.float32)

    q_pallas = jax.block_until_ready(dqn_forward(prepared, x, meta))
    q_ref = jax.block_until_ready(dqn_reference(params, x))

    assert q_pallas.shape == (batch, n_actions), q_pallas.shape
    assert jnp.allclose(q_pallas, q_ref, rtol=1e-3, atol=1e-3), (
        "mismatch vs reference")
    print("KERNEL_OK")
</pallas_src>

<mosaic_0001>
module attributes {stable_mosaic.version = 11 : i64} {
  func.func @_dqn_fused_kernel(%arg0: i32, %arg1: memref<288x256xf32, #tpu.memory_space<vmem>>, %arg2: memref<256x32xf32, #tpu.memory_space<vmem>>, %arg3: memref<1x32xf32, #tpu.memory_space<vmem>>, %arg4: memref<896x288xbf16, #tpu.memory_space<vmem>>, %arg5: memref<512x64xf32, #tpu.memory_space<vmem>>, %arg6: memref<1x64xf32, #tpu.memory_space<vmem>>, %arg7: memref<648x56xbf16, #tpu.memory_space<vmem>>, %arg8: memref<576x64xf32, #tpu.memory_space<vmem>>, %arg9: memref<1x64xf32, #tpu.memory_space<vmem>>, %arg10: memref<576x512xf32, #tpu.memory_space<vmem>>, %arg11: memref<1x512xf32, #tpu.memory_space<vmem>>, %arg12: memref<512x128xf32, #tpu.memory_space<vmem>>, %arg13: memref<1x128xf32, #tpu.memory_space<vmem>>, %arg14: memref<8x128xf32, #tpu.memory_space<vmem>>) attributes {dimension_semantics = [#tpu.dimension_semantics<arbitrary>], iteration_bounds = array<i64: 1>, scalar_prefetch = 0 : i64, scratch_operands = 0 : i64, tpu.core_type = #tpu.core_type<tc>, window_params = [{pipeline_mode = #tpu.pipeline_mode<synchronous>, transform_indices = @transform_0, window_bounds = array<i64: 288, 256>}, {pipeline_mode = #tpu.pipeline_mode<synchronous>, transform_indices = @transform_1, window_bounds = array<i64: 256, 32>}, {pipeline_mode = #tpu.pipeline_mode<synchronous>, transform_indices = @transform_2, window_bounds = array<i64: 1, 32>}, {pipeline_mode = #tpu.pipeline_mode<synchronous>, transform_indices = @transform_3, window_bounds = array<i64: 896, 288>}, {pipeline_mode = #tpu.pipeline_mode<synchronous>, transform_indices = @transform_4, window_bounds = array<i64: 512, 64>}, {pipeline_mode = #tpu.pipeline_mode<synchronous>, transform_indices = @transform_5, window_bounds = array<i64: 1, 64>}, {pipeline_mode = #tpu.pipeline_mode<synchronous>, transform_indices = @transform_6, window_bounds = array<i64: 648, 56>}, {pipeline_mode = #tpu.pipeline_mode<synchronous>, transform_indices = @transform_7, window_bounds = array<i64: 576, 64>}, {pipeline_mode = #tpu.pipeline_mode<synchronous>, transform_indices = @transform_8, window_bounds = array<i64: 1, 64>}, {pipeline_mode = #tpu.pipeline_mode<synchronous>, transform_indices = @transform_9, window_bounds = array<i64: 576, 512>}, {pipeline_mode = #tpu.pipeline_mode<synchronous>, transform_indices = @transform_10, window_bounds = array<i64: 1, 512>}, {pipeline_mode = #tpu.pipeline_mode<synchronous>, transform_indices = @transform_11, window_bounds = array<i64: 512, 128>}, {pipeline_mode = #tpu.pipeline_mode<synchronous>, transform_indices = @transform_12, window_bounds = array<i64: 1, 128>}, {pipeline_mode = #tpu.pipeline_mode<synchronous>, transform_indices = @transform_13, window_bounds = array<i64: 8, 128>}]} {
    %c0 = arith.constant 0 : index
    %c0_0 = arith.constant 0 : index
    %0 = vector.load %arg1[%c0, %c0_0] : memref<288x256xf32, #tpu.memory_space<vmem>>, vector<288x256xf32>
    %c0_1 = arith.constant 0 : index
    %c0_2 = arith.constant 0 : index
    %1 = vector.load %arg2[%c0_1, %c0_2] : memref<256x32xf32, #tpu.memory_space<vmem>>, vector<256x32xf32>
    %cst = arith.constant dense<0.000000e+00> : vector<288x32xf32>
    %2 = tpu.matmul %0, %1, %cst {dimension_numbers = #tpu.dot_dimension_numbers<[1], [0], [0], [1], [0, 0, 1, 1], [], []>} : vector<288x256xf32>, vector<256x32xf32>, vector<288x32xf32> -> vector<288x32xf32>
    %c0_3 = arith.constant 0 : index
    %c0_4 = arith.constant 0 : index
    %3 = vector.load %arg3[%c0_3, %c0_4] : memref<1x32xf32, #tpu.memory_space<vmem>>, vector<1x32xf32>
    %4 = vector.broadcast %3 : vector<1x32xf32> to vector<288x32xf32>
    %5 = arith.addf %2, %4 : vector<288x32xf32>
    %cst_5 = arith.constant 0.000000e+00 : f32
    %6 = vector.broadcast %cst_5 : f32 to vector<288x32xf32>
    %7 = arith.maximumf %5, %6 : vector<288x32xf32>
    %c0_6 = arith.constant 0 : index
    %c0_7 = arith.constant 0 : index
    %8 = vector.load %arg4[%c0_6, %c0_7] : memref<896x288xbf16, #tpu.memory_space<vmem>>, vector<896x288xbf16>
    %9 = arith.extf %8 : vector<896x288xbf16> to vector<896x288xf32>
    %cst_8 = arith.constant dense<0.000000e+00> : vector<896x32xf32>
    %10 = tpu.matmul %9, %7, %cst_8 {dimension_numbers = #tpu.dot_dimension_numbers<[1], [0], [0], [1], [0, 0, 1, 1], [], []>} : vector<896x288xf32>, vector<288x32xf32>, vector<896x32xf32> -> vector<896x32xf32>
    %11 = vector.extract_strided_slice %10 {offsets = [0, 0], sizes = [56, 32], strides = [1, 1]} : vector<896x32xf32> to vector<56x32xf32>
    %12 = vector.extract_strided_slice %10 {offsets = [56, 0], sizes = [56, 32], strides = [1, 1]} : vector<896x32xf32> to vector<56x32xf32>
    %13 = vector.extract_strided_slice %10 {offsets = [112, 0], sizes = [56, 32], strides = [1, 1]} : vector<896x32xf32> to vector<56x32xf32>
    %14 = vector.extract_strided_slice %10 {offsets = [168, 0], sizes = [56, 32], strides = [1, 1]} : vector<896x32xf32> to vector<56x32xf32>
    %15 = vector.extract_strided_slice %10 {offsets = [224, 0], sizes = [56, 32], strides = [1, 1]} : vector<896x32xf32> to vector<56x32xf32>
    %16 = vector.extract_strided_slice %10 {offsets = [280, 0], sizes = [56, 32], strides = [1, 1]} : vector<896x32xf32> to vector<56x32xf32>
    %17 = vector.extract_strided_slice %10 {offsets = [336, 0], sizes = [56, 32], strides = [1, 1]} : vector<896x32xf32> to vector<56x32xf32>
    %18 = vector.extract_strided_slice %10 {offsets = [392, 0], sizes = [56, 32], strides = [1, 1]} : vector<896x32xf32> to vector<56x32xf32>
    %19 = vector.extract_strided_slice %10 {offsets = [448, 0], sizes = [56, 32], strides = [1, 1]} : vector<896x32xf32> to vector<56x32xf32>
    %20 = vector.extract_strided_slice %10 {offsets = [504, 0], sizes = [56, 32], strides = [1, 1]} : vector<896x32xf32> to vector<56x32xf32>
    %21 = vector.extract_strided_slice %10 {offsets = [560, 0], sizes = [56, 32], strides = [1, 1]} : vector<896x32xf32> to vector<56x32xf32>
    %22 = vector.extract_strided_slice %10 {offsets = [616, 0], sizes = [56, 32], strides = [1, 1]} : vector<896x32xf32> to vector<56x32xf32>
    %23 = vector.extract_strided_slice %10 {offsets = [672, 0], sizes = [56, 32], strides = [1, 1]} : vector<896x32xf32> to vector<56x32xf32>
    %24 = vector.extract_strided_slice %10 {offsets = [728, 0], sizes = [56, 32], strides = [1, 1]} : vector<896x32xf32> to vector<56x32xf32>
    %25 = vector.extract_strided_slice %10 {offsets = [784, 0], sizes = [56, 32], strides = [1, 1]} : vector<896x32xf32> to vector<56x32xf32>
    %26 = vector.extract_strided_slice %10 {offsets = [840, 0], sizes = [56, 32], strides = [1, 1]} : vector<896x32xf32> to vector<56x32xf32>
    %27 = tpu.concatenate %11, %12, %13, %14, %15, %16, %17, %18, %19, %20, %21, %22, %23, %24, %25, %26 in 1 : vector<56x32xf32>, vector<56x32xf32>, vector<56x32xf32>, vector<56x32xf32>, vector<56x32xf32>, vector<56x32xf32>, vector<56x32xf32>, vector<56x32xf32>, vector<56x32xf32>, vector<56x32xf32>, vector<56x32xf32>, vector<56x32xf32>, vector<56x32xf32>, vector<56x32xf32>, vector<56x32xf32>, vector<56x32xf32> -> vector<56x512xf32>
    %c0_9 = arith.constant 0 : index
    %c0_10 = arith.constant 0 : index
    %28 = vector.load %arg5[%c0_9, %c0_10] : memref<512x64xf32, #tpu.memory_space<vmem>>, vector<512x64xf32>
    %cst_11 = arith.constant dense<0.000000e+00> : vector<56x64xf32>
    %29 = tpu.matmul %27, %28, %cst_11 {dimension_numbers = #tpu.dot_dimension_numbers<[1], [0], [0], [1], [0, 0, 1, 1], [], []>} : vector<56x512xf32>, vector<512x64xf32>, vector<56x64xf32> -> vector<56x64xf32>
    %c0_12 = arith.constant 0 : index
    %c0_13 = arith.constant 0 : index
    %30 = vector.load %arg6[%c0_12, %c0_13] : memref<1x64xf32, #tpu.memory_space<vmem>>, vector<1x64xf32>
    %31 = vector.broadcast %30 : vector<1x64xf32> to vector<56x64xf32>
    %32 = arith.addf %29, %31 : vector<56x64xf32>
    %cst_14 = arith.constant 0.000000e+00 : f32
    %33 = vector.broadcast %cst_14 : f32 to vector<56x64xf32>
    %34 = arith.maximumf %32, %33 : vector<56x64xf32>
    %35 = tpu.iota {dimensions = array<i32: 0>} : vector<56x1xi32>
    %c50_i32 = arith.constant 50 : i32
    %36 = vector.broadcast %c50_i32 : i32 to vector<56x1xi32>
    %37 = arith.cmpi slt, %35, %36 : vector<56x1xi32>
    %cst_15 = arith.constant 0.000000e+00 : f32
    %38 = vector.shape_cast %37 : vector<56x1xi1> to vector<56x1xi1>
    %39 = vector.broadcast %38 : vector<56x1xi1> to vector<56x64xi1>
    %40 = vector.broadcast %cst_15 : f32 to vector<56x64xf32>
    %41 = arith.select %39, %34, %40 : vector<56x64xi1>, vector<56x64xf32>
    %c0_16 = arith.constant 0 : index
    %c0_17 = arith.constant 0 : index
    %42 = vector.load %arg7[%c0_16, %c0_17] : memref<648x56xbf16, #tpu.memory_space<vmem>>, vector<648x56xbf16>
    %43 = arith.extf %42 : vector<648x56xbf16> to vector<648x56xf32>
    %cst_18 = arith.constant dense<0.000000e+00> : vector<648x64xf32>
    %44 = tpu.matmul %43, %41, %cst_18 {dimension_numbers = #tpu.dot_dimension_numbers<[1], [0], [0], [1], [0, 0, 1, 1], [], []>} : vector<648x56xf32>, vector<56x64xf32>, vector<648x64xf32> -> vector<648x64xf32>
    %45 = vector.extract_strided_slice %44 {offsets = [0, 0], sizes = [72, 64], strides = [1, 1]} : vector<648x64xf32> to vector<72x64xf32>
    %46 = vector.extract_strided_slice %44 {offsets = [72, 0], sizes = [72, 64], strides = [1, 1]} : vector<648x64xf32> to vector<72x64xf32>
    %47 = vector.extract_strided_slice %44 {offsets = [144, 0], sizes = [72, 64], strides = [1, 1]} : vector<648x64xf32> to vector<72x64xf32>
    %48 = vector.extract_strided_slice %44 {offsets = [216, 0], sizes = [72, 64], strides = [1, 1]} : vector<648x64xf32> to vector<72x64xf32>
    %49 = vector.extract_strided_slice %44 {offsets = [288, 0], sizes = [72, 64], strides = [1, 1]} : vector<648x64xf32> to vector<72x64xf32>
    %50 = vector.extract_strided_slice %44 {offsets = [360, 0], sizes = [72, 64], strides = [1, 1]} : vector<648x64xf32> to vector<72x64xf32>
    %51 = vector.extract_strided_slice %44 {offsets = [432, 0], sizes = [72, 64], strides = [1, 1]} : vector<648x64xf32> to vector<72x64xf32>
    %52 = vector.extract_strided_slice %44 {offsets = [504, 0], sizes = [72, 64], strides = [1, 1]} : vector<648x64xf32> to vector<72x64xf32>
    %53 = vector.extract_strided_slice %44 {offsets = [576, 0], sizes = [72, 64], strides = [1, 1]} : vector<648x64xf32> to vector<72x64xf32>
    %54 = tpu.concatenate %45, %46, %47, %48, %49, %50, %51, %52, %53 in 1 : vector<72x64xf32>, vector<72x64xf32>, vector<72x64xf32>, vector<72x64xf32>, vector<72x64xf32>, vector<72x64xf32>, vector<72x64xf32>, vector<72x64xf32>, vector<72x64xf32> -> vector<72x576xf32>
    %c0_19 = arith.constant 0 : index
    %c0_20 = arith.constant 0 : index
    %55 = vector.load %arg8[%c0_19, %c0_20] : memref<576x64xf32, #tpu.memory_space<vmem>>, vector<576x64xf32>
    %cst_21 = arith.constant dense<0.000000e+00> : vector<72x64xf32>
    %56 = tpu.matmul %54, %55, %cst_21 {dimension_numbers = #tpu.dot_dimension_numbers<[1], [0], [0], [1], [0, 0, 1, 1], [], []>} : vector<72x576xf32>, vector<576x64xf32>, vector<72x64xf32> -> vector<72x64xf32>
    %c0_22 = arith.constant 0 : index
    %c0_23 = arith.constant 0 : index
    %57 = vector.load %arg9[%c0_22, %c0_23] : memref<1x64xf32, #tpu.memory_space<vmem>>, vector<1x64xf32>
    %58 = vector.broadcast %57 : vector<1x64xf32> to vector<72x64xf32>
    %59 = arith.addf %56, %58 : vector<72x64xf32>
    %cst_24 = arith.constant 0.000000e+00 : f32
    %60 = vector.broadcast %cst_24 : f32 to vector<72x64xf32>
    %61 = arith.maximumf %59, %60 : vector<72x64xf32>
    %62 = tpu.iota {dimensions = array<i32: 0>} : vector<72x1xi32>
    %c8_i32 = arith.constant 8 : i32
    %c0_i32 = arith.constant 0 : i32
    %63 = arith.cmpi eq, %c8_i32, %c0_i32 : i32
    %c1_i32 = arith.constant 1 : i32
    %64 = arith.select %63, %c1_i32, %c8_i32 : i32
    %65 = vector.broadcast %64 : i32 to vector<72x1xi32>
    %66 = arith.remsi %62, %65 : vector<72x1xi32>
    %c0_i32_25 = arith.constant 0 : i32
    %67 = vector.broadcast %c0_i32_25 : i32 to vector<72x1xi32>
    %68 = arith.cmpi ne, %66, %67 : vector<72x1xi32>
    %c0_i32_26 = arith.constant 0 : i32
    %69 = vector.broadcast %c0_i32_26 : i32 to vector<72x1xi32>
    %70 = arith.cmpi slt, %66, %69 : vector<72x1xi32>
    %c0_i32_27 = arith.constant 0 : i32
    %71 = arith.cmpi slt, %64, %c0_i32_27 : i32
    %72 = vector.broadcast %71 : i1 to vector<72x1xi1>
    %73 = vector.broadcast %72 : vector<72x1xi1> to vector<72x1xi1>
    %74 = arith.xori %70, %73 : vector<72x1xi1>
    %75 = arith.andi %74, %68 : vector<72x1xi1>
    %76 = vector.broadcast %64 : i32 to vector<72x1xi32>
    %77 = arith.addi %66, %76 : vector<72x1xi32>
    %78 = arith.select %75, %77, %66 : vector<72x1xi1>, vector<72x1xi32>
    %c2_i32 = arith.constant 2 : i32
    %79 = vector.broadcast %c2_i32 : i32 to vector<72x1xi32>
    %80 = arith.cmpi slt, %78, %79 : vector<72x1xi32>
    %cst_28 = arith.constant 0.000000e+00 : f32
    %81 = vector.shape_cast %80 : vector<72x1xi1> to vector<72x1xi1>
    %82 = vector.broadcast %81 : vector<72x1xi1> to vector<72x64xi1>
    %83 = vector.broadcast %cst_28 : f32 to vector<72x64xf32>
    %84 = arith.select %82, %61, %83 : vector<72x64xi1>, vector<72x64xf32>
    %85 = vector.extract_strided_slice %84 {offsets = [0, 0], sizes = [8, 64], strides = [1, 1]} : vector<72x64xf32> to vector<8x64xf32>
    %86 = vector.extract_strided_slice %84 {offsets = [8, 0], sizes = [8, 64], strides = [1, 1]} : vector<72x64xf32> to vector<8x64xf32>
    %87 = vector.extract_strided_slice %84 {offsets = [16, 0], sizes = [8, 64], strides = [1, 1]} : vector<72x64xf32> to vector<8x64xf32>
    %88 = vector.extract_strided_slice %84 {offsets = [24, 0], sizes = [8, 64], strides = [1, 1]} : vector<72x64xf32> to vector<8x64xf32>
    %89 = vector.extract_strided_slice %84 {offsets = [32, 0], sizes = [8, 64], strides = [1, 1]} : vector<72x64xf32> to vector<8x64xf32>
    %90 = vector.extract_strided_slice %84 {offsets = [40, 0], sizes = [8, 64], strides = [1, 1]} : vector<72x64xf32> to vector<8x64xf32>
    %91 = vector.extract_strided_slice %84 {offsets = [48, 0], sizes = [8, 64], strides = [1, 1]} : vector<72x64xf32> to vector<8x64xf32>
    %92 = vector.extract_strided_slice %84 {offsets = [56, 0], sizes = [8, 64], strides = [1, 1]} : vector<72x64xf32> to vector<8x64xf32>
    %93 = vector.extract_strided_slice %84 {offsets = [64, 0], sizes = [8, 64], strides = [1, 1]} : vector<72x64xf32> to vector<8x64xf32>
    %94 = tpu.concatenate %85, %86, %87, %88, %89, %90, %91, %92, %93 in 1 : vector<8x64xf32>, vector<8x64xf32>, vector<8x64xf32>, vector<8x64xf32>, vector<8x64xf32>, vector<8x64xf32>, vector<8x64xf32>, vector<8x64xf32>, vector<8x64xf32> -> vector<8x576xf32>
    %c0_29 = arith.constant 0 : index
    %c0_30 = arith.constant 0 : index
    %95 = vector.load %arg10[%c0_29, %c0_30] : memref<576x512xf32, #tpu.memory_space<vmem>>, vector<576x512xf32>
    %cst_31 = arith.constant dense<0.000000e+00> : vector<8x512xf32>
    %96 = tpu.matmul %94, %95, %cst_31 {dimension_numbers = #tpu.dot_dimension_numbers<[1], [0], [0], [1], [0, 0, 1, 1], [], []>} : vector<8x576xf32>, vector<576x512xf32>, vector<8x512xf32> -> vector<8x512xf32>
    %c0_32 = arith.constant 0 : index
    %c0_33 = arith.constant 0 : index
    %97 = vector.load %arg11[%c0_32, %c0_33] : memref<1x512xf32, #tpu.memory_space<vmem>>, vector<1x512xf32>
    %98 = vector.broadcast %97 : vector<1x512xf32> to vector<8x512xf32>
    %99 = arith.addf %96, %98 : vector<8x512xf32>
    %cst_34 = arith.constant 0.000000e+00 : f32
    %100 = vector.broadcast %cst_34 : f32 to vector<8x512xf32>
    %101 = arith.maximumf %99, %100 : vector<8x512xf32>
    %c0_35 = arith.constant 0 : index
    %c0_36 = arith.constant 0 : index
    %102 = vector.load %arg12[%c0_35, %c0_36] : memref<512x128xf32, #tpu.memory_space<vmem>>, vector<512x128xf32>
    %cst_37 = arith.constant dense<0.000000e+00> : vector<8x128xf32>
    %103 = tpu.matmul %101, %102, %cst_37 {dimension_numbers = #tpu.dot_dimension_numbers<[1], [0], [0], [1], [0, 0, 1, 1], [], []>} : vector<8x512xf32>, vector<512x128xf32>, vector<8x128xf32> -> vector<8x128xf32>
    %c0_38 = arith.constant 0 : index
    %c0_39 = arith.constant 0 : index
    %104 = vector.load %arg13[%c0_38, %c0_39] : memref<1x128xf32, #tpu.memory_space<vmem>>, vector<1x128xf32>
    %105 = vector.broadcast %104 : vector<1x128xf32> to vector<8x128xf32>
    %106 = arith.addf %103, %105 : vector<8x128xf32>
    %c0_40 = arith.constant 0 : index
    %c0_41 = arith.constant 0 : index
    %107 = vector.load %arg14[%c0_40, %c0_41] : memref<8x128xf32, #tpu.memory_space<vmem>>, vector<8x128xf32>
    tpu.vector_store %arg14[%c0_40, %c0_41], %106 {strides = array<i32>} : memref<8x128xf32, #tpu.memory_space<vmem>>, vector<8x128xf32>,
    return
  }
  func.func @transform_0(%arg0: i32) -> (i32, i32) {
    %c0_i32 = arith.constant 0 : i32
    %c0_i32_0 = arith.constant 0 : i32
    %c0_i32_1 = arith.constant 0 : i32
    return %c0_i32, %c0_i32_0 : i32, i32
  }
  func.func @transform_1(%arg0: i32) -> (i32, i32) {
    %c0_i32 = arith.constant 0 : i32
    %c0_i32_0 = arith.constant 0 : i32
    %c0_i32_1 = arith.constant 0 : i32
    return %c0_i32, %c0_i32_0 : i32, i32
  }
  func.func @transform_2(%arg0: i32) -> (i32, i32) {
    %c0_i32 = arith.constant 0 : i32
    %c0_i32_0 = arith.constant 0 : i32
    %c0_i32_1 = arith.constant 0 : i32
    return %c0_i32, %c0_i32_0 : i32, i32
  }
  func.func @transform_3(%arg0: i32) -> (i32, i32) {
    %c0_i32 = arith.constant 0 : i32
    %c0_i32_0 = arith.constant 0 : i32
    %c0_i32_1 = arith.constant 0 : i32
    return %c0_i32, %c0_i32_0 : i32, i32
  }
  func.func @transform_4(%arg0: i32) -> (i32, i32) {
    %c0_i32 = arith.constant 0 : i32
    %c0_i32_0 = arith.constant 0 : i32
    %c0_i32_1 = arith.constant 0 : i32
    return %c0_i32, %c0_i32_0 : i32, i32
  }
  func.func @transform_5(%arg0: i32) -> (i32, i32) {
    %c0_i32 = arith.constant 0 : i32
    %c0_i32_0 = arith.constant 0 : i32
    %c0_i32_1 = arith.constant 0 : i32
    return %c0_i32, %c0_i32_0 : i32, i32
  }
  func.func @transform_6(%arg0: i32) -> (i32, i32) {
    %c0_i32 = arith.constant 0 : i32
    %c0_i32_0 = arith.constant 0 : i32
    %c0_i32_1 = arith.constant 0 : i32
    return %c0_i32, %c0_i32_0 : i32, i32
  }
  func.func @transform_7(%arg0: i32) -> (i32, i32) {
    %c0_i32 = arith.constant 0 : i32
    %c0_i32_0 = arith.constant 0 : i32
    %c0_i32_1 = arith.constant 0 : i32
    return %c0_i32, %c0_i32_0 : i32, i32
  }
  func.func @transform_8(%arg0: i32) -> (i32, i32) {
    %c0_i32 = arith.constant 0 : i32
    %c0_i32_0 = arith.constant 0 : i32
    %c0_i32_1 = arith.constant 0 : i32
    return %c0_i32, %c0_i32_0 : i32, i32
  }
  func.func @transform_9(%arg0: i32) -> (i32, i32) {
    %c0_i32 = arith.constant 0 : i32
    %c0_i32_0 = arith.constant 0 : i32
    %c0_i32_1 = arith.constant 0 : i32
    return %c0_i32, %c0_i32_0 : i32, i32
  }
  func.func @transform_10(%arg0: i32) -> (i32, i32) {
    %c0_i32 = arith.constant 0 : i32
    %c0_i32_0 = arith.constant 0 : i32
    %c0_i32_1 = arith.constant 0 : i32
    return %c0_i32, %c0_i32_0 : i32, i32
  }
  func.func @transform_11(%arg0: i32) -> (i32, i32) {
    %c0_i32 = arith.constant 0 : i32
    %c0_i32_0 = arith.constant 0 : i32
    %c0_i32_1 = arith.constant 0 : i32
    return %c0_i32, %c0_i32_0 : i32, i32
  }
  func.func @transform_12(%arg0: i32) -> (i32, i32) {
    %c0_i32 = arith.constant 0 : i32
    %c0_i32_0 = arith.constant 0 : i32
    %c0_i32_1 = arith.constant 0 : i32
    return %c0_i32, %c0_i32_0 : i32, i32
  }
  func.func @transform_13(%arg0: i32) -> (i32, i32) {
    %c0_i32 = arith.constant 0 : i32
    %c0_i32_0 = arith.constant 0 : i32
    %c0_i32_1 = arith.constant 0 : i32
    return %c0_i32, %c0_i32_0 : i32, i32
  }
}

</mosaic_0001>

<llo_original>
// kernel: dqn_forward.1
$region0: #{dqn_forward.1}
  #allocation0 [shape = 'u32[]', space=smem, size = 0x4, offset = 0x4, fixed_abs, tag = 'smem constant byte address 0x4 - core index']
  #allocation1 [shape = 'u32[144,128]{1,0:T(1,128)}', space=vmem, size = 0x12000, scoped, tag = 'internal scratch']
  %s0 = inlined_call_operand.vmem [shape: f32[288,256], index: 0, kind: input, shape index: {}]
  %s1 = inlined_call_operand.vmem [shape: f32[256,32], index: 1, kind: input, shape index: {}]
  %s2 = inlined_call_operand.vmem [shape: f32[1,32], index: 2, kind: input, shape index: {}]
  %s3 = inlined_call_operand.vmem [shape: bf16[896,288], index: 3, kind: input, shape index: {}]
  %s4 = inlined_call_operand.vmem [shape: f32[512,64], index: 4, kind: input, shape index: {}]
  %s5 = inlined_call_operand.vmem [shape: f32[1,64], index: 5, kind: input, shape index: {}]
  %s6 = inlined_call_operand.vmem [shape: bf16[648,56], index: 6, kind: input, shape index: {}]
  %s7 = inlined_call_operand.vmem [shape: f32[576,64], index: 7, kind: input, shape index: {}]
  %s8 = inlined_call_operand.vmem [shape: f32[1,64], index: 8, kind: input, shape index: {}]
  %s9 = inlined_call_operand.vmem [shape: f32[576,512], index: 9, kind: input, shape index: {}]
  %s10 = inlined_call_operand.vmem [shape: f32[1,512], index: 10, kind: input, shape index: {}]
  %s11 = inlined_call_operand.vmem [shape: f32[512,128], index: 11, kind: input, shape index: {}]
  %s12 = inlined_call_operand.vmem [shape: f32[1,128], index: 12, kind: input, shape index: {}]
  %s13 = inlined_call_operand.vmem [shape: f32[8,128], index: 13, kind: output, shape index: {}]
  %s14 = sld [smem:[#allocation0]]
  $region62: #{dqn_forward.1} parent=0
    _
  %s16 = ssub.s32 1, %s14
  %s17 = scalar_select 0, %s16, %s14
  // Predicated region
  $region2: #{dqn_forward.1} parent=0 // pred_check
    _
  $region3: #{dqn_forward.1} parent=0 // pred_check_branch
    %19 = sbr.rel (0) target = $region5
  $region4: #{dqn_forward.1} parent=0 // pred_region
    _
  $region5: #{dqn_forward.1} parent=0 // pred_fallthru
    _
  // Predicated region
  $region6: #{dqn_forward.1} parent=0 // pred_check
    _
  $region7: #{dqn_forward.1} parent=0 // pred_check_branch
    %21 = sbr.rel (0) target = $region9
  $region8: #{dqn_forward.1} parent=0 // pred_region
    _
  $region9: #{dqn_forward.1} parent=0 // pred_fallthru
    _
  // Predicated region
  $region10: #{dqn_forward.1} parent=0 // pred_check
    _
  $region11: #{dqn_forward.1} parent=0 // pred_check_branch
    %23 = sbr.rel (0) target = $region13
  $region12: #{dqn_forward.1} parent=0 // pred_region
    _
  $region13: #{dqn_forward.1} parent=0 // pred_fallthru
    _
  // Predicated region
  $region14: #{dqn_forward.1} parent=0 // pred_check
    _
  $region15: #{dqn_forward.1} parent=0 // pred_check_branch
    %25 = sbr.rel (0) target = $region17
  $region16: #{dqn_forward.1} parent=0 // pred_region
    _
  $region17: #{dqn_forward.1} parent=0 // pred_fallthru
    _
  // Predicated region
  $region18: #{dqn_forward.1} parent=0 // pred_check
    _
  $region19: #{dqn_forward.1} parent=0 // pred_check_branch
    %27 = sbr.rel (0) target = $region21
  $region20: #{dqn_forward.1} parent=0 // pred_region
    _
  $region21: #{dqn_forward.1} parent=0 // pred_fallthru
    _
  // Predicated region
  $region22: #{dqn_forward.1} parent=0 // pred_check
    _
  $region23: #{dqn_forward.1} parent=0 // pred_check_branch
    %29 = sbr.rel (0) target = $region25
  $region24: #{dqn_forward.1} parent=0 // pred_region
    _
  $region25: #{dqn_forward.1} parent=0 // pred_fallthru
    _
  // Predicated region
  $region26: #{dqn_forward.1} parent=0 // pred_check
    _
  $region27: #{dqn_forward.1} parent=0 // pred_check_branch
    %31 = sbr.rel (0) target = $region29
  $region28: #{dqn_forward.1} parent=0 // pred_region
    _
  $region29: #{dqn_forward.1} parent=0 // pred_fallthru
    _
  // Predicated region
  $region30: #{dqn_forward.1} parent=0 // pred_check
    _
  $region31: #{dqn_forward.1} parent=0 // pred_check_branch
    %33 = sbr.rel (0) target = $region33
  $region32: #{dqn_forward.1} parent=0 // pred_region
    _
  $region33: #{dqn_forward.1} parent=0 // pred_fallthru
    _
  // Predicated region
  $region34: #{dqn_forward.1} parent=0 // pred_check
    _
  $region35: #{dqn_forward.1} parent=0 // pred_check_branch
    %35 = sbr.rel (0) target = $region37
  $region36: #{dqn_forward.1} parent=0 // pred_region
    _
  $region37: #{dqn_forward.1} parent=0 // pred_fallthru
    _
  // Predicated region
  $region38: #{dqn_forward.1} parent=0 // pred_check
    _
  $region39: #{dqn_forward.1} parent=0 // pred_check_branch
    %37 = sbr.rel (0) target = $region41
  $region40: #{dqn_forward.1} parent=0 // pred_region
    _
  $region41: #{dqn_forward.1} parent=0 // pred_fallthru
    _
  // Predicated region
  $region42: #{dqn_forward.1} parent=0 // pred_check
    _
  $region43: #{dqn_forward.1} parent=0 // pred_check_branch
    %39 = sbr.rel (0) target = $region45
  $region44: #{dqn_forward.1} parent=0 // pred_region
    _
  $region45: #{dqn_forward.1} parent=0 // pred_fallthru
    _
  // Predicated region
  $region46: #{dqn_forward.1} parent=0 // pred_check
    _
  $region47: #{dqn_forward.1} parent=0 // pred_check_branch
    %41 = sbr.rel (0) target = $region49
  $region48: #{dqn_forward.1} parent=0 // pred_region
    _
  $region49: #{dqn_forward.1} parent=0 // pred_fallthru
    _
  // Predicated region
  $region50: #{dqn_forward.1} parent=0 // pred_check
    _
  $region51: #{dqn_forward.1} parent=0 // pred_check_branch
    %43 = sbr.rel (0) target = $region53
  $region52: #{dqn_forward.1} parent=0 // pred_region
    _
  $region53: #{dqn_forward.1} parent=0 // pred_fallthru
    _
  %v44 = vld [vmem:[%s0] sm:$0xff]
  %v45 = vld [vmem:[%s0 + $0x8] sm:$0xff]
  %v46 = vld [vmem:[%s0 + $0x10] sm:$0xff]
  %v47 = vld [vmem:[%s0 + $0x18] sm:$0xff]
  %v48 = vld [vmem:[%s0 + $0x20] sm:$0xff]
  %v49 = vld [vmem:[%s0 + $0x28] sm:$0xff]
  %v50 = vld [vmem:[%s0 + $0x30] sm:$0xff]
  %v51 = vld [vmem:[%s0 + $0x38] sm:$0xff]
  %v52 = vld [vmem:[%s0 + $0x40] sm:$0xff]
  %v53 = vld [vmem:[%s0 + $0x48] sm:$0xff]
  %v54 = vld [vmem:[%s0 + $0x50] sm:$0xff]
  %v55 = vld [vmem:[%s0 + $0x58] sm:$0xff]
  %v56 = vld [vmem:[%s0 + $0x60] sm:$0xff]
  %v57 = vld [vmem:[%s0 + $0x68] sm:$0xff]
  %v58 = vld [vmem:[%s0 + $0x70] sm:$0xff]
  %v59 = vld [vmem:[%s0 + $0x78] sm:$0xff]
  %v60 = vld [vmem:[%s0 + $0x80] sm:$0xff]
  %v61 = vld [vmem:[%s0 + $0x88] sm:$0xff]
  %v62 = vld [vmem:[%s0 + $0x90] sm:$0xff]
  %v63 = vld [vmem:[%s0 + $0x98] sm:$0xff]
  %v64 = vld [vmem:[%s0 + $0xa0] sm:$0xff]
  %v65 = vld [vmem:[%s0 + $0xa8] sm:$0xff]
  %v66 = vld [vmem:[%s0 + $0xb0] sm:$0xff]
  %v67 = vld [vmem:[%s0 + $0xb8] sm:$0xff]
  %v68 = vld [vmem:[%s0 + $0xc0] sm:$0xff]
  %v69 = vld [vmem:[%s0 + $0xc8] sm:$0xff]
  %v70 = vld [vmem:[%s0 + $0xd0] sm:$0xff]
  %v71 = vld [vmem:[%s0 + $0xd8] sm:$0xff]
  %v72 = vld [vmem:[%s0 + $0xe0] sm:$0xff]
  %v73 = vld [vmem:[%s0 + $0xe8] sm:$0xff]
  %v74 = vld [vmem:[%s0 + $0xf0] sm:$0xff]
  %v75 = vld [vmem:[%s0 + $0xf8] sm:$0xff]
  %v76 = vld [vmem:[%s0 + $0x100] sm:$0xff]
  %v77 = vld [vmem:[%s0 + $0x108] sm:$0xff]
  %v78 = vld [vmem:[%s0 + $0x110] sm:$0xff]
  %v79 = vld [vmem:[%s0 + $0x118] sm:$0xff]
  %v80 = vld [vmem:[%s0 + $0x120] sm:$0xff]
  %v81 = vld [vmem:[%s0 + $0x128] sm:$0xff]
  %v82 = vld [vmem:[%s0 + $0x130] sm:$0xff]
  %v83 = vld [vmem:[%s0 + $0x138] sm:$0xff]
  %v84 = vld [vmem:[%s0 + $0x140] sm:$0xff]
  %v85 = vld [vmem:[%s0 + $0x148] sm:$0xff]
  %v86 = vld [vmem:[%s0 + $0x150] sm:$0xff]
  %v87 = vld [vmem:[%s0 + $0x158] sm:$0xff]
  %v88 = vld [vmem:[%s0 + $0x160] sm:$0xff]
  %v89 = vld [vmem:[%s0 + $0x168] sm:$0xff]
  %v90 = vld [vmem:[%s0 + $0x170] sm:$0xff]
  %v91 = vld [vmem:[%s0 + $0x178] sm:$0xff]
  %v92 = vld [vmem:[%s0 + $0x180] sm:$0xff]
  %v93 = vld [vmem:[%s0 + $0x188] sm:$0xff]
  %v94 = vld [vmem:[%s0 + $0x190] sm:$0xff]
  %v95 = vld [vmem:[%s0 + $0x198] sm:$0xff]
  %v96 = vld [vmem:[%s0 + $0x1a0] sm:$0xff]
  %v97 = vld [vmem:[%s0 + $0x1a8] sm:$0xff]
  %v98 = vld [vmem:[%s0 + $0x1b0] sm:$0xff]
  %v99 = vld [vmem:[%s0 + $0x1b8] sm:$0xff]
  %v100 = vld [vmem:[%s0 + $0x1c0] sm:$0xff]
  %v101 = vld [vmem:[%s0 + $0x1c8] sm:$0xff]
  %v102 = vld [vmem:[%s0 + $0x1d0] sm:$0xff]
  %v103 = vld [vmem:[%s0 + $0x1d8] sm:$0xff]
  %v104 = vld [vmem:[%s0 + $0x1e0] sm:$0xff]
  %v105 = vld [vmem:[%s0 + $0x1e8] sm:$0xff]
  %v106 = vld [vmem:[%s0 + $0x1f0] sm:$0xff]
  %v107 = vld [vmem:[%s0 + $0x1f8] sm:$0xff]
  %v108 = vld [vmem:[%s0 + $0x200] sm:$0xff]
  %v109 = vld [vmem:[%s0 + $0x208] sm:$0xff]
  %v110 = vld [vmem:[%s0 + $0x210] sm:$0xff]
  %v111 = vld [vmem:[%s0 + $0x218] sm:$0xff]
  %v112 = vld [vmem:[%s0 + $0x220] sm:$0xff]
  %v113 = vld [vmem:[%s0 + $0x228] sm:$0xff]
  %v114 = vld [vmem:[%s0 + $0x230] sm:$0xff]
  %v115 = vld [vmem:[%s0 + $0x238] sm:$0xff]
  %v116 = vld [vmem:[%s1] sm:$0xff]
  %v117 = vld [vmem:[%s1 + $0x8] sm:$0xff]
  %v118 = vld [vmem:[%s1 + $0x10] sm:$0xff]
  %v119 = vld [vmem:[%s1 + $0x18] sm:$0xff]
  %v120 = vld [vmem:[%s1 + $0x20] sm:$0xff]
  %v121 = vld [vmem:[%s1 + $0x28] sm:$0xff]
  %v122 = vld [vmem:[%s1 + $0x30] sm:$0xff]
  %v123 = vld [vmem:[%s1 + $0x38] sm:$0xff]
  %v124 = vld [vmem:[%s1 + $0x40] sm:$0xff]
  %v125 = vld [vmem:[%s1 + $0x48] sm:$0xff]
  %v126 = vld [vmem:[%s1 + $0x50] sm:$0xff]
  %v127 = vld [vmem:[%s1 + $0x58] sm:$0xff]
  %v128 = vld [vmem:[%s1 + $0x60] sm:$0xff]
  %v129 = vld [vmem:[%s1 + $0x68] sm:$0xff]
  %v130 = vld [vmem:[%s1 + $0x70] sm:$0xff]
  %v131 = vld [vmem:[%s1 + $0x78] sm:$0xff]
  %v132 = vld [vmem:[%s1 + $0x80] sm:$0xff]
  %v133 = vld [vmem:[%s1 + $0x88] sm:$0xff]
  %v134 = vld [vmem:[%s1 + $0x90] sm:$0xff]
  %v135 = vld [vmem:[%s1 + $0x98] sm:$0xff]
  %v136 = vld [vmem:[%s1 + $0xa0] sm:$0xff]
  %v137 = vld [vmem:[%s1 + $0xa8] sm:$0xff]
  %v138 = vld [vmem:[%s1 + $0xb0] sm:$0xff]
  %v139 = vld [vmem:[%s1 + $0xb8] sm:$0xff]
  %v140 = vld [vmem:[%s1 + $0xc0] sm:$0xff]
  %v141 = vld [vmem:[%s1 + $0xc8] sm:$0xff]
  %v142 = vld [vmem:[%s1 + $0xd0] sm:$0xff]
  %v143 = vld [vmem:[%s1 + $0xd8] sm:$0xff]
  %v144 = vld [vmem:[%s1 + $0xe0] sm:$0xff]
  %v145 = vld [vmem:[%s1 + $0xe8] sm:$0xff]
  %v146 = vld [vmem:[%s1 + $0xf0] sm:$0xff]
  %v147 = vld [vmem:[%s1 + $0xf8] sm:$0xff]
  %v148 = vld [vmem:[%s2] sm:$0x1]
  %v150 = vlaneseq
  %v151 = vshrl.u32 %v150, 7
  %v152 = vsub.s32 0, %v151
  %v153 = vrot.slane %v148, %v152
  %155 = vmatprep.subr.mxu0 0.0
  %156 = vmatpush1.msra.mxu0 %v116
  %157 = vmatprep.subr.mxu0 0.0
  %158 = vmatpush1.msra.mxu0 %v117
  %159 = vmatprep.subr.mxu0 0.0
  %160 = vmatpush1.msra.mxu0 %v118
  %161 = vmatprep.subr.mxu0 0.0
  %162 = vmatpush1.msra.mxu0 %v119
  %163 = vmatprep.subr.mxu0 0.0
  %164 = vmatpush1.msra.mxu0 %v120
  %165 = vmatprep.subr.mxu0 0.0
  %166 = vmatpush1.msra.mxu0 %v121
  %167 = vmatprep.subr.mxu0 0.0
  %168 = vmatpush1.msra.mxu0 %v122
  %169 = vmatprep.subr.mxu0 0.0
  %170 = vmatpush1.msra.mxu0 %v123
  %171 = vmatprep.subr.mxu0 0.0
  %172 = vmatpush1.msra.mxu0 %v124
  %173 = vmatprep.subr.mxu0 0.0
  %174 = vmatpush1.msra.mxu0 %v125
  %175 = vmatprep.subr.mxu0 0.0
  %176 = vmatpush1.msra.mxu0 %v126
  %177 = vmatprep.subr.mxu0 0.0
  %178 = vmatpush1.msra.mxu0 %v127
  %179 = vmatprep.subr.mxu0 0.0
  %180 = vmatpush1.msra.mxu0 %v128
  %181 = vmatprep.subr.mxu0 0.0
  %182 = vmatpush1.msra.mxu0 %v129
  %183 = vmatprep.subr.mxu0 0.0
  %184 = vmatpush1.msra.mxu0 %v130
  %185 = vmatprep.subr.mxu0 0.0
  %186 = vmatpush1.msra.mxu0 %v131
  %187 = vmatprep.subr.mxu0 0.0
  %188 = vmatpush1.msra.mxu0 %v132
  %189 = vmatprep.subr.mxu0 0.0
  %190 = vmatpush1.msra.mxu0 %v133
  %191 = vmatprep.subr.mxu0 0.0
  %192 = vmatpush1.msra.mxu0 %v134
  %193 = vmatprep.subr.mxu0 0.0
  %194 = vmatpush1.msra.mxu0 %v135
  %195 = vmatprep.subr.mxu0 0.0
  %196 = vmatpush1.msra.mxu0 %v136
  %197 = vmatprep.subr.mxu0 0.0
  %198 = vmatpush1.msra.mxu0 %v137
  %199 = vmatprep.subr.mxu0 0.0
  %200 = vmatpush1.msra.mxu0 %v138
  %201 = vmatprep.subr.mxu0 0.0
  %202 = vmatpush1.msra.mxu0 %v139
  %203 = vmatprep.subr.mxu0 0.0
  %204 = vmatpush1.msra.mxu0 %v140
  %205 = vmatprep.subr.mxu0 0.0
  %206 = vmatpush1.msra.mxu0 %v141
  %207 = vmatprep.subr.mxu0 0.0
  %208 = vmatpush1.msra.mxu0 %v142
  %209 = vmatprep.subr.mxu0 0.0
  %210 = vmatpush1.msra.mxu0 %v143
  %211 = vmatprep.subr.mxu0 0.0
  %212 = vmatpush1.msra.mxu0 %v144
  %213 = vmatprep.subr.mxu0 0.0
  %214 = vmatpush1.msra.mxu0 %v145
  %215 = vmatprep.subr.mxu0 0.0
  %216 = vmatpush1.msra.mxu0 %v146
  %217 = vmatprep.subr.mxu0 0.0
  %218 = vmatpush1.msra.mxu0 %v147
  %219 = vmatprep.mubr.f32.mxu0 %v45
  %220 = vmatmul.mubr.f32.gmra.mrb[0].mxu0 %v44
  %v221 = vpop.f32.mrb[0].mxu0
  %v222 = vadd.f32 %v153, %v221
  %v223 = vpop.f32.mrb[0].mxu0
  %224 = vmatprep.mubr.f32.mxu0 %v47
  %225 = vmatmul.mubr.f32.gmra.mrb[0].mxu0 %v46
  %v226 = vpop.f32.mrb[0].mxu0
  %v227 = vadd.f32 %v153, %v226
  %v228 = vpop.f32.mrb[0].mxu0
  %229 = vmatprep.mubr.f32.mxu0 %v49
  %230 = vmatmul.mubr.f32.gmra.mrb[0].mxu0 %v48
  %v231 = vpop.f32.mrb[0].mxu0
  %v232 = vadd.f32 %v153, %v231
  %v233 = vpop.f32.mrb[0].mxu0
  %234 = vmatprep.mubr.f32.mxu0 %v51
  %235 = vmatmul.mubr.f32.gmra.mrb[0].mxu0 %v50
  %v236 = vpop.f32.mrb[0].mxu0
  %v237 = vadd.f32 %v153, %v236
  %v238 = vpop.f32.mrb[0].mxu0
  %239 = vmatprep.mubr.f32.mxu0 %v53
  %240 = vmatmul.mubr.f32.gmra.mrb[0].mxu0 %v52
  %v241 = vpop.f32.mrb[0].mxu0
  %v242 = vadd.f32 %v153, %v241
  %v243 = vpop.f32.mrb[0].mxu0
  %244 = vmatprep.mubr.f32.mxu0 %v55
  %245 = vmatmul.mubr.f32.gmra.mrb[0].mxu0 %v54
  %v246 = vpop.f32.mrb[0].mxu0
  %v247 = vadd.f32 %v153, %v246
  %v248 = vpop.f32.mrb[0].mxu0
  %249 = vmatprep.mubr.f32.mxu0 %v57
  %250 = vmatmul.mubr.f32.gmra.mrb[0].mxu0 %v56
  %v251 = vpop.f32.mrb[0].mxu0
  %v252 = vadd.f32 %v153, %v251
  %v253 = vpop.f32.mrb[0].mxu0
  %254 = vmatprep.mubr.f32.mxu0 %v59
  %255 = vmatmul.mubr.f32.gmra.mrb[0].mxu0 %v58
  %v256 = vpop.f32.mrb[0].mxu0
  %v257 = vadd.f32 %v153, %v256
  %v258 = vpop.f32.mrb[0].mxu0
  %259 = vmatprep.mubr.f32.mxu0 %v61
  %260 = vmatmul.mubr.f32.gmra.mrb[0].mxu0 %v60
  %v261 = vpop.f32.mrb[0].mxu0
  %v262 = vadd.f32 %v153, %v261
  %v263 = vpop.f32.mrb[0].mxu0
  %264 = vmatprep.mubr.f32.mxu0 %v63
  %265 = vmatmul.mubr.f32.gmra.mrb[0].mxu0 %v62
  %v266 = vpop.f32.mrb[0].mxu0
  %v267 = vadd.f32 %v153, %v266
  %v268 = vpop.f32.mrb[0].mxu0
  %269 = vmatprep.mubr.f32.mxu0 %v65
  %270 = vmatmul.mubr.f32.gmra.mrb[0].mxu0 %v64
  %v271 = vpop.f32.mrb[0].mxu0
  %v272 = vadd.f32 %v153, %v271
  %v273 = vpop.f32.mrb[0].mxu0
  %274 = vmatprep.mubr.f32.mxu0 %v67
  %275 = vmatmul.mubr.f32.gmra.mrb[0].mxu0 %v66
  %v276 = vpop.f32.mrb[0].mxu0
  %v277 = vadd.f32 %v153, %v276
  %v278 = vpop.f32.mrb[0].mxu0
  %279 = vmatprep.mubr.f32.mxu0 %v69
  %280 = vmatmul.mubr.f32.gmra.mrb[0].mxu0 %v68
  %v281 = vpop.f32.mrb[0].mxu0
  %v282 = vadd.f32 %v153, %v281
  %v283 = vpop.f32.mrb[0].mxu0
  %284 = vmatprep.mubr.f32.mxu0 %v71
  %285 = vmatmul.mubr.f32.gmra.mrb[0].mxu0 %v70
  %v286 = vpop.f32.mrb[0].mxu0
  %v287 = vadd.f32 %v153, %v286
  %v288 = vpop.f32.mrb[0].mxu0
  %289 = vmatprep.mubr.f32.mxu0 %v73
  %290 = vmatmul.mubr.f32.gmra.mrb[0].mxu0 %v72
  %v291 = vpop.f32.mrb[0].mxu0
  %v292 = vadd.f32 %v153, %v291
  %v293 = vpop.f32.mrb[0].mxu0
  %294 = vmatprep.mubr.f32.mxu0 %v75
  %295 = vmatmul.mubr.f32.gmra.mrb[0].mxu0 %v74
  %v296 = vpop.f32.mrb[0].mxu0
  %v297 = vadd.f32 %v153, %v296
  %v298 = vpop.f32.mrb[0].mxu0
  %299 = vmatprep.mubr.f32.mxu0 %v77
  %300 = vmatmul.mubr.f32.gmra.mrb[0].mxu0 %v76
  %v301 = vpop.f32.mrb[0].mxu0
  %v302 = vadd.f32 %v153, %v301
  %v303 = vpop.f32.mrb[0].mxu0
  %304 = vmatprep.mubr.f32.mxu0 %v79
  %305 = vmatmul.mubr.f32.gmra.mrb[0].mxu0 %v78
  %v306 = vpop.f32.mrb[0].mxu0
  %v307 = vadd.f32 %v153, %v306
  %v308 = vpop.f32.mrb[0].mxu0
  %309 = vmatprep.mubr.f32.mxu0 %v81
  %310 = vmatmul.mubr.f32.gmra.mrb[0].mxu0 %v80
  %v311 = vpop.f32.mrb[0].mxu0
  %v312 = vadd.f32 %v153, %v311
  %v313 = vpop.f32.mrb[0].mxu0
  %314 = vmatprep.mubr.f32.mxu0 %v83
  %315 = vmatmul.mubr.f32.gmra.mrb[0].mxu0 %v82
  %v316 = vpop.f32.mrb[0].mxu0
  %v317 = vadd.f32 %v153, %v316
  %v318 = vpop.f32.mrb[0].mxu0
  %319 = vmatprep.mubr.f32.mxu0 %v85
  %320 = vmatmul.mubr.f32.gmra.mrb[0].mxu0 %v84
  %v321 = vpop.f32.mrb[0].mxu0
  %v322 = vadd.f32 %v153, %v321
  %v323 = vpop.f32.mrb[0].mxu0
  %324 = vmatprep.mubr.f32.mxu0 %v87
  %325 = vmatmul.mubr.f32.gmra.mrb[0].mxu0 %v86
  %v326 = vpop.f32.mrb[0].mxu0
  %v327 = vadd.f32 %v153, %v326
  %v328 = vpop.f32.mrb[0].mxu0
  %329 = vmatprep.mubr.f32.mxu0 %v89
  %330 = vmatmul.mubr.f32.gmra.mrb[0].mxu0 %v88
  %v331 = vpop.f32.mrb[0].mxu0
  %v332 = vadd.f32 %v153, %v331
  %v333 = vpop.f32.mrb[0].mxu0
  %334 = vmatprep.mubr.f32.mxu0 %v91
  %335 = vmatmul.mubr.f32.gmra.mrb[0].mxu0 %v90
  %v336 = vpop.f32.mrb[0].mxu0
  %v337 = vadd.f32 %v153, %v336
  %v338 = vpop.f32.mrb[0].mxu0
  %339 = vmatprep.mubr.f32.mxu0 %v93
  %340 = vmatmul.mubr.f32.gmra.mrb[0].mxu0 %v92
  %v341 = vpop.f32.mrb[0].mxu0
  %v342 = vadd.f32 %v153, %v341
  %v343 = vpop.f32.mrb[0].mxu0
  %344 = vmatprep.mubr.f32.mxu0 %v95
  %345 = vmatmul.mubr.f32.gmra.mrb[0].mxu0 %v94
  %v346 = vpop.f32.mrb[0].mxu0
  %v347 = vadd.f32 %v153, %v346
  %v348 = vpop.f32.mrb[0].mxu0
  %349 = vmatprep.mubr.f32.mxu0 %v97
  %350 = vmatmul.mubr.f32.gmra.mrb[0].mxu0 %v96
  %v351 = vpop.f32.mrb[0].mxu0
  %v352 = vadd.f32 %v153, %v351
  %v353 = vpop.f32.mrb[0].mxu0
  %354 = vmatprep.mubr.f32.mxu0 %v99
  %355 = vmatmul.mubr.f32.gmra.mrb[0].mxu0 %v98
  %v356 = vpop.f32.mrb[0].mxu0
  %v357 = vadd.f32 %v153, %v356
  %v358 = vpop.f32.mrb[0].mxu0
  %359 = vmatprep.mubr.f32.mxu0 %v101
  %360 = vmatmul.mubr.f32.gmra.mrb[0].mxu0 %v100
  %v361 = vpop.f32.mrb[0].mxu0
  %v362 = vadd.f32 %v153, %v361
  %v363 = vpop.f32.mrb[0].mxu0
  %364 = vmatprep.mubr.f32.mxu0 %v103
  %365 = vmatmul.mubr.f32.gmra.mrb[0].mxu0 %v102
  %v366 = vpop.f32.mrb[0].mxu0
  %v367 = vadd.f32 %v153, %v366
  %v368 = vpop.f32.mrb[0].mxu0
  %369 = vmatprep.mubr.f32.mxu0 %v105
  %370 = vmatmul.mubr.f32.gmra.mrb[0].mxu0 %v104
  %v371 = vpop.f32.mrb[0].mxu0
  %v372 = vadd.f32 %v153, %v371
  %v373 = vpop.f32.mrb[0].mxu0
  %374 = vmatprep.mubr.f32.mxu0 %v107
  %375 = vmatmul.mubr.f32.gmra.mrb[0].mxu0 %v106
  %v376 = vpop.f32.mrb[0].mxu0
  %v377 = vadd.f32 %v153, %v376
  %v378 = vpop.f32.mrb[0].mxu0
  %379 = vmatprep.mubr.f32.mxu0 %v109
  %380 = vmatmul.mubr.f32.gmra.mrb[0].mxu0 %v108
  %v381 = vpop.f32.mrb[0].mxu0
  %v382 = vadd.f32 %v153, %v381
  %v383 = vpop.f32.mrb[0].mxu0
  %384 = vmatprep.mubr.f32.mxu0 %v111
  %385 = vmatmul.mubr.f32.gmra.mrb[0].mxu0 %v110
  %v386 = vpop.f32.mrb[0].mxu0
  %v387 = vadd.f32 %v153, %v386
  %v388 = vpop.f32.mrb[0].mxu0
  %389 = vmatprep.mubr.f32.mxu0 %v113
  %390 = vmatmul.mubr.f32.gmra.mrb[0].mxu0 %v112
  %v391 = vpop.f32.mrb[0].mxu0
  %v392 = vadd.f32 %v153, %v391
  %v393 = vpop.f32.mrb[0].mxu0
  %394 = vmatprep.mubr.f32.mxu0 %v115
  %395 = vmatmul.mubr.f32.gmra.mrb[0].mxu0 %v114
  %v396 = vpop.f32.mrb[0].mxu0
  %v397 = vadd.f32 %v153, %v396
  %v398 = vpop.f32.mrb[0].mxu0
  %399 = vdwg.mxu0
  %v400 = vmax.f32 %v222, 0.0
  %v401 = vmax.f32 %v227, 0.0
  %v402 = vmax.f32 %v232, 0.0
  %v403 = vmax.f32 %v237, 0.0
  %v404 = vmax.f32 %v242, 0.0
  %v405 = vmax.f32 %v247, 0.0
  %v406 = vmax.f32 %v252, 0.0
  %v407 = vmax.f32 %v257, 0.0
  %v408 = vmax.f32 %v262, 0.0
  %v409 = vmax.f32 %v267, 0.0
  %v410 = vmax.f32 %v272, 0.0
  %v411 = vmax.f32 %v277, 0.0
  %v412 = vmax.f32 %v282, 0.0
  %v413 = vmax.f32 %v287, 0.0
  %v414 = vmax.f32 %v292, 0.0
  %v415 = vmax.f32 %v297, 0.0
  %v416 = vmax.f32 %v302, 0.0
  %v417 = vmax.f32 %v307, 0.0
  %v418 = vmax.f32 %v312, 0.0
  %v419 = vmax.f32 %v317, 0.0
  %v420 = vmax.f32 %v322, 0.0
  %v421 = vmax.f32 %v327, 0.0
  %v422 = vmax.f32 %v332, 0.0
  %v423 = vmax.f32 %v337, 0.0
  %v424 = vmax.f32 %v342, 0.0
  %v425 = vmax.f32 %v347, 0.0
  %v426 = vmax.f32 %v352, 0.0
  %v427 = vmax.f32 %v357, 0.0
  %v428 = vmax.f32 %v362, 0.0
  %v429 = vmax.f32 %v367, 0.0
  %v430 = vmax.f32 %v372, 0.0
  %v431 = vmax.f32 %v377, 0.0
  %v432 = vmax.f32 %v382, 0.0
  %v433 = vmax.f32 %v387, 0.0
  %v434 = vmax.f32 %v392, 0.0
  %v435 = vmax.f32 %v397, 0.0
  %v436 = vld [vmem:[%s3] sm:$0xff]
  %v437 = vld [vmem:[%s3 + $0x8] sm:$0xf]
  %v438 = vld [vmem:[%s3 + $0xc] sm:$0xff]
  %v439 = vld [vmem:[%s3 + $0x14] sm:$0xf]
  %v440 = vld [vmem:[%s3 + $0x18] sm:$0xff]
  %v441 = vld [vmem:[%s3 + $0x20] sm:$0xf]
  %v442 = vld [vmem:[%s3 + $0x24] sm:$0xff]
  %v443 = vld [vmem:[%s3 + $0x2c] sm:$0xf]
  %v444 = vld [vmem:[%s3 + $0x30] sm:$0xff]
  %v445 = vld [vmem:[%s3 + $0x38] sm:$0xf]
  %v446 = vld [vmem:[%s3 + $0x3c] sm:$0xff]
  %v447 = vld [vmem:[%s3 + $0x44] sm:$0xf]
  %v448 = vld [vmem:[%s3 + $0x48] sm:$0xff]
  %v449 = vld [vmem:[%s3 + $0x50] sm:$0xf]
  %v450 = vld [vmem:[%s3 + $0x54] sm:$0xff]
  %v451 = vld [vmem:[%s3 + $0x5c] sm:$0xf]
  %v452 = vld [vmem:[%s3 + $0x60] sm:$0xff]
  %v453 = vld [vmem:[%s3 + $0x68] sm:$0xf]
  %v454 = vld [vmem:[%s3 + $0x6c] sm:$0xff]
  %v455 = vld [vmem:[%s3 + $0x74] sm:$0xf]
  %v456 = vld [vmem:[%s3 + $0x78] sm:$0xff]
  %v457 = vld [vmem:[%s3 + $0x80] sm:$0xf]
  %v458 = vld [vmem:[%s3 + $0x84] sm:$0xff]
  %v459 = vld [vmem:[%s3 + $0x8c] sm:$0xf]
  %v460 = vld [vmem:[%s3 + $0x90] sm:$0xff]
  %v461 = vld [vmem:[%s3 + $0x98] sm:$0xf]
  %v462 = vld [vmem:[%s3 + $0x9c] sm:$0xff]
  %v463 = vld [vmem:[%s3 + $0xa4] sm:$0xf]
  %v464 = vld [vmem:[%s3 + $0xa8] sm:$0xff]
  %v465 = vld [vmem:[%s3 + $0xb0] sm:$0xf]
  %v466 = vld [vmem:[%s3 + $0xb4] sm:$0xff]
  %v467 = vld [vmem:[%s3 + $0xbc] sm:$0xf]
  %v468 = vld [vmem:[%s3 + $0xc0] sm:$0xff]
  %v469 = vld [vmem:[%s3 + $0xc8] sm:$0xf]
  %v470 = vld [vmem:[%s3 + $0xcc] sm:$0xff]
  %v471 = vld [vmem:[%s3 + $0xd4] sm:$0xf]
  %v472 = vld [vmem:[%s3 + $0xd8] sm:$0xff]
  %v473 = vld [vmem:[%s3 + $0xe0] sm:$0xf]
  %v474 = vld [vmem:[%s3 + $0xe4] sm:$0xff]
  %v475 = vld [vmem:[%s3 + $0xec] sm:$0xf]
  %v476 = vld [vmem:[%s3 + $0xf0] sm:$0xff]
  %v477 = vld [vmem:[%s3 + $0xf8] sm:$0xf]
  %v478 = vld [vmem:[%s3 + $0xfc] sm:$0xff]
  %v479 = vld [vmem:[%s3 + $0x104] sm:$0xf]
  %v480 = vld [vmem:[%s3 + $0x108] sm:$0xff]
  %v481 = vld [vmem:[%s3 + $0x110] sm:$0xf]
  %v482 = vld [vmem:[%s3 + $0x114] sm:$0xff]
  %v483 = vld [vmem:[%s3 + $0x11c] sm:$0xf]
  %v484 = vld [vmem:[%s3 + $0x120] sm:$0xff]
  %v485 = vld [vmem:[%s3 + $0x128] sm:$0xf]
  %v486 = vld [vmem:[%s3 + $0x12c] sm:$0xff]
  %v487 = vld [vmem:[%s3 + $0x134] sm:$0xf]
  %v488 = vld [vmem:[%s3 + $0x138] sm:$0xff]
  %v489 = vld [vmem:[%s3 + $0x140] sm:$0xf]
  %v490 = vld [vmem:[%s3 + $0x144] sm:$0xff]
  %v491 = vld [vmem:[%s3 + $0x14c] sm:$0xf]
  %v492 = vld [vmem:[%s3 + $0x150] sm:$0xff]
  %v493 = vld [vmem:[%s3 + $0x158] sm:$0xf]
  %v494 = vld [vmem:[%s3 + $0x15c] sm:$0xff]
  %v495 = vld [vmem:[%s3 + $0x164] sm:$0xf]
  %v496 = vld [vmem:[%s3 + $0x168] sm:$0xff]
  %v497 = vld [vmem:[%s3 + $0x170] sm:$0xf]
  %v498 = vld [vmem:[%s3 + $0x174] sm:$0xff]
  %v499 = vld [vmem:[%s3 + $0x17c] sm:$0xf]
  %v500 = vld [vmem:[%s3 + $0x180] sm:$0xff]
  %v501 = vld [vmem:[%s3 + $0x188] sm:$0xf]
  %v502 = vld [vmem:[%s3 + $0x18c] sm:$0xff]
  %v503 = vld [vmem:[%s3 + $0x194] sm:$0xf]
  %v504 = vld [vmem:[%s3 + $0x198] sm:$0xff]
  %v505 = vld [vmem:[%s3 + $0x1a0] sm:$0xf]
  %v506 = vld [vmem:[%s3 + $0x1a4] sm:$0xff]
  %v507 = vld [vmem:[%s3 + $0x1ac] sm:$0xf]
  %v508 = vld [vmem:[%s3 + $0x1b0] sm:$0xff]
  %v509 = vld [vmem:[%s3 + $0x1b8] sm:$0xf]
  %v510 = vld [vmem:[%s3 + $0x1bc] sm:$0xff]
  %v511 = vld [vmem:[%s3 + $0x1c4] sm:$0xf]
  %v512 = vld [vmem:[%s3 + $0x1c8] sm:$0xff]
  %v513 = vld [vmem:[%s3 + $0x1d0] sm:$0xf]
  %v514 = vld [vmem:[%s3 + $0x1d4] sm:$0xff]
  %v515 = vld [vmem:[%s3 + $0x1dc] sm:$0xf]
  %v516 = vld [vmem:[%s3 + $0x1e0] sm:$0xff]
  %v517 = vld [vmem:[%s3 + $0x1e8] sm:$0xf]
  %v518 = vld [vmem:[%s3 + $0x1ec] sm:$0xff]
  %v519 = vld [vmem:[%s3 + $0x1f4] sm:$0xf]
  %v520 = vld [vmem:[%s3 + $0x1f8] sm:$0xff]
  %v521 = vld [vmem:[%s3 + $0x200] sm:$0xf]
  %v522 = vld [vmem:[%s3 + $0x204] sm:$0xff]
  %v523 = vld [vmem:[%s3 + $0x20c] sm:$0xf]
  %v524 = vld [vmem:[%s3 + $0x210] sm:$0xff]
  %v525 = vld [vmem:[%s3 + $0x218] sm:$0xf]
  %v526 = vld [vmem:[%s3 + $0x21c] sm:$0xff]
  %v527 = vld [vmem:[%s3 + $0x224] sm:$0xf]
  %v528 = vld [vmem:[%s3 + $0x228] sm:$0xff]
  %v529 = vld [vmem:[%s3 + $0x230] sm:$0xf]
  %v530 = vld [vmem:[%s3 + $0x234] sm:$0xff]
  %v531 = vld [vmem:[%s3 + $0x23c] sm:$0xf]
  %v532 = vld [vmem:[%s3 + $0x240] sm:$0xff]
  %v533 = vld [vmem:[%s3 + $0x248] sm:$0xf]
  %v534 = vld [vmem:[%s3 + $0x24c] sm:$0xff]
  %v535 = vld [vmem:[%s3 + $0x254] sm:$0xf]
  %v536 = vld [vmem:[%s3 + $0x258] sm:$0xff]
  %v537 = vld [vmem:[%s3 + $0x260] sm:$0xf]
  %v538 = vld [vmem:[%s3 + $0x264] sm:$0xff]
  %v539 = vld [vmem:[%s3 + $0x26c] sm:$0xf]
  %v540 = vld [vmem:[%s3 + $0x270] sm:$0xff]
  %v541 = vld [vmem:[%s3 + $0x278] sm:$0xf]
  %v542 = vld [vmem:[%s3 + $0x27c] sm:$0xff]
  %v543 = vld [vmem:[%s3 + $0x284] sm:$0xf]
  %v544 = vld [vmem:[%s3 + $0x288] sm:$0xff]
  %v545 = vld [vmem:[%s3 + $0x290] sm:$0xf]
  %v546 = vld [vmem:[%s3 + $0x294] sm:$0xff]
  %v547 = vld [vmem:[%s3 + $0x29c] sm:$0xf]
  %v548 = vld [vmem:[%s3 + $0x2a0] sm:$0xff]
  %v549 = vld [vmem:[%s3 + $0x2a8] sm:$0xf]
  %v550 = vld [vmem:[%s3 + $0x2ac] sm:$0xff]
  %v551 = vld [vmem:[%s3 + $0x2b4] sm:$0xf]
  %v552 = vld [vmem:[%s3 + $0x2b8] sm:$0xff]
  %v553 = vld [vmem:[%s3 + $0x2c0] sm:$0xf]
  %v554 = vld [vmem:[%s3 + $0x2c4] sm:$0xff]
  %v555 = vld [vmem:[%s3 + $0x2cc] sm:$0xf]
  %v556 = vld [vmem:[%s3 + $0x2d0] sm:$0xff]
  %v557 = vld [vmem:[%s3 + $0x2d8] sm:$0xf]
  %v558 = vld [vmem:[%s3 + $0x2dc] sm:$0xff]
  %v559 = vld [vmem:[%s3 + $0x2e4] sm:$0xf]
  %v560 = vld [vmem:[%s3 + $0x2e8] sm:$0xff]
  %v561 = vld [vmem:[%s3 + $0x2f0] sm:$0xf]
  %v562 = vld [vmem:[%s3 + $0x2f4] sm:$0xff]
  %v563 = vld [vmem:[%s3 + $0x2fc] sm:$0xf]
  %v564 = vld [vmem:[%s3 + $0x300] sm:$0xff]
  %v565 = vld [vmem:[%s3 + $0x308] sm:$0xf]
  %v566 = vld [vmem:[%s3 + $0x30c] sm:$0xff]
  %v567 = vld [vmem:[%s3 + $0x314] sm:$0xf]
  %v568 = vld [vmem:[%s3 + $0x318] sm:$0xff]
  %v569 = vld [vmem:[%s3 + $0x320] sm:$0xf]
  %v570 = vld [vmem:[%s3 + $0x324] sm:$0xff]
  %v571 = vld [vmem:[%s3 + $0x32c] sm:$0xf]
  %v572 = vld [vmem:[%s3 + $0x330] sm:$0xff]
  %v573 = vld [vmem:[%s3 + $0x338] sm:$0xf]
  %v574 = vld [vmem:[%s3 + $0x33c] sm:$0xff]
  %v575 = vld [vmem:[%s3 + $0x344] sm:$0xf]
  %v576 = vld [vmem:[%s3 + $0x348] sm:$0xff]
  %v577 = vld [vmem:[%s3 + $0x350] sm:$0xf]
  %v578 = vld [vmem:[%s3 + $0x354] sm:$0xff]
  %v579 = vld [vmem:[%s3 + $0x35c] sm:$0xf]
  %v580 = vld [vmem:[%s3 + $0x360] sm:$0xff]
  %v581 = vld [vmem:[%s3 + $0x368] sm:$0xf]
  %v582 = vld [vmem:[%s3 + $0x36c] sm:$0xff]
  %v583 = vld [vmem:[%s3 + $0x374] sm:$0xf]
  %v584 = vld [vmem:[%s3 + $0x378] sm:$0xff]
  %v585 = vld [vmem:[%s3 + $0x380] sm:$0xf]
  %v586 = vld [vmem:[%s3 + $0x384] sm:$0xff]
  %v587 = vld [vmem:[%s3 + $0x38c] sm:$0xf]
  %v588 = vld [vmem:[%s3 + $0x390] sm:$0xff]
  %v589 = vld [vmem:[%s3 + $0x398] sm:$0xf]
  %v590 = vld [vmem:[%s3 + $0x39c] sm:$0xff]
  %v591 = vld [vmem:[%s3 + $0x3a4] sm:$0xf]
  %v592 = vld [vmem:[%s3 + $0x3a8] sm:$0xff]
  %v593 = vld [vmem:[%s3 + $0x3b0] sm:$0xf]
  %v594 = vld [vmem:[%s3 + $0x3b4] sm:$0xff]
  %v595 = vld [vmem:[%s3 + $0x3bc] sm:$0xf]
  %v596 = vld [vmem:[%s3 + $0x3c0] sm:$0xff]
  %v597 = vld [vmem:[%s3 + $0x3c8] sm:$0xf]
  %v598 = vld [vmem:[%s3 + $0x3cc] sm:$0xff]
  %v599 = vld [vmem:[%s3 + $0x3d4] sm:$0xf]
  %v600 = vld [vmem:[%s3 + $0x3d8] sm:$0xff]
  %v601 = vld [vmem:[%s3 + $0x3e0] sm:$0xf]
  %v602 = vld [vmem:[%s3 + $0x3e4] sm:$0xff]
  %v603 = vld [vmem:[%s3 + $0x3ec] sm:$0xf]
  %v604 = vld [vmem:[%s3 + $0x3f0] sm:$0xff]
  %v605 = vld [vmem:[%s3 + $0x3f8] sm:$0xf]
  %v606 = vld [vmem:[%s3 + $0x3fc] sm:$0xff]
  %v607 = vld [vmem:[%s3 + $0x404] sm:$0xf]
  %v608 = vld [vmem:[%s3 + $0x408] sm:$0xff]
  %v609 = vld [vmem:[%s3 + $0x410] sm:$0xf]
  %v610 = vld [vmem:[%s3 + $0x414] sm:$0xff]
  %v611 = vld [vmem:[%s3 + $0x41c] sm:$0xf]
  %v612 = vld [vmem:[%s3 + $0x420] sm:$0xff]
  %v613 = vld [vmem:[%s3 + $0x428] sm:$0xf]
  %v614 = vld [vmem:[%s3 + $0x42c] sm:$0xff]
  %v615 = vld [vmem:[%s3 + $0x434] sm:$0xf]
  %v616 = vld [vmem:[%s3 + $0x438] sm:$0xff]
  %v617 = vld [vmem:[%s3 + $0x440] sm:$0xf]
  %v618 = vld [vmem:[%s3 + $0x444] sm:$0xff]
  %v619 = vld [vmem:[%s3 + $0x44c] sm:$0xf]
  %v620 = vld [vmem:[%s3 + $0x450] sm:$0xff]
  %v621 = vld [vmem:[%s3 + $0x458] sm:$0xf]
  %v622 = vld [vmem:[%s3 + $0x45c] sm:$0xff]
  %v623 = vld [vmem:[%s3 + $0x464] sm:$0xf]
  %v624 = vld [vmem:[%s3 + $0x468] sm:$0xff]
  %v625 = vld [vmem:[%s3 + $0x470] sm:$0xf]
  %v626 = vld [vmem:[%s3 + $0x474] sm:$0xff]
  %v627 = vld [vmem:[%s3 + $0x47c] sm:$0xf]
  %v628 = vld [vmem:[%s3 + $0x480] sm:$0xff]
  %v629 = vld [vmem:[%s3 + $0x488] sm:$0xf]
  %v630 = vld [vmem:[%s3 + $0x48c] sm:$0xff]
  %v631 = vld [vmem:[%s3 + $0x494] sm:$0xf]
  %v632 = vld [vmem:[%s3 + $0x498] sm:$0xff]
  %v633 = vld [vmem:[%s3 + $0x4a0] sm:$0xf]
  %v634 = vld [vmem:[%s3 + $0x4a4] sm:$0xff]
  %v635 = vld [vmem:[%s3 + $0x4ac] sm:$0xf]
  %v636 = vld [vmem:[%s3 + $0x4b0] sm:$0xff]
  %v637 = vld [vmem:[%s3 + $0x4b8] sm:$0xf]
  %v638 = vld [vmem:[%s3 + $0x4bc] sm:$0xff]
  %v639 = vld [vmem:[%s3 + $0x4c4] sm:$0xf]
  %v640 = vld [vmem:[%s3 + $0x4c8] sm:$0xff]
  %v641 = vld [vmem:[%s3 + $0x4d0] sm:$0xf]
  %v642 = vld [vmem:[%s3 + $0x4d4] sm:$0xff]
  %v643 = vld [vmem:[%s3 + $0x4dc] sm:$0xf]
  %v644 = vld [vmem:[%s3 + $0x4e0] sm:$0xff]
  %v645 = vld [vmem:[%s3 + $0x4e8] sm:$0xf]
  %v646 = vld [vmem:[%s3 + $0x4ec] sm:$0xff]
  %v647 = vld [vmem:[%s3 + $0x4f4] sm:$0xf]
  %v648 = vld [vmem:[%s3 + $0x4f8] sm:$0xff]
  %v649 = vld [vmem:[%s3 + $0x500] sm:$0xf]
  %v650 = vld [vmem:[%s3 + $0x504] sm:$0xff]
  %v651 = vld [vmem:[%s3 + $0x50c] sm:$0xf]
  %v652 = vld [vmem:[%s3 + $0x510] sm:$0xff]
  %v653 = vld [vmem:[%s3 + $0x518] sm:$0xf]
  %v654 = vld [vmem:[%s3 + $0x51c] sm:$0xff]
  %v655 = vld [vmem:[%s3 + $0x524] sm:$0xf]
  %v656 = vld [vmem:[%s3 + $0x528] sm:$0xff]
  %v657 = vld [vmem:[%s3 + $0x530] sm:$0xf]
  %v658 = vld [vmem:[%s3 + $0x534] sm:$0xff]
  %v659 = vld [vmem:[%s3 + $0x53c] sm:$0xf]
  %v660 = vunpack.c.l.bf16 %v436
  %v661 = vunpack.c.h.bf16 %v436
  %v662 = vunpack.c.l.bf16 %v437
  %v663 = vunpack.c.l.bf16 %v438
  %v664 = vunpack.c.h.bf16 %v438
  %v665 = vunpack.c.l.bf16 %v439
  %v666 = vunpack.c.l.bf16 %v440
  %v667 = vunpack.c.h.bf16 %v440
  %v668 = vunpack.c.l.bf16 %v441
  %v669 = vunpack.c.l.bf16 %v442
  %v670 = vunpack.c.h.bf16 %v442
  %v671 = vunpack.c.l.bf16 %v443
  %v672 = vunpack.c.l.bf16 %v444
  %v673 = vunpack.c.h.bf16 %v444
  %v674 = vunpack.c.l.bf16 %v445
  %v675 = vunpack.c.l.bf16 %v446
  %v676 = vunpack.c.h.bf16 %v446
  %v677 = vunpack.c.l.bf16 %v447
  %v678 = vunpack.c.l.bf16 %v448
  %v679 = vunpack.c.h.bf16 %v448
  %v680 = vunpack.c.l.bf16 %v449
  %v681 = vunpack.c.l.bf16 %v450
  %v682 = vunpack.c.h.bf16 %v450
  %v683 = vunpack.c.l.bf16 %v451
  %v684 = vunpack.c.l.bf16 %v452
  %v685 = vunpack.c.h.bf16 %v452
  %v686 = vunpack.c.l.bf16 %v453
  %v687 = vunpack.c.l.bf16 %v454
  %v688 = vunpack.c.h.bf16 %v454
  %v689 = vunpack.c.l.bf16 %v455
  %v690 = vunpack.c.l.bf16 %v456
  %v691 = vunpack.c.h.bf16 %v456
  %v692 = vunpack.c.l.bf16 %v457
  %v693 = vunpack.c.l.bf16 %v458
  %v694 = vunpack.c.h.bf16 %v458
  %v695 = vunpack.c.l.bf16 %v459
  %v696 = vunpack.c.l.bf16 %v460
  %v697 = vunpack.c.h.bf16 %v460
  %v698 = vunpack.c.l.bf16 %v461
  %v699 = vunpack.c.l.bf16 %v462
  %v700 = vunpack.c.h.bf16 %v462
  %v701 = vunpack.c.l.bf16 %v463
  %v702 = vunpack.c.l.bf16 %v464
  %v703 = vunpack.c.h.bf16 %v464
  %v704 = vunpack.c.l.bf16 %v465
  %v705 = vunpack.c.l.bf16 %v466
  %v706 = vunpack.c.h.bf16 %v466
  %v707 = vunpack.c.l.bf16 %v467
  %v708 = vunpack.c.l.bf16 %v468
  %v709 = vunpack.c.h.bf16 %v468
  %v710 = vunpack.c.l.bf16 %v469
  %v711 = vunpack.c.l.bf16 %v470
  %v712 = vunpack.c.h.bf16 %v470
  %v713 = vunpack.c.l.bf16 %v471
  %v714 = vunpack.c.l.bf16 %v472
  %v715 = vunpack.c.h.bf16 %v472
  %v716 = vunpack.c.l.bf16 %v473
  %v717 = vunpack.c.l.bf16 %v474
  %v718 = vunpack.c.h.bf16 %v474
  %v719 = vunpack.c.l.bf16 %v475
  %v720 = vunpack.c.l.bf16 %v476
  %v721 = vunpack.c.h.bf16 %v476
  %v722 = vunpack.c.l.bf16 %v477
  %v723 = vunpack.c.l.bf16 %v478
  %v724 = vunpack.c.h.bf16 %v478
  %v725 = vunpack.c.l.bf16 %v479
  %v726 = vunpack.c.l.bf16 %v480
  %v727 = vunpack.c.h.bf16 %v480
  %v728 = vunpack.c.l.bf16 %v481
  %v729 = vunpack.c.l.bf16 %v482
  %v730 = vunpack.c.h.bf16 %v482
  %v731 = vunpack.c.l.bf16 %v483
  %v732 = vunpack.c.l.bf16 %v484
  %v733 = vunpack.c.h.bf16 %v484
  %v734 = vunpack.c.l.bf16 %v485
  %v735 = vunpack.c.l.bf16 %v486
  %v736 = vunpack.c.h.bf16 %v486
  %v737 = vunpack.c.l.bf16 %v487
  %v738 = vunpack.c.l.bf16 %v488
  %v739 = vunpack.c.h.bf16 %v488
  %v740 = vunpack.c.l.bf16 %v489
  %v741 = vunpack.c.l.bf16 %v490
  %v742 = vunpack.c.h.bf16 %v490
  %v743 = vunpack.c.l.bf16 %v491
  %v744 = vunpack.c.l.bf16 %v492
  %v745 = vunpack.c.h.bf16 %v492
  %v746 = vunpack.c.l.bf16 %v493
  %v747 = vunpack.c.l.bf16 %v494
  %v748 = vunpack.c.h.bf16 %v494
  %v749 = vunpack.c.l.bf16 %v495
  %v750 = vunpack.c.l.bf16 %v496
  %v751 = vunpack.c.h.bf16 %v496
  %v752 = vunpack.c.l.bf16 %v497
  %v753 = vunpack.c.l.bf16 %v498
  %v754 = vunpack.c.h.bf16 %v498
  %v755 = vunpack.c.l.bf16 %v499
  %v756 = vunpack.c.l.bf16 %v500
  %v757 = vunpack.c.h.bf16 %v500
  %v758 = vunpack.c.l.bf16 %v501
  %v759 = vunpack.c.l.bf16 %v502
  %v760 = vunpack.c.h.bf16 %v502
  %v761 = vunpack.c.l.bf16 %v503
  %v762 = vunpack.c.l.bf16 %v504
  %v763 = vunpack.c.h.bf16 %v504
  %v764 = vunpack.c.l.bf16 %v505
  %v765 = vunpack.c.l.bf16 %v506
  %v766 = vunpack.c.h.bf16 %v506
  %v767 = vunpack.c.l.bf16 %v507
  %v768 = vunpack.c.l.bf16 %v508
  %v769 = vunpack.c.h.bf16 %v508
  %v770 = vunpack.c.l.bf16 %v509
  %v771 = vunpack.c.l.bf16 %v510
  %v772 = vunpack.c.h.bf16 %v510
  %v773 = vunpack.c.l.bf16 %v511
  %v774 = vunpack.c.l.bf16 %v512
  %v775 = vunpack.c.h.bf16 %v512
  %v776 = vunpack.c.l.bf16 %v513
  %v777 = vunpack.c.l.bf16 %v514
  %v778 = vunpack.c.h.bf16 %v514
  %v779 = vunpack.c.l.bf16 %v515
  %v780 = vunpack.c.l.bf16 %v516
  %v781 = vunpack.c.h.bf16 %v516
  %v782 = vunpack.c.l.bf16 %v517
  %v783 = vunpack.c.l.bf16 %v518
  %v784 = vunpack.c.h.bf16 %v518
  %v785 = vunpack.c.l.bf16 %v519
  %v786 = vunpack.c.l.bf16 %v520
  %v787 = vunpack.c.h.bf16 %v520
  %v788 = vunpack.c.l.bf16 %v521
  %v789 = vunpack.c.l.bf16 %v522
  %v790 = vunpack.c.h.bf16 %v522
  %v791 = vunpack.c.l.bf16 %v523
  %v792 = vunpack.c.l.bf16 %v524
  %v793 = vunpack.c.h.bf16 %v524
  %v794 = vunpack.c.l.bf16 %v525
  %v795 = vunpack.c.l.bf16 %v526
  %v796 = vunpack.c.h.bf16 %v526
  %v797 = vunpack.c.l.bf16 %v527
  %v798 = vunpack.c.l.bf16 %v528
  %v799 = vunpack.c.h.bf16 %v528
  %v800 = vunpack.c.l.bf16 %v529
  %v801 = vunpack.c.l.bf16 %v530
  %v802 = vunpack.c.h.bf16 %v530
  %v803 = vunpack.c.l.bf16 %v531
  %v804 = vunpack.c.l.bf16 %v532
  %v805 = vunpack.c.h.bf16 %v532
  %v806 = vunpack.c.l.bf16 %v533
  %v807 = vunpack.c.l.bf16 %v534
  %v808 = vunpack.c.h.bf16 %v534
  %v809 = vunpack.c.l.bf16 %v535
  %v810 = vunpack.c.l.bf16 %v536
  %v811 = vunpack.c.h.bf16 %v536
  %v812 = vunpack.c.l.bf16 %v537
  %v813 = vunpack.c.l.bf16 %v538
  %v814 = vunpack.c.h.bf16 %v538
  %v815 = vunpack.c.l.bf16 %v539
  %v816 = vunpack.c.l.bf16 %v540
  %v817 = vunpack.c.h.bf16 %v540
  %v818 = vunpack.c.l.bf16 %v541
  %v819 = vunpack.c.l.bf16 %v542
  %v820 = vunpack.c.h.bf16 %v542
  %v821 = vunpack.c.l.bf16 %v543
  %v822 = vunpack.c.l.bf16 %v544
  %v823 = vunpack.c.h.bf16 %v544
  %v824 = vunpack.c.l.bf16 %v545
  %v825 = vunpack.c.l.bf16 %v546
  %v826 = vunpack.c.h.bf16 %v546
  %v827 = vunpack.c.l.bf16 %v547
  %v828 = vunpack.c.l.bf16 %v548
  %v829 = vunpack.c.h.bf16 %v548
  %v830 = vunpack.c.l.bf16 %v549
  %v831 = vunpack.c.l.bf16 %v550
  %v832 = vunpack.c.h.bf16 %v550
  %v833 = vunpack.c.l.bf16 %v551
  %v834 = vunpack.c.l.bf16 %v552
  %v835 = vunpack.c.h.bf16 %v552
  %v836 = vunpack.c.l.bf16 %v553
  %v837 = vunpack.c.l.bf16 %v554
  %v838 = vunpack.c.h.bf16 %v554
  %v839 = vunpack.c.l.bf16 %v555
  %v840 = vunpack.c.l.bf16 %v556
  %v841 = vunpack.c.h.bf16 %v556
  %v842 = vunpack.c.l.bf16 %v557
  %v843 = vunpack.c.l.bf16 %v558
  %v844 = vunpack.c.h.bf16 %v558
  %v845 = vunpack.c.l.bf16 %v559
  %v846 = vunpack.c.l.bf16 %v560
  %v847 = vunpack.c.h.bf16 %v560
  %v848 = vunpack.c.l.bf16 %v561
  %v849 = vunpack.c.l.bf16 %v562
  %v850 = vunpack.c.h.bf16 %v562
  %v851 = vunpack.c.l.bf16 %v563
  %v852 = vunpack.c.l.bf16 %v564
  %v853 = vunpack.c.h.bf16 %v564
  %v854 = vunpack.c.l.bf16 %v565
  %v855 = vunpack.c.l.bf16 %v566
  %v856 = vunpack.c.h.bf16 %v566
  %v857 = vunpack.c.l.bf16 %v567
  %v858 = vunpack.c.l.bf16 %v568
  %v859 = vunpack.c.h.bf16 %v568
  %v860 = vunpack.c.l.bf16 %v569
  %v861 = vunpack.c.l.bf16 %v570
  %v862 = vunpack.c.h.bf16 %v570
  %v863 = vunpack.c.l.bf16 %v571
  %v864 = vunpack.c.l.bf16 %v572
  %v865 = vunpack.c.h.bf16 %v572
  %v866 = vunpack.c.l.bf16 %v573
  %v867 = vunpack.c.l.bf16 %v574
  %v868 = vunpack.c.h.bf16 %v574
  %v869 = vunpack.c.l.bf16 %v575
  %v870 = vunpack.c.l.bf16 %v576
  %v871 = vunpack.c.h.bf16 %v576
  %v872 = vunpack.c.l.bf16 %v577
  %v873 = vunpack.c.l.bf16 %v578
  %v874 = vunpack.c.h.bf16 %v578
  %v875 = vunpack.c.l.bf16 %v579
  %v876 = vunpack.c.l.bf16 %v580
  %v877 = vunpack.c.h.bf16 %v580
  %v878 = vunpack.c.l.bf16 %v581
  %v879 = vunpack.c.l.bf16 %v582
  %v880 = vunpack.c.h.bf16 %v582
  %v881 = vunpack.c.l.bf16 %v583
  %v882 = vunpack.c.l.bf16 %v584
  %v883 = vunpack.c.h.bf16 %v584
  %v884 = vunpack.c.l.bf16 %v585
  %v885 = vunpack.c.l.bf16 %v586
  %v886 = vunpack.c.h.bf16 %v586
  %v887 = vunpack.c.l.bf16 %v587
  %v888 = vunpack.c.l.bf16 %v588
  %v889 = vunpack.c.h.bf16 %v588
  %v890 = vunpack.c.l.bf16 %v589
  %v891 = vunpack.c.l.bf16 %v590
  %v892 = vunpack.c.h.bf16 %v590
  %v893 = vunpack.c.l.bf16 %v591
  %v894 = vunpack.c.l.bf16 %v592
  %v895 = vunpack.c.h.bf16 %v592
  %v896 = vunpack.c.l.bf16 %v593
  %v897 = vunpack.c.l.bf16 %v594
  %v898 = vunpack.c.h.bf16 %v594
  %v899 = vunpack.c.l.bf16 %v595
  %v900 = vunpack.c.l.bf16 %v596
  %v901 = vunpack.c.h.bf16 %v596
  %v902 = vunpack.c.l.bf16 %v597
  %v903 = vunpack.c.l.bf16 %v598
  %v904 = vunpack.c.h.bf16 %v598
  %v905 = vunpack.c.l.bf16 %v599
  %v906 = vunpack.c.l.bf16 %v600
  %v907 = vunpack.c.h.bf16 %v600
  %v908 = vunpack.c.l.bf16 %v601
  %v909 = vunpack.c.l.bf16 %v602
  %v910 = vunpack.c.h.bf16 %v602
  %v911 = vunpack.c.l.bf16 %v603
  %v912 = vunpack.c.l.bf16 %v604
  %v913 = vunpack.c.h.bf16 %v604
  %v914 = vunpack.c.l.bf16 %v605
  %v915 = vunpack.c.l.bf16 %v606
  %v916 = vunpack.c.h.bf16 %v606
  %v917 = vunpack.c.l.bf16 %v607
  %v918 = vunpack.c.l.bf16 %v608
  %v919 = vunpack.c.h.bf16 %v608
  %v920 = vunpack.c.l.bf16 %v609
  %v921 = vunpack.c.l.bf16 %v610
  %v922 = vunpack.c.h.bf16 %v610
  %v923 = vunpack.c.l.bf16 %v611
  %v924 = vunpack.c.l.bf16 %v612
  %v925 = vunpack.c.h.bf16 %v612
  %v926 = vunpack.c.l.bf16 %v613
  %v927 = vunpack.c.l.bf16 %v614
  %v928 = vunpack.c.h.bf16 %v614
  %v929 = vunpack.c.l.bf16 %v615
  %v930 = vunpack.c.l.bf16 %v616
  %v931 = vunpack.c.h.bf16 %v616
  %v932 = vunpack.c.l.bf16 %v617
  %v933 = vunpack.c.l.bf16 %v618
  %v934 = vunpack.c.h.bf16 %v618
  %v935 = vunpack.c.l.bf16 %v619
  %v936 = vunpack.c.l.bf16 %v620
  %v937 = vunpack.c.h.bf16 %v620
  %v938 = vunpack.c.l.bf16 %v621
  %v939 = vunpack.c.l.bf16 %v622
  %v940 = vunpack.c.h.bf16 %v622
  %v941 = vunpack.c.l.bf16 %v623
  %v942 = vunpack.c.l.bf16 %v624
  %v943 = vunpack.c.h.bf16 %v624
  %v944 = vunpack.c.l.bf16 %v625
  %v945 = vunpack.c.l.bf16 %v626
  %v946 = vunpack.c.h.bf16 %v626
  %v947 = vunpack.c.l.bf16 %v627
  %v948 = vunpack.c.l.bf16 %v628
  %v949 = vunpack.c.h.bf16 %v628
  %v950 = vunpack.c.l.bf16 %v629
  %v951 = vunpack.c.l.bf16 %v630
  %v952 = vunpack.c.h.bf16 %v630
  %v953 = vunpack.c.l.bf16 %v631
  %v954 = vunpack.c.l.bf16 %v632
  %v955 = vunpack.c.h.bf16 %v632
  %v956 = vunpack.c.l.bf16 %v633
  %v957 = vunpack.c.l.bf16 %v634
  %v958 = vunpack.c.h.bf16 %v634
  %v959 = vunpack.c.l.bf16 %v635
  %v960 = vunpack.c.l.bf16 %v636
  %v961 = vunpack.c.h.bf16 %v636
  %v962 = vunpack.c.l.bf16 %v637
  %v963 = vunpack.c.l.bf16 %v638
  %v964 = vunpack.c.h.bf16 %v638
  %v965 = vunpack.c.l.bf16 %v639
  %v966 = vunpack.c.l.bf16 %v640
  %v967 = vunpack.c.h.bf16 %v640
  %v968 = vunpack.c.l.bf16 %v641
  %v969 = vunpack.c.l.bf16 %v642
  %v970 = vunpack.c.h.bf16 %v642
  %v971 = vunpack.c.l.bf16 %v643
  %v972 = vunpack.c.l.bf16 %v644
  %v973 = vunpack.c.h.bf16 %v644
  %v974 = vunpack.c.l.bf16 %v645
  %v975 = vunpack.c.l.bf16 %v646
  %v976 = vunpack.c.h.bf16 %v646
  %v977 = vunpack.c.l.bf16 %v647
  %v978 = vunpack.c.l.bf16 %v648
  %v979 = vunpack.c.h.bf16 %v648
  %v980 = vunpack.c.l.bf16 %v649
  %v981 = vunpack.c.l.bf16 %v650
  %v982 = vunpack.c.h.bf16 %v650
  %v983 = vunpack.c.l.bf16 %v651
  %v984 = vunpack.c.l.bf16 %v652
  %v985 = vunpack.c.h.bf16 %v652
  %v986 = vunpack.c.l.bf16 %v653
  %v987 = vunpack.c.l.bf16 %v654
  %v988 = vunpack.c.h.bf16 %v654
  %v989 = vunpack.c.l.bf16 %v655
  %v990 = vunpack.c.l.bf16 %v656
  %v991 = vunpack.c.h.bf16 %v656
  %v992 = vunpack.c.l.bf16 %v657
  %v993 = vunpack.c.l.bf16 %v658
  %v994 = vunpack.c.h.bf16 %v658
  %v995 = vunpack.c.l.bf16 %v659
  %vm996 = vcmask 261120
  %v998 = vsel %vm996, %v662, 0
  %v1001 = vsel %vm996, %v665, 0
  %v1004 = vsel %vm996, %v668, 0
  %v1007 = vsel %vm996, %v671, 0
  %v1010 = vsel %vm996, %v674, 0
  %v1013 = vsel %vm996, %v677, 0
  %v1016 = vsel %vm996, %v680, 0
  %v1019 = vsel %vm996, %v683, 0
  %v1022 = vsel %vm996, %v686, 0
  %v1025 = vsel %vm996, %v689, 0
  %v1028 = vsel %vm996, %v692, 0
  %v1031 = vsel %vm996, %v695, 0
  %v1034 = vsel %vm996, %v698, 0
  %v1037 = vsel %vm996, %v701, 0
  %v1040 = vsel %vm996, %v704, 0
  %v1043 = vsel %vm996, %v707, 0
  %v1046 = vsel %vm996, %v710, 0
  %v1049 = vsel %vm996, %v713, 0
  %v1052 = vsel %vm996, %v716, 0
  %v1055 = vsel %vm996, %v719, 0
  %v1058 = vsel %vm996, %v722, 0
  %v1061 = vsel %vm996, %v725, 0
  %v1064 = vsel %vm996, %v728, 0
  %v1067 = vsel %vm996, %v731, 0
  %v1070 = vsel %vm996, %v734, 0
  %v1073 = vsel %vm996, %v737, 0
  %v1076 = vsel %vm996, %v740, 0
  %v1079 = vsel %vm996, %v743, 0
  %v1082 = vsel %vm996, %v746, 0
  %v1085 = vsel %vm996, %v749, 0
  %v1088 = vsel %vm996, %v752, 0
  %v1091 = vsel %vm996, %v755, 0
  %v1094 = vsel %vm996, %v758, 0
  %v1097 = vsel %vm996, %v761, 0
  %v1100 = vsel %vm996, %v764, 0
  %v1103 = vsel %vm996, %v767, 0
  %v1106 = vsel %vm996, %v770, 0
  %v1109 = vsel %vm996, %v773, 0
  %v1112 = vsel %vm996, %v776, 0
  %v1115 = vsel %vm996, %v779, 0
  %v1118 = vsel %vm996, %v782, 0
  %v1121 = vsel %vm996, %v785, 0
  %v1124 = vsel %vm996, %v788, 0
  %v1127 = vsel %vm996, %v791, 0
  %v1130 = vsel %vm996, %v794, 0
  %v1133 = vsel %vm996, %v797, 0
  %v1136 = vsel %vm996, %v800, 0
  %v1139 = vsel %vm996, %v803, 0
  %v1142 = vsel %vm996, %v806, 0
  %v1145 = vsel %vm996, %v809, 0
  %v1148 = vsel %vm996, %v812, 0
  %v1151 = vsel %vm996, %v815, 0
  %v1154 = vsel %vm996, %v818, 0
  %v1157 = vsel %vm996, %v821, 0
  %v1160 = vsel %vm996, %v824, 0
  %v1163 = vsel %vm996, %v827, 0
  %v1166 = vsel %vm996, %v830, 0
  %v1169 = vsel %vm996, %v833, 0
  %v1172 = vsel %vm996, %v836, 0
  %v1175 = vsel %vm996, %v839, 0
  %v1178 = vsel %vm996, %v842, 0
  %v1181 = vsel %vm996, %v845, 0
  %v1184 = vsel %vm996, %v848, 0
  %v1187 = vsel %vm996, %v851, 0
  %v1190 = vsel %vm996, %v854, 0
  %v1193 = vsel %vm996, %v857, 0
  %v1196 = vsel %vm996, %v860, 0
  %v1199 = vsel %vm996, %v863, 0
  %v1202 = vsel %vm996, %v866, 0
  %v1205 = vsel %vm996, %v869, 0
  %v1208 = vsel %vm996, %v872, 0
  %v1211 = vsel %vm996, %v875, 0
  %v1214 = vsel %vm996, %v878, 0
  %v1217 = vsel %vm996, %v881, 0
  %v1220 = vsel %vm996, %v884, 0
  %v1223 = vsel %vm996, %v887, 0
  %v1226 = vsel %vm996, %v890, 0
  %v1229 = vsel %vm996, %v893, 0
  %v1232 = vsel %vm996, %v896, 0
  %v1235 = vsel %vm996, %v899, 0
  %v1238 = vsel %vm996, %v902, 0
  %v1241 = vsel %vm996, %v905, 0
  %v1244 = vsel %vm996, %v908, 0
  %v1247 = vsel %vm996, %v911, 0
  %v1250 = vsel %vm996, %v914, 0
  %v1253 = vsel %vm996, %v917, 0
  %v1256 = vsel %vm996, %v920, 0
  %v1259 = vsel %vm996, %v923, 0
  %v1262 = vsel %vm996, %v926, 0
  %v1265 = vsel %vm996, %v929, 0
  %v1268 = vsel %vm996, %v932, 0
  %v1271 = vsel %vm996, %v935, 0
  %v1274 = vsel %vm996, %v938, 0
  %v1277 = vsel %vm996, %v941, 0
  %v1280 = vsel %vm996, %v944, 0
  %v1283 = vsel %vm996, %v947, 0
  %v1286 = vsel %vm996, %v950, 0
  %v1289 = vsel %vm996, %v953, 0
  %v1292 = vsel %vm996, %v956, 0
  %v1295 = vsel %vm996, %v959, 0
  %v1298 = vsel %vm996, %v962, 0
  %v1301 = vsel %vm996, %v965, 0
  %v1304 = vsel %vm996, %v968, 0
  %v1307 = vsel %vm996, %v971, 0
  %v1310 = vsel %vm996, %v974, 0
  %v1313 = vsel %vm996, %v977, 0
  %v1316 = vsel %vm996, %v980, 0
  %v1319 = vsel %vm996, %v983, 0
  %v1322 = vsel %vm996, %v986, 0
  %v1325 = vsel %vm996, %v989, 0
  %v1328 = vsel %vm996, %v992, 0
  %v1331 = vsel %vm996, %v995, 0
  %1333 = vmatprep.subr.mxu0 0.0
  %1334 = vmatpush1.msra.mxu0 %v400
  %1335 = vmatprep.subr.mxu0 0.0
  %1336 = vmatpush1.msra.mxu0 %v401
  %1337 = vmatprep.subr.mxu0 0.0
  %1338 = vmatpush1.msra.mxu0 %v402
  %1339 = vmatprep.subr.mxu0 0.0
  %1340 = vmatpush1.msra.mxu0 %v403
  %1341 = vmatprep.subr.mxu0 0.0
  %1342 = vmatpush1.msra.mxu0 %v404
  %1343 = vmatprep.subr.mxu0 0.0
  %1344 = vmatpush1.msra.mxu0 %v405
  %1345 = vmatprep.subr.mxu0 0.0
  %1346 = vmatpush1.msra.mxu0 %v406
  %1347 = vmatprep.subr.mxu0 0.0
  %1348 = vmatpush1.msra.mxu0 %v407
  %1349 = vmatprep.subr.mxu0 0.0
  %1350 = vmatpush1.msra.mxu0 %v408
  %1351 = vmatprep.subr.mxu0 0.0
  %1352 = vmatpush1.msra.mxu0 %v409
  %1353 = vmatprep.subr.mxu0 0.0
  %1354 = vmatpush1.msra.mxu0 %v410
  %1355 = vmatprep.subr.mxu0 0.0
  %1356 = vmatpush1.msra.mxu0 %v411
  %1357 = vmatprep.subr.mxu0 0.0
  %1358 = vmatpush1.msra.mxu0 %v412
  %1359 = vmatprep.subr.mxu0 0.0
  %1360 = vmatpush1.msra.mxu0 %v413
  %1361 = vmatprep.subr.mxu0 0.0
  %1362 = vmatpush1.msra.mxu0 %v414
  %1363 = vmatprep.subr.mxu0 0.0
  %1364 = vmatpush1.msra.mxu0 %v415
  %1365 = vmatprep.subr.mxu0 0.0
  %1366 = vmatpush1.msra.mxu0 %v416
  %1367 = vmatprep.subr.mxu0 0.0
  %1368 = vmatpush1.msra.mxu0 %v417
  %1369 = vmatprep.subr.mxu0 0.0
  %1370 = vmatpush1.msra.mxu0 %v418
  %1371 = vmatprep.subr.mxu0 0.0
  %1372 = vmatpush1.msra.mxu0 %v419
  %1373 = vmatprep.subr.mxu0 0.0
  %1374 = vmatpush1.msra.mxu0 %v420
  %1375 = vmatprep.subr.mxu0 0.0
  %1376 = vmatpush1.msra.mxu0 %v421
  %1377 = vmatprep.subr.mxu0 0.0
  %1378 = vmatpush1.msra.mxu0 %v422
  %1379 = vmatprep.subr.mxu0 0.0
  %1380 = vmatpush1.msra.mxu0 %v423
  %1381 = vmatprep.subr.mxu0 0.0
  %1382 = vmatpush1.msra.mxu0 %v424
  %1383 = vmatprep.subr.mxu0 0.0
  %1384 = vmatpush1.msra.mxu0 %v425
  %1385 = vmatprep.subr.mxu0 0.0
  %1386 = vmatpush1.msra.mxu0 %v426
  %1387 = vmatprep.subr.mxu0 0.0
  %1388 = vmatpush1.msra.mxu0 %v427
  %1389 = vmatprep.subr.mxu0 0.0
  %1390 = vmatpush1.msra.mxu0 %v428
  %1391 = vmatprep.subr.mxu0 0.0
  %1392 = vmatpush1.msra.mxu0 %v429
  %1393 = vmatprep.subr.mxu0 0.0
  %1394 = vmatpush1.msra.mxu0 %v430
  %1395 = vmatprep.subr.mxu0 0.0
  %1396 = vmatpush1.msra.mxu0 %v431
  %1397 = vmatprep.mubr.f32.mxu0 %v661
  %1398 = vmatmul.mubr.f32.gmra.mrb[0].mxu0 %v660
  %v1399 = vpop.f32.mrb[0].mxu0
  %v1400 = vadd.f32 0.0, %v1399
  %v1401 = vpop.f32.mrb[0].mxu0
  %1402 = vmatprep.mubr.f32.mxu0 %v664
  %1403 = vmatmul.mubr.f32.gmra.mrb[0].mxu0 %v663
  %v1404 = vpop.f32.mrb[0].mxu0
  %v1405 = vadd.f32 0.0, %v1404
  %v1406 = vpop.f32.mrb[0].mxu0
  %1407 = vmatprep.mubr.f32.mxu0 %v667
  %1408 = vmatmul.mubr.f32.gmra.mrb[0].mxu0 %v666
  %v1409 = vpop.f32.mrb[0].mxu0
  %v1410 = vadd.f32 0.0, %v1409
  %v1411 = vpop.f32.mrb[0].mxu0
  %1412 = vmatprep.mubr.f32.mxu0 %v670
  %1413 = vmatmul.mubr.f32.gmra.mrb[0].mxu0 %v669
  %v1414 = vpop.f32.mrb[0].mxu0
  %v1415 = vadd.f32 0.0, %v1414
  %v1416 = vpop.f32.mrb[0].mxu0
  %1417 = vmatprep.mubr.f32.mxu0 %v673
  %1418 = vmatmul.mubr.f32.gmra.mrb[0].mxu0 %v672
  %v1419 = vpop.f32.mrb[0].mxu0
  %v1420 = vadd.f32 0.0, %v1419
  %v1421 = vpop.f32.mrb[0].mxu0
  %1422 = vmatprep.mubr.f32.mxu0 %v676
  %1423 = vmatmul.mubr.f32.gmra.mrb[0].mxu0 %v675
  %v1424 = vpop.f32.mrb[0].mxu0
  %v1425 = vadd.f32 0.0, %v1424
  %v1426 = vpop.f32.mrb[0].mxu0
  %1427 = vmatprep.mubr.f32.mxu0 %v679
  %1428 = vmatmul.mubr.f32.gmra.mrb[0].mxu0 %v678
  %v1429 = vpop.f32.mrb[0].mxu0
  %v1430 = vadd.f32 0.0, %v1429
  %v1431 = vpop.f32.mrb[0].mxu0
  %1432 = vmatprep.mubr.f32.mxu0 %v682
  %1433 = vmatmul.mubr.f32.gmra.mrb[0].mxu0 %v681
  %v1434 = vpop.f32.mrb[0].mxu0
  %v1435 = vadd.f32 0.0, %v1434
  %v1436 = vpop.f32.mrb[0].mxu0
  %1437 = vmatprep.mubr.f32.mxu0 %v685
  %1438 = vmatmul.mubr.f32.gmra.mrb[0].mxu0 %v684
  %v1439 = vpop.f32.mrb[0].mxu0
  %v1440 = vadd.f32 0.0, %v1439
  %v1441 = vpop.f32.mrb[0].mxu0
  %1442 = vmatprep.mubr.f32.mxu0 %v688
  %1443 = vmatmul.mubr.f32.gmra.mrb[0].mxu0 %v687
  %v1444 = vpop.f32.mrb[0].mxu0
  %v1445 = vadd.f32 0.0, %v1444
  %v1446 = vpop.f32.mrb[0].mxu0
  %1447 = vmatprep.mubr.f32.mxu0 %v691
  %1448 = vmatmul.mubr.f32.gmra.mrb[0].mxu0 %v690
  %v1449 = vpop.f32.mrb[0].mxu0
  %v1450 = vadd.f32 0.0, %v1449
  %v1451 = vpop.f32.mrb[0].mxu0
  %1452 = vmatprep.mubr.f32.mxu0 %v694
  %1453 = vmatmul.mubr.f32.gmra.mrb[0].mxu0 %v693
  %v1454 = vpop.f32.mrb[0].mxu0
  %v1455 = vadd.f32 0.0, %v1454
  %v1456 = vpop.f32.mrb[0].mxu0
  %1457 = vmatprep.mubr.f32.mxu0 %v697
  %1458 = vmatmul.mubr.f32.gmra.mrb[0].mxu0 %v696
  %v1459 = vpop.f32.mrb[0].mxu0
  %v1460 = vadd.f32 0.0, %v1459
  %v1461 = vpop.f32.mrb[0].mxu0
  %1462 = vmatprep.mubr.f32.mxu0 %v700
  %1463 = vmatmul.mubr.f32.gmra.mrb[0].mxu0 %v699
  %v1464 = vpop.f32.mrb[0].mxu0
  %v1465 = vadd.f32 0.0, %v1464
  %v1466 = vpop.f32.mrb[0].mxu0
  %1467 = vmatprep.mubr.f32.mxu0 %v703
  %1468 = vmatmul.mubr.f32.gmra.mrb[0].mxu0 %v702
  %v1469 = vpop.f32.mrb[0].mxu0
  %v1470 = vadd.f32 0.0, %v1469
  %v1471 = vpop.f32.mrb[0].mxu0
  %1472 = vmatprep.mubr.f32.mxu0 %v706
  %1473 = vmatmul.mubr.f32.gmra.mrb[0].mxu0 %v705
  %v1474 = vpop.f32.mrb[0].mxu0
  %v1475 = vadd.f32 0.0, %v1474
  %v1476 = vpop.f32.mrb[0].mxu0
  %1477 = vmatprep.mubr.f32.mxu0 %v709
  %1478 = vmatmul.mubr.f32.gmra.mrb[0].mxu0 %v708
  %v1479 = vpop.f32.mrb[0].mxu0
  %v1480 = vadd.f32 0.0, %v1479
  %v1481 = vpop.f32.mrb[0].mxu0
  %1482 = vmatprep.mubr.f32.mxu0 %v712
  %1483 = vmatmul.mubr.f32.gmra.mrb[0].mxu0 %v711
  %v1484 = vpop.f32.mrb[0].mxu0
  %v1485 = vadd.f32 0.0, %v1484
  %v1486 = vpop.f32.mrb[0].mxu0
  %1487 = vmatprep.mubr.f32.mxu0 %v715
  %1488 = vmatmul.mubr.f32.gmra.mrb[0].mxu0 %v714
  %v1489 = vpop.f32.mrb[0].mxu0
  %v1490 = vadd.f32 0.0, %v1489
  %v1491 = vpop.f32.mrb[0].mxu0
  %1492 = vmatprep.mubr.f32.mxu0 %v718
  %1493 = vmatmul.mubr.f32.gmra.mrb[0].mxu0 %v717
  %v1494 = vpop.f32.mrb[0].mxu0
  %v1495 = vadd.f32 0.0, %v1494
  %v1496 = vpop.f32.mrb[0].mxu0
  %1497 = vmatprep.mubr.f32.mxu0 %v721
  %1498 = vmatmul.mubr.f32.gmra.mrb[0].mxu0 %v720
  %v1499 = vpop.f32.mrb[0].mxu0
  %v1500 = vadd.f32 0.0, %v1499
  %v1501 = vpop.f32.mrb[0].mxu0
  %1502 = vmatprep.mubr.f32.mxu0 %v724
  %1503 = vmatmul.mubr.f32.gmra.mrb[0].mxu0 %v723
  %v1504 = vpop.f32.mrb[0].mxu0
  %v1505 = vadd.f32 0.0, %v1504
  %v1506 = vpop.f32.mrb[0].mxu0
  %1507 = vmatprep.mubr.f32.mxu0 %v727
  %1508 = vmatmul.mubr.f32.gmra.mrb[0].mxu0 %v726
  %v1509 = vpop.f32.mrb[0].mxu0
  %v1510 = vadd.f32 0.0, %v1509
  %v1511 = vpop.f32.mrb[0].mxu0
  %1512 = vmatprep.mubr.f32.mxu0 %v730
  %1513 = vmatmul.mubr.f32.gmra.mrb[0].mxu0 %v729
  %v1514 = vpop.f32.mrb[0].mxu0
  %v1515 = vadd.f32 0.0, %v1514
  %v1516 = vpop.f32.mrb[0].mxu0
  %1517 = vmatprep.mubr.f32.mxu0 %v733
  %1518 = vmatmul.mubr.f32.gmra.mrb[0].mxu0 %v732
  %v1519 = vpop.f32.mrb[0].mxu0
  %v1520 = vadd.f32 0.0, %v1519
  %v1521 = vpop.f32.mrb[0].mxu0
  %1522 = vmatprep.mubr.f32.mxu0 %v736
  %1523 = vmatmul.mubr.f32.gmra.mrb[0].mxu0 %v735
  %v1524 = vpop.f32.mrb[0].mxu0
  %v1525 = vadd.f32 0.0, %v1524
  %v1526 = vpop.f32.mrb[0].mxu0
  %1527 = vmatprep.mubr.f32.mxu0 %v739
  %1528 = vmatmul.mubr.f32.gmra.mrb[0].mxu0 %v738
  %v1529 = vpop.f32.mrb[0].mxu0
  %v1530 = vadd.f32 0.0, %v1529
  %v1531 = vpop.f32.mrb[0].mxu0
  %1532 = vmatprep.mubr.f32.mxu0 %v742
  %1533 = vmatmul.mubr.f32.gmra.mrb[0].mxu0 %v741
  %v1534 = vpop.f32.mrb[0].mxu0
  %v1535 = vadd.f32 0.0, %v1534
  %v1536 = vpop.f32.mrb[0].mxu0
  %1537 = vmatprep.mubr.f32.mxu0 %v745
  %1538 = vmatmul.mubr.f32.gmra.mrb[0].mxu0 %v744
  %v1539 = vpop.f32.mrb[0].mxu0
  %v1540 = vadd.f32 0.0, %v1539
  %v1541 = vpop.f32.mrb[0].mxu0
  %1542 = vmatprep.mubr.f32.mxu0 %v748
  %1543 = vmatmul.mubr.f32.gmra.mrb[0].mxu0 %v747
  %v1544 = vpop.f32.mrb[0].mxu0
  %v1545 = vadd.f32 0.0, %v1544
  %v1546 = vpop.f32.mrb[0].mxu0
  %1547 = vmatprep.mubr.f32.mxu0 %v751
  %1548 = vmatmul.mubr.f32.gmra.mrb[0].mxu0 %v750
  %v1549 = vpop.f32.mrb[0].mxu0
  %v1550 = vadd.f32 0.0, %v1549
  %v1551 = vpop.f32.mrb[0].mxu0
  %1552 = vmatprep.mubr.f32.mxu0 %v754
  %1553 = vmatmul.mubr.f32.gmra.mrb[0].mxu0 %v753
  %v1554 = vpop.f32.mrb[0].mxu0
  %v1555 = vadd.f32 0.0, %v1554
  %v1556 = vpop.f32.mrb[0].mxu0
  %1557 = vmatprep.mubr.f32.mxu0 %v757
  %1558 = vmatmul.mubr.f32.gmra.mrb[0].mxu0 %v756
  %v1559 = vpop.f32.mrb[0].mxu0
  %v1560 = vadd.f32 0.0, %v1559
  %v1561 = vpop.f32.mrb[0].mxu0
  %1562 = vmatprep.mubr.f32.mxu0 %v760
  %1563 = vmatmul.mubr.f32.gmra.mrb[0].mxu0 %v759
  %v1564 = vpop.f32.mrb[0].mxu0
  %v1565 = vadd.f32 0.0, %v1564
  %v1566 = vpop.f32.mrb[0].mxu0
  %1567 = vmatprep.mubr.f32.mxu0 %v763
  %1568 = vmatmul.mubr.f32.gmra.mrb[0].mxu0 %v762
  %v1569 = vpop.f32.mrb[0].mxu0
  %v1570 = vadd.f32 0.0, %v1569
  %v1571 = vpop.f32.mrb[0].mxu0
  %1572 = vmatprep.mubr.f32.mxu0 %v766
  %1573 = vmatmul.mubr.f32.gmra.mrb[0].mxu0 %v765
  %v1574 = vpop.f32.mrb[0].mxu0
  %v1575 = vadd.f32 0.0, %v1574
  %v1576 = vpop.f32.mrb[0].mxu0
  %1577 = vmatprep.mubr.f32.mxu0 %v769
  %1578 = vmatmul.mubr.f32.gmra.mrb[0].mxu0 %v768
  %v1579 = vpop.f32.mrb[0].mxu0
  %v1580 = vadd.f32 0.0, %v1579
  %v1581 = vpop.f32.mrb[0].mxu0
  %1582 = vmatprep.mubr.f32.mxu0 %v772
  %1583 = vmatmul.mubr.f32.gmra.mrb[0].mxu0 %v771
  %v1584 = vpop.f32.mrb[0].mxu0
  %v1585 = vadd.f32 0.0, %v1584
  %v1586 = vpop.f32.mrb[0].mxu0
  %1587 = vmatprep.mubr.f32.mxu0 %v775
  %1588 = vmatmul.mubr.f32.gmra.mrb[0].mxu0 %v774
  %v1589 = vpop.f32.mrb[0].mxu0
  %v1590 = vadd.f32 0.0, %v1589
  %v1591 = vpop.f32.mrb[0].mxu0
  %1592 = vmatprep.mubr.f32.mxu0 %v778
  %1593 = vmatmul.mubr.f32.gmra.mrb[0].mxu0 %v777
  %v1594 = vpop.f32.mrb[0].mxu0
  %v1595 = vadd.f32 0.0, %v1594
  %v1596 = vpop.f32.mrb[0].mxu0
  %1597 = vmatprep.mubr.f32.mxu0 %v781
  %1598 = vmatmul.mubr.f32.gmra.mrb[0].mxu0 %v780
  %v1599 = vpop.f32.mrb[0].mxu0
  %v1600 = vadd.f32 0.0, %v1599
  %v1601 = vpop.f32.mrb[0].mxu0
  %1602 = vmatprep.mubr.f32.mxu0 %v784
  %1603 = vmatmul.mubr.f32.gmra.mrb[0].mxu0 %v783
  %v1604 = vpop.f32.mrb[0].mxu0
  %v1605 = vadd.f32 0.0, %v1604
  %v1606 = vpop.f32.mrb[0].mxu0
  %1607 = vmatprep.mubr.f32.mxu0 %v787
  %1608 = vmatmul.mubr.f32.gmra.mrb[0].mxu0 %v786
  %v1609 = vpop.f32.mrb[0].mxu0
  %v1610 = vadd.f32 0.0, %v1609
  %v1611 = vpop.f32.mrb[0].mxu0
  %1612 = vmatprep.mubr.f32.mxu0 %v790
  %1613 = vmatmul.mubr.f32.gmra.mrb[0].mxu0 %v789
  %v1614 = vpop.f32.mrb[0].mxu0
  %v1615 = vadd.f32 0.0, %v1614
  %v1616 = vpop.f32.mrb[0].mxu0
  %1617 = vmatprep.mubr.f32.mxu0 %v793
  %1618 = vmatmul.mubr.f32.gmra.mrb[0].mxu0 %v792
  %v1619 = vpop.f32.mrb[0].mxu0
  %v1620 = vadd.f32 0.0, %v1619
  %v1621 = vpop.f32.mrb[0].mxu0
  %1622 = vmatprep.mubr.f32.mxu0 %v796
  %1623 = vmatmul.mubr.f32.gmra.mrb[0].mxu0 %v795
  %v1624 = vpop.f32.mrb[0].mxu0
  %v1625 = vadd.f32 0.0, %v1624
  %v1626 = vpop.f32.mrb[0].mxu0
  %1627 = vmatprep.mubr.f32.mxu0 %v799
  %1628 = vmatmul.mubr.f32.gmra.mrb[0].mxu0 %v798
  %v1629 = vpop.f32.mrb[0].mxu0
  %v1630 = vadd.f32 0.0, %v1629
  %v1631 = vpop.f32.mrb[0].mxu0
  %1632 = vmatprep.mubr.f32.mxu0 %v802
  %1633 = vmatmul.mubr.f32.gmra.mrb[0].mxu0 %v801
  %v1634 = vpop.f32.mrb[0].mxu0
  %v1635 = vadd.f32 0.0, %v1634
  %v1636 = vpop.f32.mrb[0].mxu0
  %1637 = vmatprep.mubr.f32.mxu0 %v805
  %1638 = vmatmul.mubr.f32.gmra.mrb[0].mxu0 %v804
  %v1639 = vpop.f32.mrb[0].mxu0
  %v1640 = vadd.f32 0.0, %v1639
  %v1641 = vpop.f32.mrb[0].mxu0
  %1642 = vmatprep.mubr.f32.mxu0 %v808
  %1643 = vmatmul.mubr.f32.gmra.mrb[0].mxu0 %v807
  %v1644 = vpop.f32.mrb[0].mxu0
  %v1645 = vadd.f32 0.0, %v1644
  %v1646 = vpop.f32.mrb[0].mxu0
  %1647 = vmatprep.mubr.f32.mxu0 %v811
  %1648 = vmatmul.mubr.f32.gmra.mrb[0].mxu0 %v810
  %v1649 = vpop.f32.mrb[0].mxu0
  %v1650 = vadd.f32 0.0, %v1649
  %v1651 = vpop.f32.mrb[0].mxu0
  %1652 = vmatprep.mubr.f32.mxu0 %v814
  %1653 = vmatmul.mubr.f32.gmra.mrb[0].mxu0 %v813
  %v1654 = vpop.f32.mrb[0].mxu0
  %v1655 = vadd.f32 0.0, %v1654
  %v1656 = vpop.f32.mrb[0].mxu0
  %1657 = vmatprep.mubr.f32.mxu0 %v817
  %1658 = vmatmul.mubr.f32.gmra.mrb[0].mxu0 %v816
  %v1659 = vpop.f32.mrb[0].mxu0
  %v1660 = vadd.f32 0.0, %v1659
  %v1661 = vpop.f32.mrb[0].mxu0
  %1662 = vmatprep.mubr.f32.mxu0 %v820
  %1663 = vmatmul.mubr.f32.gmra.mrb[0].mxu0 %v819
  %v1664 = vpop.f32.mrb[0].mxu0
  %v1665 = vadd.f32 0.0, %v1664
  %v1666 = vpop.f32.mrb[0].mxu0
  %1667 = vmatprep.mubr.f32.mxu0 %v823
  %1668 = vmatmul.mubr.f32.gmra.mrb[0].mxu0 %v822
  %v1669 = vpop.f32.mrb[0].mxu0
  %v1670 = vadd.f32 0.0, %v1669
  %v1671 = vpop.f32.mrb[0].mxu0
  %1672 = vmatprep.mubr.f32.mxu0 %v826
  %1673 = vmatmul.mubr.f32.gmra.mrb[0].mxu0 %v825
  %v1674 = vpop.f32.mrb[0].mxu0
  %v1675 = vadd.f32 0.0, %v1674
  %v1676 = vpop.f32.mrb[0].mxu0
  %1677 = vmatprep.mubr.f32.mxu0 %v829
  %1678 = vmatmul.mubr.f32.gmra.mrb[0].mxu0 %v828
  %v1679 = vpop.f32.mrb[0].mxu0
  %v1680 = vadd.f32 0.0, %v1679
  %v1681 = vpop.f32.mrb[0].mxu0
  %1682 = vmatprep.mubr.f32.mxu0 %v832
  %1683 = vmatmul.mubr.f32.gmra.mrb[0].mxu0 %v831
  %v1684 = vpop.f32.mrb[0].mxu0
  %v1685 = vadd.f32 0.0, %v1684
  %v1686 = vpop.f32.mrb[0].mxu0
  %1687 = vmatprep.mubr.f32.mxu0 %v835
  %1688 = vmatmul.mubr.f32.gmra.mrb[0].mxu0 %v834
  %v1689 = vpop.f32.mrb[0].mxu0
  %v1690 = vadd.f32 0.0, %v1689
  %v1691 = vpop.f32.mrb[0].mxu0
  %1692 = vmatprep.mubr.f32.mxu0 %v838
  %1693 = vmatmul.mubr.f32.gmra.mrb[0].mxu0 %v837
  %v1694 = vpop.f32.mrb[0].mxu0
  %v1695 = vadd.f32 0.0, %v1694
  %v1696 = vpop.f32.mrb[0].mxu0
  %1697 = vmatprep.mubr.f32.mxu0 %v841
  %1698 = vmatmul.mubr.f32.gmra.mrb[0].mxu0 %v840
  %v1699 = vpop.f32.mrb[0].mxu0
  %v1700 = vadd.f32 0.0, %v1699
  %v1701 = vpop.f32.mrb[0].mxu0
  %1702 = vmatprep.mubr.f32.mxu0 %v844
  %1703 = vmatmul.mubr.f32.gmra.mrb[0].mxu0 %v843
  %v1704 = vpop.f32.mrb[0].mxu0
  %v1705 = vadd.f32 0.0, %v1704
  %v1706 = vpop.f32.mrb[0].mxu0
  %1707 = vmatprep.mubr.f32.mxu0 %v847
  %1708 = vmatmul.mubr.f32.gmra.mrb[0].mxu0 %v846
  %v1709 = vpop.f32.mrb[0].mxu0
  %v1710 = vadd.f32 0.0, %v1709
  %v1711 = vpop.f32.mrb[0].mxu0
  %1712 = vmatprep.mubr.f32.mxu0 %v850
  %1713 = vmatmul.mubr.f32.gmra.mrb[0].mxu0 %v849
  %v1714 = vpop.f32.mrb[0].mxu0
  %v1715 = vadd.f32 0.0, %v1714
  %v1716 = vpop.f32.mrb[0].mxu0
  %1717 = vmatprep.mubr.f32.mxu0 %v853
  %1718 = vmatmul.mubr.f32.gmra.mrb[0].mxu0 %v852
  %v1719 = vpop.f32.mrb[0].mxu0
  %v1720 = vadd.f32 0.0, %v1719
  %v1721 = vpop.f32.mrb[0].mxu0
  %1722 = vmatprep.mubr.f32.mxu0 %v856
  %1723 = vmatmul.mubr.f32.gmra.mrb[0].mxu0 %v855
  %v1724 = vpop.f32.mrb[0].mxu0
  %v1725 = vadd.f32 0.0, %v1724
  %v1726 = vpop.f32.mrb[0].mxu0
  %1727 = vmatprep.mubr.f32.mxu0 %v859
  %1728 = vmatmul.mubr.f32.gmra.mrb[0].mxu0 %v858
  %v1729 = vpop.f32.mrb[0].mxu0
  %v1730 = vadd.f32 0.0, %v1729
  %v1731 = vpop.f32.mrb[0].mxu0
  %1732 = vmatprep.mubr.f32.mxu0 %v862
  %1733 = vmatmul.mubr.f32.gmra.mrb[0].mxu0 %v861
  %v1734 = vpop.f32.mrb[0].mxu0
  %v1735 = vadd.f32 0.0, %v1734
  %v1736 = vpop.f32.mrb[0].mxu0
  %1737 = vmatprep.mubr.f32.mxu0 %v865
  %1738 = vmatmul.mubr.f32.gmra.mrb[0].mxu0 %v864
  %v1739 = vpop.f32.mrb[0].mxu0
  %v1740 = vadd.f32 0.0, %v1739
  %v1741 = vpop.f32.mrb[0].mxu0
  %1742 = vmatprep.mubr.f32.mxu0 %v868
  %1743 = vmatmul.mubr.f32.gmra.mrb[0].mxu0 %v867
  %v1744 = vpop.f32.mrb[0].mxu0
  %v1745 = vadd.f32 0.0, %v1744
  %v1746 = vpop.f32.mrb[0].mxu0
  %1747 = vmatprep.mubr.f32.mxu0 %v871
  %1748 = vmatmul.mubr.f32.gmra.mrb[0].mxu0 %v870
  %v1749 = vpop.f32.mrb[0].mxu0
  %v1750 = vadd.f32 0.0, %v1749
  %v1751 = vpop.f32.mrb[0].mxu0
  %1752 = vmatprep.mubr.f32.mxu0 %v874
  %1753 = vmatmul.mubr.f32.gmra.mrb[0].mxu0 %v873
  %v1754 = vpop.f32.mrb[0].mxu0
  %v1755 = vadd.f32 0.0, %v1754
  %v1756 = vpop.f32.mrb[0].mxu0
  %1757 = vmatprep.mubr.f32.mxu0 %v877
  %1758 = vmatmul.mubr.f32.gmra.mrb[0].mxu0 %v876
  %v1759 = vpop.f32.mrb[0].mxu0
  %v1760 = vadd.f32 0.0, %v1759
  %v1761 = vpop.f32.mrb[0].mxu0
  %1762 = vmatprep.mubr.f32.mxu0 %v880
  %1763 = vmatmul.mubr.f32.gmra.mrb[0].mxu0 %v879
  %v1764 = vpop.f32.mrb[0].mxu0
  %v1765 = vadd.f32 0.0, %v1764
  %v1766 = vpop.f32.mrb[0].mxu0
  %1767 = vmatprep.mubr.f32.mxu0 %v883
  %1768 = vmatmul.mubr.f32.gmra.mrb[0].mxu0 %v882
  %v1769 = vpop.f32.mrb[0].mxu0
  %v1770 = vadd.f32 0.0, %v1769
  %v1771 = vpop.f32.mrb[0].mxu0
  %1772 = vmatprep.mubr.f32.mxu0 %v886
  %1773 = vmatmul.mubr.f32.gmra.mrb[0].mxu0 %v885
  %v1774 = vpop.f32.mrb[0].mxu0
  %v1775 = vadd.f32 0.0, %v1774
  %v1776 = vpop.f32.mrb[0].mxu0
  %1777 = vmatprep.mubr.f32.mxu0 %v889
  %1778 = vmatmul.mubr.f32.gmra.mrb[0].mxu0 %v888
  %v1779 = vpop.f32.mrb[0].mxu0
  %v1780 = vadd.f32 0.0, %v1779
  %v1781 = vpop.f32.mrb[0].mxu0
  %1782 = vmatprep.mubr.f32.mxu0 %v892
  %1783 = vmatmul.mubr.f32.gmra.mrb[0].mxu0 %v891
  %v1784 = vpop.f32.mrb[0].mxu0
  %v1785 = vadd.f32 0.0, %v1784
  %v1786 = vpop.f32.mrb[0].mxu0
  %1787 = vmatprep.mubr.f32.mxu0 %v895
  %1788 = vmatmul.mubr.f32.gmra.mrb[0].mxu0 %v894
  %v1789 = vpop.f32.mrb[0].mxu0
  %v1790 = vadd.f32 0.0, %v1789
  %v1791 = vpop.f32.mrb[0].mxu0
  %1792 = vmatprep.mubr.f32.mxu0 %v898
  %1793 = vmatmul.mubr.f32.gmra.mrb[0].mxu0 %v897
  %v1794 = vpop.f32.mrb[0].mxu0
  %v1795 = vadd.f32 0.0, %v1794
  %v1796 = vpop.f32.mrb[0].mxu0
  %1797 = vmatprep.mubr.f32.mxu0 %v901
  %1798 = vmatmul.mubr.f32.gmra.mrb[0].mxu0 %v900
  %v1799 = vpop.f32.mrb[0].mxu0
  %v1800 = vadd.f32 0.0, %v1799
  %v1801 = vpop.f32.mrb[0].mxu0
  %1802 = vmatprep.mubr.f32.mxu0 %v904
  %1803 = vmatmul.mubr.f32.gmra.mrb[0].mxu0 %v903
  %v1804 = vpop.f32.mrb[0].mxu0
  %v1805 = vadd.f32 0.0, %v1804
  %v1806 = vpop.f32.mrb[0].mxu0
  %1807 = vmatprep.mubr.f32.mxu0 %v907
  %1808 = vmatmul.mubr.f32.gmra.mrb[0].mxu0 %v906
  %v1809 = vpop.f32.mrb[0].mxu0
  %v1810 = vadd.f32 0.0, %v1809
  %v1811 = vpop.f32.mrb[0].mxu0
  %1812 = vmatprep.mubr.f32.mxu0 %v910
  %1813 = vmatmul.mubr.f32.gmra.mrb[0].mxu0 %v909
  %v1814 = vpop.f32.mrb[0].mxu0
  %v1815 = vadd.f32 0.0, %v1814
  %v1816 = vpop.f32.mrb[0].mxu0
  %1817 = vmatprep.mubr.f32.mxu0 %v913
  %1818 = vmatmul.mubr.f32.gmra.mrb[0].mxu0 %v912
  %v1819 = vpop.f32.mrb[0].mxu0
  %v1820 = vadd.f32 0.0, %v1819
  %v1821 = vpop.f32.mrb[0].mxu0
  %1822 = vmatprep.mubr.f32.mxu0 %v916
  %1823 = vmatmul.mubr.f32.gmra.mrb[0].mxu0 %v915
  %v1824 = vpop.f32.mrb[0].mxu0
  %v1825 = vadd.f32 0.0, %v1824
  %v1826 = vpop.f32.mrb[0].mxu0
  %1827 = vmatprep.mubr.f32.mxu0 %v919
  %1828 = vmatmul.mubr.f32.gmra.mrb[0].mxu0 %v918
  %v1829 = vpop.f32.mrb[0].mxu0
  %v1830 = vadd.f32 0.0, %v1829
  %v1831 = vpop.f32.mrb[0].mxu0
  %1832 = vmatprep.mubr.f32.mxu0 %v922
  %1833 = vmatmul.mubr.f32.gmra.mrb[0].mxu0 %v921
  %v1834 = vpop.f32.mrb[0].mxu0
  %v1835 = vadd.f32 0.0, %v1834
  %v1836 = vpop.f32.mrb[0].mxu0
  %1837 = vmatprep.mubr.f32.mxu0 %v925
  %1838 = vmatmul.mubr.f32.gmra.mrb[0].mxu0 %v924
  %v1839 = vpop.f32.mrb[0].mxu0
  %v1840 = vadd.f32 0.0, %v1839
  %v1841 = vpop.f32.mrb[0].mxu0
  %1842 = vmatprep.mubr.f32.mxu0 %v928
  %1843 = vmatmul.mubr.f32.gmra.mrb[0].mxu0 %v927
  %v1844 = vpop.f32.mrb[0].mxu0
  %v1845 = vadd.f32 0.0, %v1844
  %v1846 = vpop.f32.mrb[0].mxu0
  %1847 = vmatprep.mubr.f32.mxu0 %v931
  %1848 = vmatmul.mubr.f32.gmra.mrb[0].mxu0 %v930
  %v1849 = vpop.f32.mrb[0].mxu0
  %v1850 = vadd.f32 0.0, %v1849
  %v1851 = vpop.f32.mrb[0].mxu0
  %1852 = vmatprep.mubr.f32.mxu0 %v934
  %1853 = vmatmul.mubr.f32.gmra.mrb[0].mxu0 %v933
  %v1854 = vpop.f32.mrb[0].mxu0
  %v1855 = vadd.f32 0.0, %v1854
  %v1856 = vpop.f32.mrb[0].mxu0
  %1857 = vmatprep.mubr.f32.mxu0 %v937
  %1858 = vmatmul.mubr.f32.gmra.mrb[0].mxu0 %v936
  %v1859 = vpop.f32.mrb[0].mxu0
  %v1860 = vadd.f32 0.0, %v1859
  %v1861 = vpop.f32.mrb[0].mxu0
  %1862 = vmatprep.mubr.f32.mxu0 %v940
  %1863 = vmatmul.mubr.f32.gmra.mrb[0].mxu0 %v939
  %v1864 = vpop.f32.mrb[0].mxu0
  %v1865 = vadd.f32 0.0, %v1864
  %v1866 = vpop.f32.mrb[0].mxu0
  %1867 = vmatprep.mubr.f32.mxu0 %v943
  %1868 = vmatmul.mubr.f32.gmra.mrb[0].mxu0 %v942
  %v1869 = vpop.f32.mrb[0].mxu0
  %v1870 = vadd.f32 0.0, %v1869
  %v1871 = vpop.f32.mrb[0].mxu0
  %1872 = vmatprep.mubr.f32.mxu0 %v946
  %1873 = vmatmul.mubr.f32.gmra.mrb[0].mxu0 %v945
  %v1874 = vpop.f32.mrb[0].mxu0
  %v1875 = vadd.f32 0.0, %v1874
  %v1876 = vpop.f32.mrb[0].mxu0
  %1877 = vmatprep.mubr.f32.mxu0 %v949
  %1878 = vmatmul.mubr.f32.gmra.mrb[0].mxu0 %v948
  %v1879 = vpop.f32.mrb[0].mxu0
  %v1880 = vadd.f32 0.0, %v1879
  %v1881 = vpop.f32.mrb[0].mxu0
  %1882 = vmatprep.mubr.f32.mxu0 %v952
  %1883 = vmatmul.mubr.f32.gmra.mrb[0].mxu0 %v951
  %v1884 = vpop.f32.mrb[0].mxu0
  %v1885 = vadd.f32 0.0, %v1884
  %v1886 = vpop.f32.mrb[0].mxu0
  %1887 = vmatprep.mubr.f32.mxu0 %v955
  %1888 = vmatmul.mubr.f32.gmra.mrb[0].mxu0 %v954
  %v1889 = vpop.f32.mrb[0].mxu0
  %v1890 = vadd.f32 0.0, %v1889
  %v1891 = vpop.f32.mrb[0].mxu0
  %1892 = vmatprep.mubr.f32.mxu0 %v958
  %1893 = vmatmul.mubr.f32.gmra.mrb[0].mxu0 %v957
  %v1894 = vpop.f32.mrb[0].mxu0
  %v1895 = vadd.f32 0.0, %v1894
  %v1896 = vpop.f32.mrb[0].mxu0
  %1897 = vmatprep.mubr.f32.mxu0 %v961
  %1898 = vmatmul.mubr.f32.gmra.mrb[0].mxu0 %v960
  %v1899 = vpop.f32.mrb[0].mxu0
  %v1900 = vadd.f32 0.0, %v1899
  %v1901 = vpop.f32.mrb[0].mxu0
  %1902 = vmatprep.mubr.f32.mxu0 %v964
  %1903 = vmatmul.mubr.f32.gmra.mrb[0].mxu0 %v963
  %v1904 = vpop.f32.mrb[0].mxu0
  %v1905 = vadd.f32 0.0, %v1904
  %v1906 = vpop.f32.mrb[0].mxu0
  %1907 = vmatprep.mubr.f32.mxu0 %v967
  %1908 = vmatmul.mubr.f32.gmra.mrb[0].mxu0 %v966
  %v1909 = vpop.f32.mrb[0].mxu0
  %v1910 = vadd.f32 0.0, %v1909
  %v1911 = vpop.f32.mrb[0].mxu0
  %1912 = vmatprep.mubr.f32.mxu0 %v970
  %1913 = vmatmul.mubr.f32.gmra.mrb[0].mxu0 %v969
  %v1914 = vpop.f32.mrb[0].mxu0
  %v1915 = vadd.f32 0.0, %v1914
  %v1916 = vpop.f32.mrb[0].mxu0
  %1917 = vmatprep.mubr.f32.mxu0 %v973
  %1918 = vmatmul.mubr.f32.gmra.mrb[0].mxu0 %v972
  %v1919 = vpop.f32.mrb[0].mxu0
  %v1920 = vadd.f32 0.0, %v1919
  %v1921 = vpop.f32.mrb[0].mxu0
  %1922 = vmatprep.mubr.f32.mxu0 %v976
  %1923 = vmatmul.mubr.f32.gmra.mrb[0].mxu0 %v975
  %v1924 = vpop.f32.mrb[0].mxu0
  %v1925 = vadd.f32 0.0, %v1924
  %v1926 = vpop.f32.mrb[0].mxu0
  %1927 = vmatprep.mubr.f32.mxu0 %v979
  %1928 = vmatmul.mubr.f32.gmra.mrb[0].mxu0 %v978
  %v1929 = vpop.f32.mrb[0].mxu0
  %v1930 = vadd.f32 0.0, %v1929
  %v1931 = vpop.f32.mrb[0].mxu0
  %1932 = vmatprep.mubr.f32.mxu0 %v982
  %1933 = vmatmul.mubr.f32.gmra.mrb[0].mxu0 %v981
  %v1934 = vpop.f32.mrb[0].mxu0
  %v1935 = vadd.f32 0.0, %v1934
  %v1936 = vpop.f32.mrb[0].mxu0
  %1937 = vmatprep.mubr.f32.mxu0 %v985
  %1938 = vmatmul.mubr.f32.gmra.mrb[0].mxu0 %v984
  %v1939 = vpop.f32.mrb[0].mxu0
  %v1940 = vadd.f32 0.0, %v1939
  %v1941 = vpop.f32.mrb[0].mxu0
  %1942 = vmatprep.mubr.f32.mxu0 %v988
  %1943 = vmatmul.mubr.f32.gmra.mrb[0].mxu0 %v987
  %v1944 = vpop.f32.mrb[0].mxu0
  %v1945 = vadd.f32 0.0, %v1944
  %v1946 = vpop.f32.mrb[0].mxu0
  %1947 = vmatprep.mubr.f32.mxu0 %v991
  %1948 = vmatmul.mubr.f32.gmra.mrb[0].mxu0 %v990
  %v1949 = vpop.f32.mrb[0].mxu0
  %v1950 = vadd.f32 0.0, %v1949
  %v1951 = vpop.f32.mrb[0].mxu0
  %1952 = vmatprep.mubr.f32.mxu0 %v994
  %1953 = vmatmul.mubr.f32.gmra.mrb[0].mxu0 %v993
  %v1954 = vpop.f32.mrb[0].mxu0
  %v1955 = vadd.f32 0.0, %v1954
  %v1956 = vpop.f32.mrb[0].mxu0
  %1957 = vdwg.mxu0
  %1958 = vmatprep.subr.mxu0 0.0
  %1959 = vmatpush1.msra.mxu0 %v432
  %1960 = vmatprep.subr.mxu0 0.0
  %1961 = vmatpush1.msra.mxu0 %v433
  %1962 = vmatprep.subr.mxu0 0.0
  %1963 = vmatpush1.msra.mxu0 %v434
  %1964 = vmatprep.subr.mxu0 0.0
  %1965 = vmatpush1.msra.mxu0 %v435
  %1966 = vmatprep.subr.mxu0 0.0
  %1967 = vmatpush1.msra.mxu0 0.0
  %1968 = vmatprep.subr.mxu0 0.0
  %1969 = vmatpush1.msra.mxu0 0.0
  %1970 = vmatprep.subr.mxu0 0.0
  %1971 = vmatpush1.msra.mxu0 0.0
  %1972 = vmatprep.subr.mxu0 0.0
  %1973 = vmatpush1.msra.mxu0 0.0
  %1974 = vmatprep.subr.mxu0 0.0
  %1975 = vmatpush1.msra.mxu0 0.0
  %1976 = vmatprep.subr.mxu0 0.0
  %1977 = vmatpush1.msra.mxu0 0.0
  %1978 = vmatprep.subr.mxu0 0.0
  %1979 = vmatpush1.msra.mxu0 0.0
  %1980 = vmatprep.subr.mxu0 0.0
  %1981 = vmatpush1.msra.mxu0 0.0
  %1982 = vmatprep.subr.mxu0 0.0
  %1983 = vmatpush1.msra.mxu0 0.0
  %1984 = vmatprep.subr.mxu0 0.0
  %1985 = vmatpush1.msra.mxu0 0.0
  %1986 = vmatprep.subr.mxu0 0.0
  %1987 = vmatpush1.msra.mxu0 0.0
  %1988 = vmatprep.subr.mxu0 0.0
  %1989 = vmatpush1.msra.mxu0 0.0
  %1990 = vmatprep.subr.mxu0 0.0
  %1991 = vmatpush1.msra.mxu0 0.0
  %1992 = vmatprep.subr.mxu0 0.0
  %1993 = vmatpush1.msra.mxu0 0.0
  %1994 = vmatprep.subr.mxu0 0.0
  %1995 = vmatpush1.msra.mxu0 0.0
  %1996 = vmatprep.subr.mxu0 0.0
  %1997 = vmatpush1.msra.mxu0 0.0
  %1998 = vmatprep.subr.mxu0 0.0
  %1999 = vmatpush1.msra.mxu0 0.0
  %2000 = vmatprep.subr.mxu0 0.0
  %2001 = vmatpush1.msra.mxu0 0.0
  %2002 = vmatprep.subr.mxu0 0.0
  %2003 = vmatpush1.msra.mxu0 0.0
  %2004 = vmatprep.subr.mxu0 0.0
  %2005 = vmatpush1.msra.mxu0 0.0
  %2006 = vmatprep.subr.mxu0 0.0
  %2007 = vmatpush1.msra.mxu0 0.0
  %2008 = vmatprep.subr.mxu0 0.0
  %2009 = vmatpush1.msra.mxu0 0.0
  %2010 = vmatprep.subr.mxu0 0.0
  %2011 = vmatpush1.msra.mxu0 0.0
  %2012 = vmatprep.subr.mxu0 0.0
  %2013 = vmatpush1.msra.mxu0 0.0
  %2014 = vmatprep.subr.mxu0 0.0
  %2015 = vmatpush1.msra.mxu0 0.0
  %2016 = vmatprep.subr.mxu0 0.0
  %2017 = vmatpush1.msra.mxu0 0.0
  %2018 = vmatprep.subr.mxu0 0.0
  %2019 = vmatpush1.msra.mxu0 0.0
  %2020 = vmatprep.subr.mxu0 0.0
  %2021 = vmatpush1.msra.mxu0 0.0
  %2022 = vmatprep.mubr.f32.mxu0 0.0
  %2023 = vmatmul.mubr.f32.gmra.mrb[0].mxu0 %v998
  %v2024 = vpop.f32.mrb[0].mxu0
  %v2025 = vadd.f32 %v1400, %v2024
  %v2026 = vpop.f32.mrb[0].mxu0
  %2027 = vmatprep.mubr.f32.mxu0 0.0
  %2028 = vmatmul.mubr.f32.gmra.mrb[0].mxu0 %v1001
  %v2029 = vpop.f32.mrb[0].mxu0
  %v2030 = vadd.f32 %v1405, %v2029
  %v2031 = vpop.f32.mrb[0].mxu0
  %2032 = vmatprep.mubr.f32.mxu0 0.0
  %2033 = vmatmul.mubr.f32.gmra.mrb[0].mxu0 %v1004
  %v2034 = vpop.f32.mrb[0].mxu0
  %v2035 = vadd.f32 %v1410, %v2034
  %v2036 = vpop.f32.mrb[0].mxu0
  %2037 = vmatprep.mubr.f32.mxu0 0.0
  %2038 = vmatmul.mubr.f32.gmra.mrb[0].mxu0 %v1007
  %v2039 = vpop.f32.mrb[0].mxu0
  %v2040 = vadd.f32 %v1415, %v2039
  %v2041 = vpop.f32.mrb[0].mxu0
  %2042 = vmatprep.mubr.f32.mxu0 0.0
  %2043 = vmatmul.mubr.f32.gmra.mrb[0].mxu0 %v1010
  %v2044 = vpop.f32.mrb[0].mxu0
  %v2045 = vadd.f32 %v1420, %v2044
  %v2046 = vpop.f32.mrb[0].mxu0
  %2047 = vmatprep.mubr.f32.mxu0 0.0
  %2048 = vmatmul.mubr.f32.gmra.mrb[0].mxu0 %v1013
  %v2049 = vpop.f32.mrb[0].mxu0
  %v2050 = vadd.f32 %v1425, %v2049
  %v2051 = vpop.f32.mrb[0].mxu0
  %2052 = vmatprep.mubr.f32.mxu0 0.0
  %2053 = vmatmul.mubr.f32.gmra.mrb[0].mxu0 %v1016
  %v2054 = vpop.f32.mrb[0].mxu0
  %v2055 = vadd.f32 %v1430, %v2054
  %v2056 = vpop.f32.mrb[0].mxu0
  %2057 = vmatprep.mubr.f32.mxu0 0.0
  %2058 = vmatmul.mubr.f32.gmra.mrb[0].mxu0 %v1019
  %v2059 = vpop.f32.mrb[0].mxu0
  %v2060 = vadd.f32 %v1435, %v2059
  %v2061 = vpop.f32.mrb[0].mxu0
  %2062 = vmatprep.mubr.f32.mxu0 0.0
  %2063 = vmatmul.mubr.f32.gmra.mrb[0].mxu0 %v1022
  %v2064 = vpop.f32.mrb[0].mxu0
  %v2065 = vadd.f32 %v1440, %v2064
  %v2066 = vpop.f32.mrb[0].mxu0
  %2067 = vmatprep.mubr.f32.mxu0 0.0
  %2068 = vmatmul.mubr.f32.gmra.mrb[0].mxu0 %v1025
  %v2069 = vpop.f32.mrb[0].mxu0
  %v2070 = vadd.f32 %v1445, %v2069
  %v2071 = vpop.f32.mrb[0].mxu0
  %2072 = vmatprep.mubr.f32.mxu0 0.0
  %2073 = vmatmul.mubr.f32.gmra.mrb[0].mxu0 %v1028
  %v2074 = vpop.f32.mrb[0].mxu0
  %v2075 = vadd.f32 %v1450, %v2074
  %v2076 = vpop.f32.mrb[0].mxu0
  %2077 = vmatprep.mubr.f32.mxu0 0.0
  %2078 = vmatmul.mubr.f32.gmra.mrb[0].mxu0 %v1031
  %v2079 = vpop.f32.mrb[0].mxu0
  %v2080 = vadd.f32 %v1455, %v2079
  %v2081 = vpop.f32.mrb[0].mxu0
  %2082 = vmatprep.mubr.f32.mxu0 0.0
  %2083 = vmatmul.mubr.f32.gmra.mrb[0].mxu0 %v1034
  %v2084 = vpop.f32.mrb[0].mxu0
  %v2085 = vadd.f32 %v1460, %v2084
  %v2086 = vpop.f32.mrb[0].mxu0
  %2087 = vmatprep.mubr.f32.mxu0 0.0
  %2088 = vmatmul.mubr.f32.gmra.mrb[0].mxu0 %v1037
  %v2089 = vpop.f32.mrb[0].mxu0
  %v2090 = vadd.f32 %v1465, %v2089
  %v2091 = vpop.f32.mrb[0].mxu0
  %2092 = vmatprep.mubr.f32.mxu0 0.0
  %2093 = vmatmul.mubr.f32.gmra.mrb[0].mxu0 %v1040
  %v2094 = vpop.f32.mrb[0].mxu0
  %v2095 = vadd.f32 %v1470, %v2094
  %v2096 = vpop.f32.mrb[0].mxu0
  %2097 = vmatprep.mubr.f32.mxu0 0.0
  %2098 = vmatmul.mubr.f32.gmra.mrb[0].mxu0 %v1043
  %v2099 = vpop.f32.mrb[0].mxu0
  %v2100 = vadd.f32 %v1475, %v2099
  %v2101 = vpop.f32.mrb[0].mxu0
  %2102 = vmatprep.mubr.f32.mxu0 0.0
  %2103 = vmatmul.mubr.f32.gmra.mrb[0].mxu0 %v1046
  %v2104 = vpop.f32.mrb[0].mxu0
  %v2105 = vadd.f32 %v1480, %v2104
  %v2106 = vpop.f32.mrb[0].mxu0
  %2107 = vmatprep.mubr.f32.mxu0 0.0
  %2108 = vmatmul.mubr.f32.gmra.mrb[0].mxu0 %v1049
  %v2109 = vpop.f32.mrb[0].mxu0
  %v2110 = vadd.f32 %v1485, %v2109
  %v2111 = vpop.f32.mrb[0].mxu0
  %2112 = vmatprep.mubr.f32.mxu0 0.0
  %2113 = vmatmul.mubr.f32.gmra.mrb[0].mxu0 %v1052
  %v2114 = vpop.f32.mrb[0].mxu0
  %v2115 = vadd.f32 %v1490, %v2114
  %v2116 = vpop.f32.mrb[0].mxu0
  %2117 = vmatprep.mubr.f32.mxu0 0.0
  %2118 = vmatmul.mubr.f32.gmra.mrb[0].mxu0 %v1055
  %v2119 = vpop.f32.mrb[0].mxu0
  %v2120 = vadd.f32 %v1495, %v2119
  %v2121 = vpop.f32.mrb[0].mxu0
  %2122 = vmatprep.mubr.f32.mxu0 0.0
  %2123 = vmatmul.mubr.f32.gmra.mrb[0].mxu0 %v1058
  %v2124 = vpop.f32.mrb[0].mxu0
  %v2125 = vadd.f32 %v1500, %v2124
  %v2126 = vpop.f32.mrb[0].mxu0
  %2127 = vmatprep.mubr.f32.mxu0 0.0
  %2128 = vmatmul.mubr.f32.gmra.mrb[0].mxu0 %v1061
  %v2129 = vpop.f32.mrb[0].mxu0
  %v2130 = vadd.f32 %v1505, %v2129
  %v2131 = vpop.f32.mrb[0].mxu0
  %2132 = vmatprep.mubr.f32.mxu0 0.0
  %2133 = vmatmul.mubr.f32.gmra.mrb[0].mxu0 %v1064
  %v2134 = vpop.f32.mrb[0].mxu0
  %v2135 = vadd.f32 %v1510, %v2134
  %v2136 = vpop.f32.mrb[0].mxu0
  %2137 = vmatprep.mubr.f32.mxu0 0.0
  %2138 = vmatmul.mubr.f32.gmra.mrb[0].mxu0 %v1067
  %v2139 = vpop.f32.mrb[0].mxu0
  %v2140 = vadd.f32 %v1515, %v2139
  %v2141 = vpop.f32.mrb[0].mxu0
  %2142 = vmatprep.mubr.f32.mxu0 0.0
  %2143 = vmatmul.mubr.f32.gmra.mrb[0].mxu0 %v1070
  %v2144 = vpop.f32.mrb[0].mxu0
  %v2145 = vadd.f32 %v1520, %v2144
  %v2146 = vpop.f32.mrb[0].mxu0
  %2147 = vmatprep.mubr.f32.mxu0 0.0
  %2148 = vmatmul.mubr.f32.gmra.mrb[0].mxu0 %v1073
  %v2149 = vpop.f32.mrb[0].mxu0
  %v2150 = vadd.f32 %v1525, %v2149
  %v2151 = vpop.f32.mrb[0].mxu0
  %2152 = vmatprep.mubr.f32.mxu0 0.0
  %2153 = vmatmul.mubr.f32.gmra.mrb[0].mxu0 %v1076
  %v2154 = vpop.f32.mrb[0].mxu0
  %v2155 = vadd.f32 %v1530, %v2154
  %v2156 = vpop.f32.mrb[0].mxu0
  %2157 = vmatprep.mubr.f32.mxu0 0.0
  %2158 = vmatmul.mubr.f32.gmra.mrb[0].mxu0 %v1079
  %v2159 = vpop.f32.mrb[0].mxu0
  %v2160 = vadd.f32 %v1535, %v2159
  %v2161 = vpop.f32.mrb[0].mxu0
  %2162 = vmatprep.mubr.f32.mxu0 0.0
  %2163 = vmatmul.mubr.f32.gmra.mrb[0].mxu0 %v1082
  %v2164 = vpop.f32.mrb[0].mxu0
  %v2165 = vadd.f32 %v1540, %v2164
  %v2166 = vpop.f32.mrb[0].mxu0
  %2167 = vmatprep.mubr.f32.mxu0 0.0
  %2168 = vmatmul.mubr.f32.gmra.mrb[0].mxu0 %v1085
  %v2169 = vpop.f32.mrb[0].mxu0
  %v2170 = vadd.f32 %v1545, %v2169
  %v2171 = vpop.f32.mrb[0].mxu0
  %2172 = vmatprep.mubr.f32.mxu0 0.0
  %2173 = vmatmul.mubr.f32.gmra.mrb[0].mxu0 %v1088
  %v2174 = vpop.f32.mrb[0].mxu0
  %v2175 = vadd.f32 %v1550, %v2174
  %v2176 = vpop.f32.mrb[0].mxu0
  %2177 = vmatprep.mubr.f32.mxu0 0.0
  %2178 = vmatmul.mubr.f32.gmra.mrb[0].mxu0 %v1091
  %v2179 = vpop.f32.mrb[0].mxu0
  %v2180 = vadd.f32 %v1555, %v2179
  %v2181 = vpop.f32.mrb[0].mxu0
  %2182 = vmatprep.mubr.f32.mxu0 0.0
  %2183 = vmatmul.mubr.f32.gmra.mrb[0].mxu0 %v1094
  %v2184 = vpop.f32.mrb[0].mxu0
  %v2185 = vadd.f32 %v1560, %v2184
  %v2186 = vpop.f32.mrb[0].mxu0
  %2187 = vmatprep.mubr.f32.mxu0 0.0
  %2188 = vmatmul.mubr.f32.gmra.mrb[0].mxu0 %v1097
  %v2189 = vpop.f32.mrb[0].mxu0
  %v2190 = vadd.f32 %v1565, %v2189
  %v2191 = vpop.f32.mrb[0].mxu0
  %2192 = vmatprep.mubr.f32.mxu0 0.0
  %2193 = vmatmul.mubr.f32.gmra.mrb[0].mxu0 %v1100
  %v2194 = vpop.f32.mrb[0].mxu0
  %v2195 = vadd.f32 %v1570, %v2194
  %v2196 = vpop.f32.mrb[0].mxu0
  %2197 = vmatprep.mubr.f32.mxu0 0.0
  %2198 = vmatmul.mubr.f32.gmra.mrb[0].mxu0 %v1103
  %v2199 = vpop.f32.mrb[0].mxu0
  %v2200 = vadd.f32 %v1575, %v2199
  %v2201 = vpop.f32.mrb[0].mxu0
  %2202 = vmatprep.mubr.f32.mxu0 0.0
  %2203 = vmatmul.mubr.f32.gmra.mrb[0].mxu0 %v1106
  %v2204 = vpop.f32.mrb[0].mxu0
  %v2205 = vadd.f32 %v1580, %v2204
  %v2206 = vpop.f32.mrb[0].mxu0
  %2207 = vmatprep.mubr.f32.mxu0 0.0
  %2208 = vmatmul.mubr.f32.gmra.mrb[0].mxu0 %v1109
  %v2209 = vpop.f32.mrb[0].mxu0
  %v2210 = vadd.f32 %v1585, %v2209
  %v2211 = vpop.f32.mrb[0].mxu0
  %2212 = vmatprep.mubr.f32.mxu0 0.0
  %2213 = vmatmul.mubr.f32.gmra.mrb[0].mxu0 %v1112
  %v2214 = vpop.f32.mrb[0].mxu0
  %v2215 = vadd.f32 %v1590, %v2214
  %v2216 = vpop.f32.mrb[0].mxu0
  %2217 = vmatprep.mubr.f32.mxu0 0.0
  %2218 = vmatmul.mubr.f32.gmra.mrb[0].mxu0 %v1115
  %v2219 = vpop.f32.mrb[0].mxu0
  %v2220 = vadd.f32 %v1595, %v2219
  %v2221 = vpop.f32.mrb[0].mxu0
  %2222 = vmatprep.mubr.f32.mxu0 0.0
  %2223 = vmatmul.mubr.f32.gmra.mrb[0].mxu0 %v1118
  %v2224 = vpop.f32.mrb[0].mxu0
  %v2225 = vadd.f32 %v1600, %v2224
  %v2226 = vpop.f32.mrb[0].mxu0
  %2227 = vmatprep.mubr.f32.mxu0 0.0
  %2228 = vmatmul.mubr.f32.gmra.mrb[0].mxu0 %v1121
  %v2229 = vpop.f32.mrb[0].mxu0
  %v2230 = vadd.f32 %v1605, %v2229
  %v2231 = vpop.f32.mrb[0].mxu0
  %2232 = vmatprep.mubr.f32.mxu0 0.0
  %2233 = vmatmul.mubr.f32.gmra.mrb[0].mxu0 %v1124
  %v2234 = vpop.f32.mrb[0].mxu0
  %v2235 = vadd.f32 %v1610, %v2234
  %v2236 = vpop.f32.mrb[0].mxu0
  %2237 = vmatprep.mubr.f32.mxu0 0.0
  %2238 = vmatmul.mubr.f32.gmra.mrb[0].mxu0 %v1127
  %v2239 = vpop.f32.mrb[0].mxu0
  %v2240 = vadd.f32 %v1615, %v2239
  %v2241 = vpop.f32.mrb[0].mxu0
  %2242 = vmatprep.mubr.f32.mxu0 0.0
  %2243 = vmatmul.mubr.f32.gmra.mrb[0].mxu0 %v1130
  %v2244 = vpop.f32.mrb[0].mxu0
  %v2245 = vadd.f32 %v1620, %v2244
  %v2246 = vpop.f32.mrb[0].mxu0
  %2247 = vmatprep.mubr.f32.mxu0 0.0
  %2248 = vmatmul.mubr.f32.gmra.mrb[0].mxu0 %v1133
  %v2249 = vpop.f32.mrb[0].mxu0
  %v2250 = vadd.f32 %v1625, %v2249
  %v2251 = vpop.f32.mrb[0].mxu0
  %2252 = vmatprep.mubr.f32.mxu0 0.0
  %2253 = vmatmul.mubr.f32.gmra.mrb[0].mxu0 %v1136
  %v2254 = vpop.f32.mrb[0].mxu0
  %v2255 = vadd.f32 %v1630, %v2254
  %v2256 = vpop.f32.mrb[0].mxu0
  %2257 = vmatprep.mubr.f32.mxu0 0.0
  %2258 = vmatmul.mubr.f32.gmra.mrb[0].mxu0 %v1139
  %v2259 = vpop.f32.mrb[0].mxu0
  %v2260 = vadd.f32 %v1635, %v2259
  %v2261 = vpop.f32.mrb[0].mxu0
  %2262 = vmatprep.mubr.f32.mxu0 0.0
  %2263 = vmatmul.mubr.f32.gmra.mrb[0].mxu0 %v1142
  %v2264 = vpop.f32.mrb[0].mxu0
  %v2265 = vadd.f32 %v1640, %v2264
  %v2266 = vpop.f32.mrb[0].mxu0
  %2267 = vmatprep.mubr.f32.mxu0 0.0
  %2268 = vmatmul.mubr.f32.gmra.mrb[0].mxu0 %v1145
  %v2269 = vpop.f32.mrb[0].mxu0
  %v2270 = vadd.f32 %v1645, %v2269
  %v2271 = vpop.f32.mrb[0].mxu0
  %2272 = vmatprep.mubr.f32.mxu0 0.0
  %2273 = vmatmul.mubr.f32.gmra.mrb[0].mxu0 %v1148
  %v2274 = vpop.f32.mrb[0].mxu0
  %v2275 = vadd.f32 %v1650, %v2274
  %v2276 = vpop.f32.mrb[0].mxu0
  %2277 = vmatprep.mubr.f32.mxu0 0.0
  %2278 = vmatmul.mubr.f32.gmra.mrb[0].mxu0 %v1151
  %v2279 = vpop.f32.mrb[0].mxu0
  %v2280 = vadd.f32 %v1655, %v2279
  %v2281 = vpop.f32.mrb[0].mxu0
  %2282 = vmatprep.mubr.f32.mxu0 0.0
  %2283 = vmatmul.mubr.f32.gmra.mrb[0].mxu0 %v1154
  %v2284 = vpop.f32.mrb[0].mxu0
  %v2285 = vadd.f32 %v1660, %v2284
  %v2286 = vpop.f32.mrb[0].mxu0
  %2287 = vmatprep.mubr.f32.mxu0 0.0
  %2288 = vmatmul.mubr.f32.gmra.mrb[0].mxu0 %v1157
  %v2289 = vpop.f32.mrb[0].mxu0
  %v2290 = vadd.f32 %v1665, %v2289
  %v2291 = vpop.f32.mrb[0].mxu0
  %2292 = vmatprep.mubr.f32.mxu0 0.0
  %2293 = vmatmul.mubr.f32.gmra.mrb[0].mxu0 %v1160
  %v2294 = vpop.f32.mrb[0].mxu0
  %v2295 = vadd.f32 %v1670, %v2294
  %v2296 = vpop.f32.mrb[0].mxu0
  %2297 = vmatprep.mubr.f32.mxu0 0.0
  %2298 = vmatmul.mubr.f32.gmra.mrb[0].mxu0 %v1163
  %v2299 = vpop.f32.mrb[0].mxu0
  %v2300 = vadd.f32 %v1675, %v2299
  %v2301 = vpop.f32.mrb[0].mxu0
  %2302 = vmatprep.mubr.f32.mxu0 0.0
  %2303 = vmatmul.mubr.f32.gmra.mrb[0].mxu0 %v1166
  %v2304 = vpop.f32.mrb[0].mxu0
  %v2305 = vadd.f32 %v1680, %v2304
  %v2306 = vpop.f32.mrb[0].mxu0
  %2307 = vmatprep.mubr.f32.mxu0 0.0
  %2308 = vmatmul.mubr.f32.gmra.mrb[0].mxu0 %v1169
  %v2309 = vpop.f32.mrb[0].mxu0
  %v2310 = vadd.f32 %v1685, %v2309
  %v2311 = vpop.f32.mrb[0].mxu0
  %2312 = vmatprep.mubr.f32.mxu0 0.0
  %2313 = vmatmul.mubr.f32.gmra.mrb[0].mxu0 %v1172
  %v2314 = vpop.f32.mrb[0].mxu0
  %v2315 = vadd.f32 %v1690, %v2314
  %v2316 = vpop.f32.mrb[0].mxu0
  %2317 = vmatprep.mubr.f32.mxu0 0.0
  %2318 = vmatmul.mubr.f32.gmra.mrb[0].mxu0 %v1175
  %v2319 = vpop.f32.mrb[0].mxu0
  %v2320 = vadd.f32 %v1695, %v2319
  %v2321 = vpop.f32.mrb[0].mxu0
  %2322 = vmatprep.mubr.f32.mxu0 0.0
  %2323 = vmatmul.mubr.f32.gmra.mrb[0].mxu0 %v1178
  %v2324 = vpop.f32.mrb[0].mxu0
  %v2325 = vadd.f32 %v1700, %v2324
  %v2326 = vpop.f32.mrb[0].mxu0
  %2327 = vmatprep.mubr.f32.mxu0 0.0
  %2328 = vmatmul.mubr.f32.gmra.mrb[0].mxu0 %v1181
  %v2329 = vpop.f32.mrb[0].mxu0
  %v2330 = vadd.f32 %v1705, %v2329
  %v2331 = vpop.f32.mrb[0].mxu0
  %2332 = vmatprep.mubr.f32.mxu0 0.0
  %2333 = vmatmul.mubr.f32.gmra.mrb[0].mxu0 %v1184
  %v2334 = vpop.f32.mrb[0].mxu0
  %v2335 = vadd.f32 %v1710, %v2334
  %v2336 = vpop.f32.mrb[0].mxu0
  %2337 = vmatprep.mubr.f32.mxu0 0.0
  %2338 = vmatmul.mubr.f32.gmra.mrb[0].mxu0 %v1187
  %v2339 = vpop.f32.mrb[0].mxu0
  %v2340 = vadd.f32 %v1715, %v2339
  %v2341 = vpop.f32.mrb[0].mxu0
  %2342 = vmatprep.mubr.f32.mxu0 0.0
  %2343 = vmatmul.mubr.f32.gmra.mrb[0].mxu0 %v1190
  %v2344 = vpop.f32.mrb[0].mxu0
  %v2345 = vadd.f32 %v1720, %v2344
  %v2346 = vpop.f32.mrb[0].mxu0
  %2347 = vmatprep.mubr.f32.mxu0 0.0
  %2348 = vmatmul.mubr.f32.gmra.mrb[0].mxu0 %v1193
  %v2349 = vpop.f32.mrb[0].mxu0
  %v2350 = vadd.f32 %v1725, %v2349
  %v2351 = vpop.f32.mrb[0].mxu0
  %2352 = vmatprep.mubr.f32.mxu0 0.0
  %2353 = vmatmul.mubr.f32.gmra.mrb[0].mxu0 %v1196
  %v2354 = vpop.f32.mrb[0].mxu0
  %v2355 = vadd.f32 %v1730, %v2354
  %v2356 = vpop.f32.mrb[0].mxu0
  %2357 = vmatprep.mubr.f32.mxu0 0.0
  %2358 = vmatmul.mubr.f32.gmra.mrb[0].mxu0 %v1199
  %v2359 = vpop.f32.mrb[0].mxu0
  %v2360 = vadd.f32 %v1735, %v2359
  %v2361 = vpop.f32.mrb[0].mxu0
  %2362 = vmatprep.mubr.f32.mxu0 0.0
  %2363 = vmatmul.mubr.f32.gmra.mrb[0].mxu0 %v1202
  %v2364 = vpop.f32.mrb[0].mxu0
  %v2365 = vadd.f32 %v1740, %v2364
  %v2366 = vpop.f32.mrb[0].mxu0
  %2367 = vmatprep.mubr.f32.mxu0 0.0
  %2368 = vmatmul.mubr.f32.gmra.mrb[0].mxu0 %v1205
  %v2369 = vpop.f32.mrb[0].mxu0
  %v2370 = vadd.f32 %v1745, %v2369
  %v2371 = vpop.f32.mrb[0].mxu0
  %2372 = vmatprep.mubr.f32.mxu0 0.0
  %2373 = vmatmul.mubr.f32.gmra.mrb[0].mxu0 %v1208
  %v2374 = vpop.f32.mrb[0].mxu0
  %v2375 = vadd.f32 %v1750, %v2374
  %v2376 = vpop.f32.mrb[0].mxu0
  %2377 = vmatprep.mubr.f32.mxu0 0.0
  %2378 = vmatmul.mubr.f32.gmra.mrb[0].mxu0 %v1211
  %v2379 = vpop.f32.mrb[0].mxu0
  %v2380 = vadd.f32 %v1755, %v2379
  %v2381 = vpop.f32.mrb[0].mxu0
  %2382 = vmatprep.mubr.f32.mxu0 0.0
  %2383 = vmatmul.mubr.f32.gmra.mrb[0].mxu0 %v1214
  %v2384 = vpop.f32.mrb[0].mxu0
  %v2385 = vadd.f32 %v1760, %v2384
  %v2386 = vpop.f32.mrb[0].mxu0
  %2387 = vmatprep.mubr.f32.mxu0 0.0
  %2388 = vmatmul.mubr.f32.gmra.mrb[0].mxu0 %v1217
  %v2389 = vpop.f32.mrb[0].mxu0
  %v2390 = vadd.f32 %v1765, %v2389
  %v2391 = vpop.f32.mrb[0].mxu0
  %2392 = vmatprep.mubr.f32.mxu0 0.0
  %2393 = vmatmul.mubr.f32.gmra.mrb[0].mxu0 %v1220
  %v2394 = vpop.f32.mrb[0].mxu0
  %v2395 = vadd.f32 %v1770, %v2394
  %v2396 = vpop.f32.mrb[0].mxu0
  %2397 = vmatprep.mubr.f32.mxu0 0.0
  %2398 = vmatmul.mubr.f32.gmra.mrb[0].mxu0 %v1223
  %v2399 = vpop.f32.mrb[0].mxu0
  %v2400 = vadd.f32 %v1775, %v2399
  %v2401 = vpop.f32.mrb[0].mxu0
  %2402 = vmatprep.mubr.f32.mxu0 0.0
  %2403 = vmatmul.mubr.f32.gmra.mrb[0].mxu0 %v1226
  %v2404 = vpop.f32.mrb[0].mxu0
  %v2405 = vadd.f32 %v1780, %v2404
  %v2406 = vpop.f32.mrb[0].mxu0
  %2407 = vmatprep.mubr.f32.mxu0 0.0
  %2408 = vmatmul.mubr.f32.gmra.mrb[0].mxu0 %v1229
  %v2409 = vpop.f32.mrb[0].mxu0
  %v2410 = vadd.f32 %v1785, %v2409
  %v2411 = vpop.f32.mrb[0].mxu0
  %2412 = vmatprep.mubr.f32.mxu0 0.0
  %2413 = vmatmul.mubr.f32.gmra.mrb[0].mxu0 %v1232
  %v2414 = vpop.f32.mrb[0].mxu0
  %v2415 = vadd.f32 %v1790, %v2414
  %v2416 = vpop.f32.mrb[0].mxu0
  %2417 = vmatprep.mubr.f32.mxu0 0.0
  %2418 = vmatmul.mubr.f32.gmra.mrb[0].mxu0 %v1235
  %v2419 = vpop.f32.mrb[0].mxu0
  %v2420 = vadd.f32 %v1795, %v2419
  %v2421 = vpop.f32.mrb[0].mxu0
  %2422 = vmatprep.mubr.f32.mxu0 0.0
  %2423 = vmatmul.mubr.f32.gmra.mrb[0].mxu0 %v1238
  %v2424 = vpop.f32.mrb[0].mxu0
  %v2425 = vadd.f32 %v1800, %v2424
  %v2426 = vpop.f32.mrb[0].mxu0
  %2427 = vmatprep.mubr.f32.mxu0 0.0
  %2428 = vmatmul.mubr.f32.gmra.mrb[0].mxu0 %v1241
  %v2429 = vpop.f32.mrb[0].mxu0
  %v2430 = vadd.f32 %v1805, %v2429
  %v2431 = vpop.f32.mrb[0].mxu0
  %2432 = vmatprep.mubr.f32.mxu0 0.0
  %2433 = vmatmul.mubr.f32.gmra.mrb[0].mxu0 %v1244
  %v2434 = vpop.f32.mrb[0].mxu0
  %v2435 = vadd.f32 %v1810, %v2434
  %v2436 = vpop.f32.mrb[0].mxu0
  %2437 = vmatprep.mubr.f32.mxu0 0.0
  %2438 = vmatmul.mubr.f32.gmra.mrb[0].mxu0 %v1247
  %v2439 = vpop.f32.mrb[0].mxu0
  %v2440 = vadd.f32 %v1815, %v2439
  %v2441 = vpop.f32.mrb[0].mxu0
  %2442 = vmatprep.mubr.f32.mxu0 0.0
  %2443 = vmatmul.mubr.f32.gmra.mrb[0].mxu0 %v1250
  %v2444 = vpop.f32.mrb[0].mxu0
  %v2445 = vadd.f32 %v1820, %v2444
  %v2446 = vpop.f32.mrb[0].mxu0
  %2447 = vmatprep.mubr.f32.mxu0 0.0
  %2448 = vmatmul.mubr.f32.gmra.mrb[0].mxu0 %v1253
  %v2449 = vpop.f32.mrb[0].mxu0
  %v2450 = vadd.f32 %v1825, %v2449
  %v2451 = vpop.f32.mrb[0].mxu0
  %2452 = vmatprep.mubr.f32.mxu0 0.0
  %2453 = vmatmul.mubr.f32.gmra.mrb[0].mxu0 %v1256
  %v2454 = vpop.f32.mrb[0].mxu0
  %v2455 = vadd.f32 %v1830, %v2454
  %v2456 = vpop.f32.mrb[0].mxu0
  %2457 = vmatprep.mubr.f32.mxu0 0.0
  %2458 = vmatmul.mubr.f32.gmra.mrb[0].mxu0 %v1259
  %v2459 = vpop.f32.mrb[0].mxu0
  %v2460 = vadd.f32 %v1835, %v2459
  %v2461 = vpop.f32.mrb[0].mxu0
  %2462 = vmatprep.mubr.f32.mxu0 0.0
  %2463 = vmatmul.mubr.f32.gmra.mrb[0].mxu0 %v1262
  %v2464 = vpop.f32.mrb[0].mxu0
  %v2465 = vadd.f32 %v1840, %v2464
  %v2466 = vpop.f32.mrb[0].mxu0
  %2467 = vmatprep.mubr.f32.mxu0 0.0
  %2468 = vmatmul.mubr.f32.gmra.mrb[0].mxu0 %v1265
  %v2469 = vpop.f32.mrb[0].mxu0
  %v2470 = vadd.f32 %v1845, %v2469
  %v2471 = vpop.f32.mrb[0].mxu0
  %2472 = vmatprep.mubr.f32.mxu0 0.0
  %2473 = vmatmul.mubr.f32.gmra.mrb[0].mxu0 %v1268
  %v2474 = vpop.f32.mrb[0].mxu0
  %v2475 = vadd.f32 %v1850, %v2474
  %v2476 = vpop.f32.mrb[0].mxu0
  %2477 = vmatprep.mubr.f32.mxu0 0.0
  %2478 = vmatmul.mubr.f32.gmra.mrb[0].mxu0 %v1271
  %v2479 = vpop.f32.mrb[0].mxu0
  %v2480 = vadd.f32 %v1855, %v2479
  %v2481 = vpop.f32.mrb[0].mxu0
  %2482 = vmatprep.mubr.f32.mxu0 0.0
  %2483 = vmatmul.mubr.f32.gmra.mrb[0].mxu0 %v1274
  %v2484 = vpop.f32.mrb[0].mxu0
  %v2485 = vadd.f32 %v1860, %v2484
  %v2486 = vpop.f32.mrb[0].mxu0
  %2487 = vmatprep.mubr.f32.mxu0 0.0
  %2488 = vmatmul.mubr.f32.gmra.mrb[0].mxu0 %v1277
  %v2489 = vpop.f32.mrb[0].mxu0
  %v2490 = vadd.f32 %v1865, %v2489
  %v2491 = vpop.f32.mrb[0].mxu0
  %2492 = vmatprep.mubr.f32.mxu0 0.0
  %2493 = vmatmul.mubr.f32.gmra.mrb[0].mxu0 %v1280
  %v2494 = vpop.f32.mrb[0].mxu0
  %v2495 = vadd.f32 %v1870, %v2494
  %v2496 = vpop.f32.mrb[0].mxu0
  %2497 = vmatprep.mubr.f32.mxu0 0.0
  %2498 = vmatmul.mubr.f32.gmra.mrb[0].mxu0 %v1283
  %v2499 = vpop.f32.mrb[0].mxu0
  %v2500 = vadd.f32 %v1875, %v2499
  %v2501 = vpop.f32.mrb[0].mxu0
  %2502 = vmatprep.mubr.f32.mxu0 0.0
  %2503 = vmatmul.mubr.f32.gmra.mrb[0].mxu0 %v1286
  %v2504 = vpop.f32.mrb[0].mxu0
  %v2505 = vadd.f32 %v1880, %v2504
  %v2506 = vpop.f32.mrb[0].mxu0
  %2507 = vmatprep.mubr.f32.mxu0 0.0
  %2508 = vmatmul.mubr.f32.gmra.mrb[0].mxu0 %v1289
  %v2509 = vpop.f32.mrb[0].mxu0
  %v2510 = vadd.f32 %v1885, %v2509
  %v2511 = vpop.f32.mrb[0].mxu0
  %2512 = vmatprep.mubr.f32.mxu0 0.0
  %2513 = vmatmul.mubr.f32.gmra.mrb[0].mxu0 %v1292
  %v2514 = vpop.f32.mrb[0].mxu0
  %v2515 = vadd.f32 %v1890, %v2514
  %v2516 = vpop.f32.mrb[0].mxu0
  %2517 = vmatprep.mubr.f32.mxu0 0.0
  %2518 = vmatmul.mubr.f32.gmra.mrb[0].mxu0 %v1295
  %v2519 = vpop.f32.mrb[0].mxu0
  %v2520 = vadd.f32 %v1895, %v2519
  %v2521 = vpop.f32.mrb[0].mxu0
  %2522 = vmatprep.mubr.f32.mxu0 0.0
  %2523 = vmatmul.mubr.f32.gmra.mrb[0].mxu0 %v1298
  %v2524 = vpop.f32.mrb[0].mxu0
  %v2525 = vadd.f32 %v1900, %v2524
  %v2526 = vpop.f32.mrb[0].mxu0
  %2527 = vmatprep.mubr.f32.mxu0 0.0
  %2528 = vmatmul.mubr.f32.gmra.mrb[0].mxu0 %v1301
  %v2529 = vpop.f32.mrb[0].mxu0
  %v2530 = vadd.f32 %v1905, %v2529
  %v2531 = vpop.f32.mrb[0].mxu0
  %2532 = vmatprep.mubr.f32.mxu0 0.0
  %2533 = vmatmul.mubr.f32.gmra.mrb[0].mxu0 %v1304
  %v2534 = vpop.f32.mrb[0].mxu0
  %v2535 = vadd.f32 %v1910, %v2534
  %v2536 = vpop.f32.mrb[0].mxu0
  %2537 = vmatprep.mubr.f32.mxu0 0.0
  %2538 = vmatmul.mubr.f32.gmra.mrb[0].mxu0 %v1307
  %v2539 = vpop.f32.mrb[0].mxu0
  %v2540 = vadd.f32 %v1915, %v2539
  %v2541 = vpop.f32.mrb[0].mxu0
  %2542 = vmatprep.mubr.f32.mxu0 0.0
  %2543 = vmatmul.mubr.f32.gmra.mrb[0].mxu0 %v1310
  %v2544 = vpop.f32.mrb[0].mxu0
  %v2545 = vadd.f32 %v1920, %v2544
  %v2546 = vpop.f32.mrb[0].mxu0
  %2547 = vmatprep.mubr.f32.mxu0 0.0
  %2548 = vmatmul.mubr.f32.gmra.mrb[0].mxu0 %v1313
  %v2549 = vpop.f32.mrb[0].mxu0
  %v2550 = vadd.f32 %v1925, %v2549
  %v2551 = vpop.f32.mrb[0].mxu0
  %2552 = vmatprep.mubr.f32.mxu0 0.0
  %2553 = vmatmul.mubr.f32.gmra.mrb[0].mxu0 %v1316
  %v2554 = vpop.f32.mrb[0].mxu0
  %v2555 = vadd.f32 %v1930, %v2554
  %v2556 = vpop.f32.mrb[0].mxu0
  %2557 = vmatprep.mubr.f32.mxu0 0.0
  %2558 = vmatmul.mubr.f32.gmra.mrb[0].mxu0 %v1319
  %v2559 = vpop.f32.mrb[0].mxu0
  %v2560 = vadd.f32 %v1935, %v2559
  %v2561 = vpop.f32.mrb[0].mxu0
  %2562 = vmatprep.mubr.f32.mxu0 0.0
  %2563 = vmatmul.mubr.f32.gmra.mrb[0].mxu0 %v1322
  %v2564 = vpop.f32.mrb[0].mxu0
  %v2565 = vadd.f32 %v1940, %v2564
  %v2566 = vpop.f32.mrb[0].mxu0
  %2567 = vmatprep.mubr.f32.mxu0 0.0
  %2568 = vmatmul.mubr.f32.gmra.mrb[0].mxu0 %v1325
  %v2569 = vpop.f32.mrb[0].mxu0
  %v2570 = vadd.f32 %v1945, %v2569
  %v2571 = vpop.f32.mrb[0].mxu0
  %2572 = vmatprep.mubr.f32.mxu0 0.0
  %2573 = vmatmul.mubr.f32.gmra.mrb[0].mxu0 %v1328
  %v2574 = vpop.f32.mrb[0].mxu0
  %v2575 = vadd.f32 %v1950, %v2574
  %v2576 = vpop.f32.mrb[0].mxu0
  %2577 = vmatprep.mubr.f32.mxu0 0.0
  %2578 = vmatmul.mubr.f32.gmra.mrb[0].mxu0 %v1331
  %v2579 = vpop.f32.mrb[0].mxu0
  %v2580 = vadd.f32 %v1955, %v2579
  %v2581 = vpop.f32.mrb[0].mxu0
  %2582 = vdwg.mxu0
  %2590 = vrot.lane.b32.xlu0 %v2060, 32
  %v2591 = vpop.permute.xlu0 %2590
  %2592 = vrot.lane.b32.xlu0 %v2065, 32
  %v2593 = vpop.permute.xlu0 %2592
  %2594 = vrot.lane.b32.xlu0 %v2070, 32
  %v2595 = vpop.permute.xlu0 %2594
  %2596 = vrot.lane.b32.xlu0 %v2075, 32
  %v2597 = vpop.permute.xlu0 %2596
  %2598 = vrot.lane.b32.xlu0 %v2080, 32
  %v2599 = vpop.permute.xlu0 %2598
  %2600 = vrot.lane.b32.xlu0 %v2085, 32
  %v2601 = vpop.permute.xlu0 %2600
  %2602 = vrot.lane.b32.xlu0 %v2090, 32
  %v2603 = vpop.permute.xlu0 %2602
  %2618 = vrot.lane.b32.xlu0 %v2095, 64
  %v2619 = vpop.permute.xlu0 %2618
  %2620 = vrot.lane.b32.xlu0 %v2100, 64
  %v2621 = vpop.permute.xlu0 %2620
  %2622 = vrot.lane.b32.xlu0 %v2105, 64
  %v2623 = vpop.permute.xlu0 %2622
  %2624 = vrot.lane.b32.xlu0 %v2110, 64
  %v2625 = vpop.permute.xlu0 %2624
  %2626 = vrot.lane.b32.xlu0 %v2115, 64
  %v2627 = vpop.permute.xlu0 %2626
  %2628 = vrot.lane.b32.xlu0 %v2120, 64
  %v2629 = vpop.permute.xlu0 %2628
  %2630 = vrot.lane.b32.xlu0 %v2125, 64
  %v2631 = vpop.permute.xlu0 %2630
  %2646 = vrot.lane.b32.xlu0 %v2130, 96
  %v2647 = vpop.permute.xlu0 %2646
  %2648 = vrot.lane.b32.xlu0 %v2135, 96
  %v2649 = vpop.permute.xlu0 %2648
  %2650 = vrot.lane.b32.xlu0 %v2140, 96
  %v2651 = vpop.permute.xlu0 %2650
  %2652 = vrot.lane.b32.xlu0 %v2145, 96
  %v2653 = vpop.permute.xlu0 %2652
  %2654 = vrot.lane.b32.xlu0 %v2150, 96
  %v2655 = vpop.permute.xlu0 %2654
  %2656 = vrot.lane.b32.xlu0 %v2155, 96
  %v2657 = vpop.permute.xlu0 %2656
  %2658 = vrot.lane.b32.xlu0 %v2160, 96
  %v2659 = vpop.permute.xlu0 %2658
  %2674 = vrot.lane.b32.xlu0 %v2200, 32
  %v2675 = vpop.permute.xlu0 %2674
  %2676 = vrot.lane.b32.xlu0 %v2205, 32
  %v2677 = vpop.permute.xlu0 %2676
  %2678 = vrot.lane.b32.xlu0 %v2210, 32
  %v2679 = vpop.permute.xlu0 %2678
  %2680 = vrot.lane.b32.xlu0 %v2215, 32
  %v2681 = vpop.permute.xlu0 %2680
  %2682 = vrot.lane.b32.xlu0 %v2220, 32
  %v2683 = vpop.permute.xlu0 %2682
  %2684 = vrot.lane.b32.xlu0 %v2225, 32
  %v2685 = vpop.permute.xlu0 %2684
  %2686 = vrot.lane.b32.xlu0 %v2230, 32
  %v2687 = vpop.permute.xlu0 %2686
  %2702 = vrot.lane.b32.xlu0 %v2235, 64
  %v2703 = vpop.permute.xlu0 %2702
  %2704 = vrot.lane.b32.xlu0 %v2240, 64
  %v2705 = vpop.permute.xlu0 %2704
  %2706 = vrot.lane.b32.xlu0 %v2245, 64
  %v2707 = vpop.permute.xlu0 %2706
  %2708 = vrot.lane.b32.xlu0 %v2250, 64
  %v2709 = vpop.permute.xlu0 %2708
  %2710 = vrot.lane.b32.xlu0 %v2255, 64
  %v2711 = vpop.permute.xlu0 %2710
  %2712 = vrot.lane.b32.xlu0 %v2260, 64
  %v2713 = vpop.permute.xlu0 %2712
  %2714 = vrot.lane.b32.xlu0 %v2265, 64
  %v2715 = vpop.permute.xlu0 %2714
  %2730 = vrot.lane.b32.xlu0 %v2270, 96
  %v2731 = vpop.permute.xlu0 %2730
  %2732 = vrot.lane.b32.xlu0 %v2275, 96
  %v2733 = vpop.permute.xlu0 %2732
  %2734 = vrot.lane.b32.xlu0 %v2280, 96
  %v2735 = vpop.permute.xlu0 %2734
  %2736 = vrot.lane.b32.xlu0 %v2285, 96
  %v2737 = vpop.permute.xlu0 %2736
  %2738 = vrot.lane.b32.xlu0 %v2290, 96
  %v2739 = vpop.permute.xlu0 %2738
  %2740 = vrot.lane.b32.xlu0 %v2295, 96
  %v2741 = vpop.permute.xlu0 %2740
  %2742 = vrot.lane.b32.xlu0 %v2300, 96
  %v2743 = vpop.permute.xlu0 %2742
  %2758 = vrot.lane.b32.xlu0 %v2340, 32
  %v2759 = vpop.permute.xlu0 %2758
  %2760 = vrot.lane.b32.xlu0 %v2345, 32
  %v2761 = vpop.permute.xlu0 %2760
  %2762 = vrot.lane.b32.xlu0 %v2350, 32
  %v2763 = vpop.permute.xlu0 %2762
  %2764 = vrot.lane.b32.xlu0 %v2355, 32
  %v2765 = vpop.permute.xlu0 %2764
  %2766 = vrot.lane.b32.xlu0 %v2360, 32
  %v2767 = vpop.permute.xlu0 %2766
  %2768 = vrot.lane.b32.xlu0 %v2365, 32
  %v2769 = vpop.permute.xlu0 %2768
  %2770 = vrot.lane.b32.xlu0 %v2370, 32
  %v2771 = vpop.permute.xlu0 %2770
  %2786 = vrot.lane.b32.xlu0 %v2375, 64
  %v2787 = vpop.permute.xlu0 %2786
  %2788 = vrot.lane.b32.xlu0 %v2380, 64
  %v2789 = vpop.permute.xlu0 %2788
  %2790 = vrot.lane.b32.xlu0 %v2385, 64
  %v2791 = vpop.permute.xlu0 %2790
  %2792 = vrot.lane.b32.xlu0 %v2390, 64
  %v2793 = vpop.permute.xlu0 %2792
  %2794 = vrot.lane.b32.xlu0 %v2395, 64
  %v2795 = vpop.permute.xlu0 %2794
  %2796 = vrot.lane.b32.xlu0 %v2400, 64
  %v2797 = vpop.permute.xlu0 %2796
  %2798 = vrot.lane.b32.xlu0 %v2405, 64
  %v2799 = vpop.permute.xlu0 %2798
  %2814 = vrot.lane.b32.xlu0 %v2410, 96
  %v2815 = vpop.permute.xlu0 %2814
  %2816 = vrot.lane.b32.xlu0 %v2415, 96
  %v2817 = vpop.permute.xlu0 %2816
  %2818 = vrot.lane.b32.xlu0 %v2420, 96
  %v2819 = vpop.permute.xlu0 %2818
  %2820 = vrot.lane.b32.xlu0 %v2425, 96
  %v2821 = vpop.permute.xlu0 %2820
  %2822 = vrot.lane.b32.xlu0 %v2430, 96
  %v2823 = vpop.permute.xlu0 %2822
  %2824 = vrot.lane.b32.xlu0 %v2435, 96
  %v2825 = vpop.permute.xlu0 %2824
  %2826 = vrot.lane.b32.xlu0 %v2440, 96
  %v2827 = vpop.permute.xlu0 %2826
  %2842 = vrot.lane.b32.xlu0 %v2480, 32
  %v2843 = vpop.permute.xlu0 %2842
  %2844 = vrot.lane.b32.xlu0 %v2485, 32
  %v2845 = vpop.permute.xlu0 %2844
  %2846 = vrot.lane.b32.xlu0 %v2490, 32
  %v2847 = vpop.permute.xlu0 %2846
  %2848 = vrot.lane.b32.xlu0 %v2495, 32
  %v2849 = vpop.permute.xlu0 %2848
  %2850 = vrot.lane.b32.xlu0 %v2500, 32
  %v2851 = vpop.permute.xlu0 %2850
  %2852 = vrot.lane.b32.xlu0 %v2505, 32
  %v2853 = vpop.permute.xlu0 %2852
  %2854 = vrot.lane.b32.xlu0 %v2510, 32
  %v2855 = vpop.permute.xlu0 %2854
  %2870 = vrot.lane.b32.xlu0 %v2515, 64
  %v2871 = vpop.permute.xlu0 %2870
  %2872 = vrot.lane.b32.xlu0 %v2520, 64
  %v2873 = vpop.permute.xlu0 %2872
  %2874 = vrot.lane.b32.xlu0 %v2525, 64
  %v2875 = vpop.permute.xlu0 %2874
  %2876 = vrot.lane.b32.xlu0 %v2530, 64
  %v2877 = vpop.permute.xlu0 %2876
  %2878 = vrot.lane.b32.xlu0 %v2535, 64
  %v2879 = vpop.permute.xlu0 %2878
  %2880 = vrot.lane.b32.xlu0 %v2540, 64
  %v2881 = vpop.permute.xlu0 %2880
  %2882 = vrot.lane.b32.xlu0 %v2545, 64
  %v2883 = vpop.permute.xlu0 %2882
  %2898 = vrot.lane.b32.xlu0 %v2550, 96
  %v2899 = vpop.permute.xlu0 %2898
  %2900 = vrot.lane.b32.xlu0 %v2555, 96
  %v2901 = vpop.permute.xlu0 %2900
  %2902 = vrot.lane.b32.xlu0 %v2560, 96
  %v2903 = vpop.permute.xlu0 %2902
  %2904 = vrot.lane.b32.xlu0 %v2565, 96
  %v2905 = vpop.permute.xlu0 %2904
  %2906 = vrot.lane.b32.xlu0 %v2570, 96
  %v2907 = vpop.permute.xlu0 %2906
  %2908 = vrot.lane.b32.xlu0 %v2575, 96
  %v2909 = vpop.permute.xlu0 %2908
  %2910 = vrot.lane.b32.xlu0 %v2580, 96
  %v2911 = vpop.permute.xlu0 %2910
  %v2919 = vsel %vm996, %v2025, %v2591
  %v2920 = vsel %vm996, %v2030, %v2593
  %v2921 = vsel %vm996, %v2035, %v2595
  %v2922 = vsel %vm996, %v2040, %v2597
  %v2923 = vsel %vm996, %v2045, %v2599
  %v2924 = vsel %vm996, %v2050, %v2601
  %v2925 = vsel %vm996, %v2055, %v2603
  %vm2926 = vcmask 523264
  %v2927 = vsel %vm2926, %v2919, %v2619
  %v2928 = vsel %vm2926, %v2920, %v2621
  %v2929 = vsel %vm2926, %v2921, %v2623
  %v2930 = vsel %vm2926, %v2922, %v2625
  %v2931 = vsel %vm2926, %v2923, %v2627
  %v2932 = vsel %vm2926, %v2924, %v2629
  %v2933 = vsel %vm2926, %v2925, %v2631
  %vm2934 = vcmask 785408
  %v2935 = vsel %vm2934, %v2927, %v2647
  %v2936 = vsel %vm2934, %v2928, %v2649
  %v2937 = vsel %vm2934, %v2929, %v2651
  %v2938 = vsel %vm2934, %v2930, %v2653
  %v2939 = vsel %vm2934, %v2931, %v2655
  %v2940 = vsel %vm2934, %v2932, %v2657
  %v2941 = vsel %vm2934, %v2933, %v2659
  %v2942 = vsel %vm996, %v2165, %v2675
  %v2943 = vsel %vm996, %v2170, %v2677
  %v2944 = vsel %vm996, %v2175, %v2679
  %v2945 = vsel %vm996, %v2180, %v2681
  %v2946 = vsel %vm996, %v2185, %v2683
  %v2947 = vsel %vm996, %v2190, %v2685
  %v2948 = vsel %vm996, %v2195, %v2687
  %v2949 = vsel %vm2926, %v2942, %v2703
  %v2950 = vsel %vm2926, %v2943, %v2705
  %v2951 = vsel %vm2926, %v2944, %v2707
  %v2952 = vsel %vm2926, %v2945, %v2709
  %v2953 = vsel %vm2926, %v2946, %v2711
  %v2954 = vsel %vm2926, %v2947, %v2713
  %v2955 = vsel %vm2926, %v2948, %v2715
  %v2956 = vsel %vm2934, %v2949, %v2731
  %v2957 = vsel %vm2934, %v2950, %v2733
  %v2958 = vsel %vm2934, %v2951, %v2735
  %v2959 = vsel %vm2934, %v2952, %v2737
  %v2960 = vsel %vm2934, %v2953, %v2739
  %v2961 = vsel %vm2934, %v2954, %v2741
  %v2962 = vsel %vm2934, %v2955, %v2743
  %v2963 = vsel %vm996, %v2305, %v2759
  %v2964 = vsel %vm996, %v2310, %v2761
  %v2965 = vsel %vm996, %v2315, %v2763
  %v2966 = vsel %vm996, %v2320, %v2765
  %v2967 = vsel %vm996, %v2325, %v2767
  %v2968 = vsel %vm996, %v2330, %v2769
  %v2969 = vsel %vm996, %v2335, %v2771
  %v2970 = vsel %vm2926, %v2963, %v2787
  %v2971 = vsel %vm2926, %v2964, %v2789
  %v2972 = vsel %vm2926, %v2965, %v2791
  %v2973 = vsel %vm2926, %v2966, %v2793
  %v2974 = vsel %vm2926, %v2967, %v2795
  %v2975 = vsel %vm2926, %v2968, %v2797
  %v2976 = vsel %vm2926, %v2969, %v2799
  %v2977 = vsel %vm2934, %v2970, %v2815
  %v2978 = vsel %vm2934, %v2971, %v2817
  %v2979 = vsel %vm2934, %v2972, %v2819
  %v2980 = vsel %vm2934, %v2973, %v2821
  %v2981 = vsel %vm2934, %v2974, %v2823
  %v2982 = vsel %vm2934, %v2975, %v2825
  %v2983 = vsel %vm2934, %v2976, %v2827
  %v2984 = vsel %vm996, %v2445, %v2843
  %v2985 = vsel %vm996, %v2450, %v2845
  %v2986 = vsel %vm996, %v2455, %v2847
  %v2987 = vsel %vm996, %v2460, %v2849
  %v2988 = vsel %vm996, %v2465, %v2851
  %v2989 = vsel %vm996, %v2470, %v2853
  %v2990 = vsel %vm996, %v2475, %v2855
  %v2991 = vsel %vm2926, %v2984, %v2871
  %v2992 = vsel %vm2926, %v2985, %v2873
  %v2993 = vsel %vm2926, %v2986, %v2875
  %v2994 = vsel %vm2926, %v2987, %v2877
  %v2995 = vsel %vm2926, %v2988, %v2879
  %v2996 = vsel %vm2926, %v2989, %v2881
  %v2997 = vsel %vm2926, %v2990, %v2883
  %v2998 = vsel %vm2934, %v2991, %v2899
  %v2999 = vsel %vm2934, %v2992, %v2901
  %v3000 = vsel %vm2934, %v2993, %v2903
  %v3001 = vsel %vm2934, %v2994, %v2905
  %v3002 = vsel %vm2934, %v2995, %v2907
  %v3003 = vsel %vm2934, %v2996, %v2909
  %v3004 = vsel %vm2934, %v2997, %v2911
  %v3005 = vld [vmem:[%s4] sm:$0xff]
  %v3006 = vld [vmem:[%s4 + $0x8] sm:$0xff]
  %v3007 = vld [vmem:[%s4 + $0x10] sm:$0xff]
  %v3008 = vld [vmem:[%s4 + $0x18] sm:$0xff]
  %v3009 = vld [vmem:[%s4 + $0x20] sm:$0xff]
  %v3010 = vld [vmem:[%s4 + $0x28] sm:$0xff]
  %v3011 = vld [vmem:[%s4 + $0x30] sm:$0xff]
  %v3012 = vld [vmem:[%s4 + $0x38] sm:$0xff]
  %v3013 = vld [vmem:[%s4 + $0x40] sm:$0xff]
  %v3014 = vld [vmem:[%s4 + $0x48] sm:$0xff]
  %v3015 = vld [vmem:[%s4 + $0x50] sm:$0xff]
  %v3016 = vld [vmem:[%s4 + $0x58] sm:$0xff]
  %v3017 = vld [vmem:[%s4 + $0x60] sm:$0xff]
  %v3018 = vld [vmem:[%s4 + $0x68] sm:$0xff]
  %v3019 = vld [vmem:[%s4 + $0x70] sm:$0xff]
  %v3020 = vld [vmem:[%s4 + $0x78] sm:$0xff]
  %v3021 = vld [vmem:[%s4 + $0x80] sm:$0xff]
  %v3022 = vld [vmem:[%s4 + $0x88] sm:$0xff]
  %v3023 = vld [vmem:[%s4 + $0x90] sm:$0xff]
  %v3024 = vld [vmem:[%s4 + $0x98] sm:$0xff]
  %v3025 = vld [vmem:[%s4 + $0xa0] sm:$0xff]
  %v3026 = vld [vmem:[%s4 + $0xa8] sm:$0xff]
  %v3027 = vld [vmem:[%s4 + $0xb0] sm:$0xff]
  %v3028 = vld [vmem:[%s4 + $0xb8] sm:$0xff]
  %v3029 = vld [vmem:[%s4 + $0xc0] sm:$0xff]
  %v3030 = vld [vmem:[%s4 + $0xc8] sm:$0xff]
  %v3031 = vld [vmem:[%s4 + $0xd0] sm:$0xff]
  %v3032 = vld [vmem:[%s4 + $0xd8] sm:$0xff]
  %v3033 = vld [vmem:[%s4 + $0xe0] sm:$0xff]
  %v3034 = vld [vmem:[%s4 + $0xe8] sm:$0xff]
  %v3035 = vld [vmem:[%s4 + $0xf0] sm:$0xff]
  %v3036 = vld [vmem:[%s4 + $0xf8] sm:$0xff]
  %v3037 = vld [vmem:[%s4 + $0x100] sm:$0xff]
  %v3038 = vld [vmem:[%s4 + $0x108] sm:$0xff]
  %v3039 = vld [vmem:[%s4 + $0x110] sm:$0xff]
  %v3040 = vld [vmem:[%s4 + $0x118] sm:$0xff]
  %v3041 = vld [vmem:[%s4 + $0x120] sm:$0xff]
  %v3042 = vld [vmem:[%s4 + $0x128] sm:$0xff]
  %v3043 = vld [vmem:[%s4 + $0x130] sm:$0xff]
  %v3044 = vld [vmem:[%s4 + $0x138] sm:$0xff]
  %v3045 = vld [vmem:[%s4 + $0x140] sm:$0xff]
  %v3046 = vld [vmem:[%s4 + $0x148] sm:$0xff]
  %v3047 = vld [vmem:[%s4 + $0x150] sm:$0xff]
  %v3048 = vld [vmem:[%s4 + $0x158] sm:$0xff]
  %v3049 = vld [vmem:[%s4 + $0x160] sm:$0xff]
  %v3050 = vld [vmem:[%s4 + $0x168] sm:$0xff]
  %v3051 = vld [vmem:[%s4 + $0x170] sm:$0xff]
  %v3052 = vld [vmem:[%s4 + $0x178] sm:$0xff]
  %v3053 = vld [vmem:[%s4 + $0x180] sm:$0xff]
  %v3054 = vld [vmem:[%s4 + $0x188] sm:$0xff]
  %v3055 = vld [vmem:[%s4 + $0x190] sm:$0xff]
  %v3056 = vld [vmem:[%s4 + $0x198] sm:$0xff]
  %v3057 = vld [vmem:[%s4 + $0x1a0] sm:$0xff]
  %v3058 = vld [vmem:[%s4 + $0x1a8] sm:$0xff]
  %v3059 = vld [vmem:[%s4 + $0x1b0] sm:$0xff]
  %v3060 = vld [vmem:[%s4 + $0x1b8] sm:$0xff]
  %v3061 = vld [vmem:[%s4 + $0x1c0] sm:$0xff]
  %v3062 = vld [vmem:[%s4 + $0x1c8] sm:$0xff]
  %v3063 = vld [vmem:[%s4 + $0x1d0] sm:$0xff]
  %v3064 = vld [vmem:[%s4 + $0x1d8] sm:$0xff]
  %v3065 = vld [vmem:[%s4 + $0x1e0] sm:$0xff]
  %v3066 = vld [vmem:[%s4 + $0x1e8] sm:$0xff]
  %v3067 = vld [vmem:[%s4 + $0x1f0] sm:$0xff]
  %v3068 = vld [vmem:[%s4 + $0x1f8] sm:$0xff]
  %v3069 = vld [vmem:[%s5] sm:$0x1]
  %v3071 = vlaneseq
  %v3072 = vshrl.u32 %v3071, 7
  %v3073 = vsub.s32 0, %v3072
  %v3074 = vrot.slane %v3069, %v3073
  %3076 = vmatprep.subr.mxu0 0.0
  %3077 = vmatpush1.msra.mxu0 %v3005
  %3078 = vmatprep.subr.mxu0 0.0
  %3079 = vmatpush1.msra.mxu0 %v3006
  %3080 = vmatprep.subr.mxu0 0.0
  %3081 = vmatpush1.msra.mxu0 %v3007
  %3082 = vmatprep.subr.mxu0 0.0
  %3083 = vmatpush1.msra.mxu0 %v3008
  %3084 = vmatprep.subr.mxu0 0.0
  %3085 = vmatpush1.msra.mxu0 %v3009
  %3086 = vmatprep.subr.mxu0 0.0
  %3087 = vmatpush1.msra.mxu0 %v3010
  %3088 = vmatprep.subr.mxu0 0.0
  %3089 = vmatpush1.msra.mxu0 %v3011
  %3090 = vmatprep.subr.mxu0 0.0
  %3091 = vmatpush1.msra.mxu0 %v3012
  %3092 = vmatprep.subr.mxu0 0.0
  %3093 = vmatpush1.msra.mxu0 %v3013
  %3094 = vmatprep.subr.mxu0 0.0
  %3095 = vmatpush1.msra.mxu0 %v3014
  %3096 = vmatprep.subr.mxu0 0.0
  %3097 = vmatpush1.msra.mxu0 %v3015
  %3098 = vmatprep.subr.mxu0 0.0
  %3099 = vmatpush1.msra.mxu0 %v3016
  %3100 = vmatprep.subr.mxu0 0.0
  %3101 = vmatpush1.msra.mxu0 %v3017
  %3102 = vmatprep.subr.mxu0 0.0
  %3103 = vmatpush1.msra.mxu0 %v3018
  %3104 = vmatprep.subr.mxu0 0.0
  %3105 = vmatpush1.msra.mxu0 %v3019
  %3106 = vmatprep.subr.mxu0 0.0
  %3107 = vmatpush1.msra.mxu0 %v3020
  %3108 = vmatprep.subr.mxu0 0.0
  %3109 = vmatpush1.msra.mxu0 %v3021
  %3110 = vmatprep.subr.mxu0 0.0
  %3111 = vmatpush1.msra.mxu0 %v3022
  %3112 = vmatprep.subr.mxu0 0.0
  %3113 = vmatpush1.msra.mxu0 %v3023
  %3114 = vmatprep.subr.mxu0 0.0
  %3115 = vmatpush1.msra.mxu0 %v3024
  %3116 = vmatprep.subr.mxu0 0.0
  %3117 = vmatpush1.msra.mxu0 %v3025
  %3118 = vmatprep.subr.mxu0 0.0
  %3119 = vmatpush1.msra.mxu0 %v3026
  %3120 = vmatprep.subr.mxu0 0.0
  %3121 = vmatpush1.msra.mxu0 %v3027
  %3122 = vmatprep.subr.mxu0 0.0
  %3123 = vmatpush1.msra.mxu0 %v3028
  %3124 = vmatprep.subr.mxu0 0.0
  %3125 = vmatpush1.msra.mxu0 %v3029
  %3126 = vmatprep.subr.mxu0 0.0
  %3127 = vmatpush1.msra.mxu0 %v3030
  %3128 = vmatprep.subr.mxu0 0.0
  %3129 = vmatpush1.msra.mxu0 %v3031
  %3130 = vmatprep.subr.mxu0 0.0
  %3131 = vmatpush1.msra.mxu0 %v3032
  %3132 = vmatprep.subr.mxu0 0.0
  %3133 = vmatpush1.msra.mxu0 %v3033
  %3134 = vmatprep.subr.mxu0 0.0
  %3135 = vmatpush1.msra.mxu0 %v3034
  %3136 = vmatprep.subr.mxu0 0.0
  %3137 = vmatpush1.msra.mxu0 %v3035
  %3138 = vmatprep.subr.mxu0 0.0
  %3139 = vmatpush1.msra.mxu0 %v3036
  %3140 = vmatprep.mubr.f32.mxu0 %v2956
  %3141 = vmatmul.mubr.f32.gmra.mrb[0].mxu0 %v2935
  %v3142 = vpop.f32.mrb[0].mxu0
  %v3143 = vadd.f32 %v3074, %v3142
  %v3144 = vpop.f32.mrb[0].mxu0
  %3145 = vmatprep.mubr.f32.mxu0 %v2957
  %3146 = vmatmul.mubr.f32.gmra.mrb[0].mxu0 %v2936
  %v3147 = vpop.f32.mrb[0].mxu0
  %v3148 = vadd.f32 %v3074, %v3147
  %v3149 = vpop.f32.mrb[0].mxu0
  %3150 = vmatprep.mubr.f32.mxu0 %v2958
  %3151 = vmatmul.mubr.f32.gmra.mrb[0].mxu0 %v2937
  %v3152 = vpop.f32.mrb[0].mxu0
  %v3153 = vadd.f32 %v3074, %v3152
  %v3154 = vpop.f32.mrb[0].mxu0
  %3155 = vmatprep.mubr.f32.mxu0 %v2959
  %3156 = vmatmul.mubr.f32.gmra.mrb[0].mxu0 %v2938
  %v3157 = vpop.f32.mrb[0].mxu0
  %v3158 = vadd.f32 %v3074, %v3157
  %v3159 = vpop.f32.mrb[0].mxu0
  %3160 = vmatprep.mubr.f32.mxu0 %v2960
  %3161 = vmatmul.mubr.f32.gmra.mrb[0].mxu0 %v2939
  %v3162 = vpop.f32.mrb[0].mxu0
  %v3163 = vadd.f32 %v3074, %v3162
  %v3164 = vpop.f32.mrb[0].mxu0
  %3165 = vmatprep.mubr.f32.mxu0 %v2961
  %3166 = vmatmul.mubr.f32.gmra.mrb[0].mxu0 %v2940
  %v3167 = vpop.f32.mrb[0].mxu0
  %v3168 = vadd.f32 %v3074, %v3167
  %v3169 = vpop.f32.mrb[0].mxu0
  %3170 = vmatprep.mubr.f32.mxu0 %v2962
  %3171 = vmatmul.mubr.f32.gmra.mrb[0].mxu0 %v2941
  %v3172 = vpop.f32.mrb[0].mxu0
  %v3173 = vadd.f32 %v3074, %v3172
  %v3174 = vpop.f32.mrb[0].mxu0
  %3175 = vdwg.mxu0
  %3176 = vmatprep.subr.mxu0 0.0
  %3177 = vmatpush1.msra.mxu0 %v3037
  %3178 = vmatprep.subr.mxu0 0.0
  %3179 = vmatpush1.msra.mxu0 %v3038
  %3180 = vmatprep.subr.mxu0 0.0
  %3181 = vmatpush1.msra.mxu0 %v3039
  %3182 = vmatprep.subr.mxu0 0.0
  %3183 = vmatpush1.msra.mxu0 %v3040
  %3184 = vmatprep.subr.mxu0 0.0
  %3185 = vmatpush1.msra.mxu0 %v3041
  %3186 = vmatprep.subr.mxu0 0.0
  %3187 = vmatpush1.msra.mxu0 %v3042
  %3188 = vmatprep.subr.mxu0 0.0
  %3189 = vmatpush1.msra.mxu0 %v3043
  %3190 = vmatprep.subr.mxu0 0.0
  %3191 = vmatpush1.msra.mxu0 %v3044
  %3192 = vmatprep.subr.mxu0 0.0
  %3193 = vmatpush1.msra.mxu0 %v3045
  %3194 = vmatprep.subr.mxu0 0.0
  %3195 = vmatpush1.msra.mxu0 %v3046
  %3196 = vmatprep.subr.mxu0 0.0
  %3197 = vmatpush1.msra.mxu0 %v3047
  %3198 = vmatprep.subr.mxu0 0.0
  %3199 = vmatpush1.msra.mxu0 %v3048
  %3200 = vmatprep.subr.mxu0 0.0
  %3201 = vmatpush1.msra.mxu0 %v3049
  %3202 = vmatprep.subr.mxu0 0.0
  %3203 = vmatpush1.msra.mxu0 %v3050
  %3204 = vmatprep.subr.mxu0 0.0
  %3205 = vmatpush1.msra.mxu0 %v3051
  %3206 = vmatprep.subr.mxu0 0.0
  %3207 = vmatpush1.msra.mxu0 %v3052
  %3208 = vmatprep.subr.mxu0 0.0
  %3209 = vmatpush1.msra.mxu0 %v3053
  %3210 = vmatprep.subr.mxu0 0.0
  %3211 = vmatpush1.msra.mxu0 %v3054
  %3212 = vmatprep.subr.mxu0 0.0
  %3213 = vmatpush1.msra.mxu0 %v3055
  %3214 = vmatprep.subr.mxu0 0.0
  %3215 = vmatpush1.msra.mxu0 %v3056
  %3216 = vmatprep.subr.mxu0 0.0
  %3217 = vmatpush1.msra.mxu0 %v3057
  %3218 = vmatprep.subr.mxu0 0.0
  %3219 = vmatpush1.msra.mxu0 %v3058
  %3220 = vmatprep.subr.mxu0 0.0
  %3221 = vmatpush1.msra.mxu0 %v3059
  %3222 = vmatprep.subr.mxu0 0.0
  %3223 = vmatpush1.msra.mxu0 %v3060
  %3224 = vmatprep.subr.mxu0 0.0
  %3225 = vmatpush1.msra.mxu0 %v3061
  %3226 = vmatprep.subr.mxu0 0.0
  %3227 = vmatpush1.msra.mxu0 %v3062
  %3228 = vmatprep.subr.mxu0 0.0
  %3229 = vmatpush1.msra.mxu0 %v3063
  %3230 = vmatprep.subr.mxu0 0.0
  %3231 = vmatpush1.msra.mxu0 %v3064
  %3232 = vmatprep.subr.mxu0 0.0
  %3233 = vmatpush1.msra.mxu0 %v3065
  %3234 = vmatprep.subr.mxu0 0.0
  %3235 = vmatpush1.msra.mxu0 %v3066
  %3236 = vmatprep.subr.mxu0 0.0
  %3237 = vmatpush1.msra.mxu0 %v3067
  %3238 = vmatprep.subr.mxu0 0.0
  %3239 = vmatpush1.msra.mxu0 %v3068
  %3240 = vmatprep.mubr.f32.mxu0 %v2998
  %3241 = vmatmul.mubr.f32.gmra.mrb[0].mxu0 %v2977
  %v3242 = vpop.f32.mrb[0].mxu0
  %v3243 = vadd.f32 %v3143, %v3242
  %v3244 = vpop.f32.mrb[0].mxu0
  %3245 = vmatprep.mubr.f32.mxu0 %v2999
  %3246 = vmatmul.mubr.f32.gmra.mrb[0].mxu0 %v2978
  %v3247 = vpop.f32.mrb[0].mxu0
  %v3248 = vadd.f32 %v3148, %v3247
  %v3249 = vpop.f32.mrb[0].mxu0
  %3250 = vmatprep.mubr.f32.mxu0 %v3000
  %3251 = vmatmul.mubr.f32.gmra.mrb[0].mxu0 %v2979
  %v3252 = vpop.f32.mrb[0].mxu0
  %v3253 = vadd.f32 %v3153, %v3252
  %v3254 = vpop.f32.mrb[0].mxu0
  %3255 = vmatprep.mubr.f32.mxu0 %v3001
  %3256 = vmatmul.mubr.f32.gmra.mrb[0].mxu0 %v2980
  %v3257 = vpop.f32.mrb[0].mxu0
  %v3258 = vadd.f32 %v3158, %v3257
  %v3259 = vpop.f32.mrb[0].mxu0
  %3260 = vmatprep.mubr.f32.mxu0 %v3002
  %3261 = vmatmul.mubr.f32.gmra.mrb[0].mxu0 %v2981
  %v3262 = vpop.f32.mrb[0].mxu0
  %v3263 = vadd.f32 %v3163, %v3262
  %v3264 = vpop.f32.mrb[0].mxu0
  %3265 = vmatprep.mubr.f32.mxu0 %v3003
  %3266 = vmatmul.mubr.f32.gmra.mrb[0].mxu0 %v2982
  %v3267 = vpop.f32.mrb[0].mxu0
  %v3268 = vadd.f32 %v3168, %v3267
  %v3269 = vpop.f32.mrb[0].mxu0
  %3270 = vmatprep.mubr.f32.mxu0 %v3004
  %3271 = vmatmul.mubr.f32.gmra.mrb[0].mxu0 %v2983
  %v3272 = vpop.f32.mrb[0].mxu0
  %v3273 = vadd.f32 %v3173, %v3272
  %v3274 = vpop.f32.mrb[0].mxu0
  %3275 = vdwg.mxu0
  %v3276 = vmax.f32 %v3243, 0.0
  %v3277 = vmax.f32 %v3248, 0.0
  %v3278 = vmax.f32 %v3253, 0.0
  %v3279 = vmax.f32 %v3258, 0.0
  %v3280 = vmax.f32 %v3263, 0.0
  %v3281 = vmax.f32 %v3268, 0.0
  %v3282 = vmax.f32 %v3273, 0.0
  %v3283 = vlaneseq
  %v3284 = vshrl.u32 %v3283, 7
  %v3285 = vadd.s32 %v3284, 8
  %v3286 = vadd.s32 %v3284, 16
  %v3287 = vadd.s32 %v3284, 24
  %v3288 = vadd.s32 %v3284, 32
  %v3289 = vadd.s32 %v3284, 40
  %v3290 = vadd.s32 %v3284, 48
  %vm3291 = vcmp.lt.s32.totalorder %v3284, 50
  %vm3292 = vcmp.lt.s32.totalorder %v3285, 50
  %vm3293 = vcmp.lt.s32.totalorder %v3286, 50
  %vm3294 = vcmp.lt.s32.totalorder %v3287, 50
  %vm3295 = vcmp.lt.s32.totalorder %v3288, 50
  %vm3296 = vcmp.lt.s32.totalorder %v3289, 50
  %vm3297 = vcmp.lt.s32.totalorder %v3290, 50
  %v3298 = vsel %vm3291, 1, 0
  %v3299 = vsel %vm3292, 1, 0
  %v3300 = vsel %vm3293, 1, 0
  %v3301 = vsel %vm3294, 1, 0
  %v3302 = vsel %vm3295, 1, 0
  %v3303 = vsel %vm3296, 1, 0
  %v3304 = vsel %vm3297, 1, 0
  %vm3305 = vcmp.eq.s32.totalorder %v3298, 1
  %vm3306 = vcmp.eq.s32.totalorder %v3299, 1
  %vm3307 = vcmp.eq.s32.totalorder %v3300, 1
  %vm3308 = vcmp.eq.s32.totalorder %v3301, 1
  %vm3309 = vcmp.eq.s32.totalorder %v3302, 1
  %vm3310 = vcmp.eq.s32.totalorder %v3303, 1
  %vm3311 = vcmp.eq.s32.totalorder %v3304, 1
  %v3312 = vsel %vm3305, %v3276, 0.0
  %v3313 = vsel %vm3306, %v3277, 0.0
  %v3314 = vsel %vm3307, %v3278, 0.0
  %v3315 = vsel %vm3308, %v3279, 0.0
  %v3316 = vsel %vm3309, %v3280, 0.0
  %v3317 = vsel %vm3310, %v3281, 0.0
  %v3318 = vsel %vm3311, %v3282, 0.0
  %v3319 = vld [vmem:[%s6] sm:$0xf]
  %v3320 = vld [vmem:[%s6 + $0x4] sm:$0xf]
  %v3321 = vld [vmem:[%s6 + $0x8] sm:$0xf]
  %v3322 = vld [vmem:[%s6 + $0xc] sm:$0xf]
  %v3323 = vld [vmem:[%s6 + $0x10] sm:$0xf]
  %v3324 = vld [vmem:[%s6 + $0x14] sm:$0xf]
  %v3325 = vld [vmem:[%s6 + $0x18] sm:$0xf]
  %v3326 = vld [vmem:[%s6 + $0x1c] sm:$0xf]
  %v3327 = vld [vmem:[%s6 + $0x20] sm:$0xf]
  %v3328 = vld [vmem:[%s6 + $0x24] sm:$0xf]
  %v3329 = vld [vmem:[%s6 + $0x28] sm:$0xf]
  %v3330 = vld [vmem:[%s6 + $0x2c] sm:$0xf]
  %v3331 = vld [vmem:[%s6 + $0x30] sm:$0xf]
  %v3332 = vld [vmem:[%s6 + $0x34] sm:$0xf]
  %v3333 = vld [vmem:[%s6 + $0x38] sm:$0xf]
  %v3334 = vld [vmem:[%s6 + $0x3c] sm:$0xf]
  %v3335 = vld [vmem:[%s6 + $0x40] sm:$0xf]
  %v3336 = vld [vmem:[%s6 + $0x44] sm:$0xf]
  %v3337 = vld [vmem:[%s6 + $0x48] sm:$0xf]
  %v3338 = vld [vmem:[%s6 + $0x4c] sm:$0xf]
  %v3339 = vld [vmem:[%s6 + $0x50] sm:$0xf]
  %v3340 = vld [vmem:[%s6 + $0x54] sm:$0xf]
  %v3341 = vld [vmem:[%s6 + $0x58] sm:$0xf]
  %v3342 = vld [vmem:[%s6 + $0x5c] sm:$0xf]
  %v3343 = vld [vmem:[%s6 + $0x60] sm:$0xf]
  %v3344 = vld [vmem:[%s6 + $0x64] sm:$0xf]
  %v3345 = vld [vmem:[%s6 + $0x68] sm:$0xf]
  %v3346 = vld [vmem:[%s6 + $0x6c] sm:$0xf]
  %v3347 = vld [vmem:[%s6 + $0x70] sm:$0xf]
  %v3348 = vld [vmem:[%s6 + $0x74] sm:$0xf]
  %v3349 = vld [vmem:[%s6 + $0x78] sm:$0xf]
  %v3350 = vld [vmem:[%s6 + $0x7c] sm:$0xf]
  %v3351 = vld [vmem:[%s6 + $0x80] sm:$0xf]
  %v3352 = vld [vmem:[%s6 + $0x84] sm:$0xf]
  %v3353 = vld [vmem:[%s6 + $0x88] sm:$0xf]
  %v3354 = vld [vmem:[%s6 + $0x8c] sm:$0xf]
  %v3355 = vld [vmem:[%s6 + $0x90] sm:$0xf]
  %v3356 = vld [vmem:[%s6 + $0x94] sm:$0xf]
  %v3357 = vld [vmem:[%s6 + $0x98] sm:$0xf]
  %v3358 = vld [vmem:[%s6 + $0x9c] sm:$0xf]
  %v3359 = vld [vmem:[%s6 + $0xa0] sm:$0xf]
  %v3360 = vld [vmem:[%s6 + $0xa4] sm:$0xf]
  %v3361 = vld [vmem:[%s6 + $0xa8] sm:$0xf]
  %v3362 = vld [vmem:[%s6 + $0xac] sm:$0xf]
  %v3363 = vld [vmem:[%s6 + $0xb0] sm:$0xf]
  %v3364 = vld [vmem:[%s6 + $0xb4] sm:$0xf]
  %v3365 = vld [vmem:[%s6 + $0xb8] sm:$0xf]
  %v3366 = vld [vmem:[%s6 + $0xbc] sm:$0xf]
  %v3367 = vld [vmem:[%s6 + $0xc0] sm:$0xf]
  %v3368 = vld [vmem:[%s6 + $0xc4] sm:$0xf]
  %v3369 = vld [vmem:[%s6 + $0xc8] sm:$0xf]
  %v3370 = vld [vmem:[%s6 + $0xcc] sm:$0xf]
  %v3371 = vld [vmem:[%s6 + $0xd0] sm:$0xf]
  %v3372 = vld [vmem:[%s6 + $0xd4] sm:$0xf]
  %v3373 = vld [vmem:[%s6 + $0xd8] sm:$0xf]
  %v3374 = vld [vmem:[%s6 + $0xdc] sm:$0xf]
  %v3375 = vld [vmem:[%s6 + $0xe0] sm:$0xf]
  %v3376 = vld [vmem:[%s6 + $0xe4] sm:$0xf]
  %v3377 = vld [vmem:[%s6 + $0xe8] sm:$0xf]
  %v3378 = vld [vmem:[%s6 + $0xec] sm:$0xf]
  %v3379 = vld [vmem:[%s6 + $0xf0] sm:$0xf]
  %v3380 = vld [vmem:[%s6 + $0xf4] sm:$0xf]
  %v3381 = vld [vmem:[%s6 + $0xf8] sm:$0xf]
  %v3382 = vld [vmem:[%s6 + $0xfc] sm:$0xf]
  %v3383 = vld [vmem:[%s6 + $0x100] sm:$0xf]
  %v3384 = vld [vmem:[%s6 + $0x104] sm:$0xf]
  %v3385 = vld [vmem:[%s6 + $0x108] sm:$0xf]
  %v3386 = vld [vmem:[%s6 + $0x10c] sm:$0xf]
  %v3387 = vld [vmem:[%s6 + $0x110] sm:$0xf]
  %v3388 = vld [vmem:[%s6 + $0x114] sm:$0xf]
  %v3389 = vld [vmem:[%s6 + $0x118] sm:$0xf]
  %v3390 = vld [vmem:[%s6 + $0x11c] sm:$0xf]
  %v3391 = vld [vmem:[%s6 + $0x120] sm:$0xf]
  %v3392 = vld [vmem:[%s6 + $0x124] sm:$0xf]
  %v3393 = vld [vmem:[%s6 + $0x128] sm:$0xf]
  %v3394 = vld [vmem:[%s6 + $0x12c] sm:$0xf]
  %v3395 = vld [vmem:[%s6 + $0x130] sm:$0xf]
  %v3396 = vld [vmem:[%s6 + $0x134] sm:$0xf]
  %v3397 = vld [vmem:[%s6 + $0x138] sm:$0xf]
  %v3398 = vld [vmem:[%s6 + $0x13c] sm:$0xf]
  %v3399 = vld [vmem:[%s6 + $0x140] sm:$0xf]
  %v3400 = vunpack.c.l.bf16 %v3319
  %v3401 = vunpack.c.l.bf16 %v3320
  %v3402 = vunpack.c.l.bf16 %v3321
  %v3403 = vunpack.c.l.bf16 %v3322
  %v3404 = vunpack.c.l.bf16 %v3323
  %v3405 = vunpack.c.l.bf16 %v3324
  %v3406 = vunpack.c.l.bf16 %v3325
  %v3407 = vunpack.c.l.bf16 %v3326
  %v3408 = vunpack.c.l.bf16 %v3327
  %v3409 = vunpack.c.l.bf16 %v3328
  %v3410 = vunpack.c.l.bf16 %v3329
  %v3411 = vunpack.c.l.bf16 %v3330
  %v3412 = vunpack.c.l.bf16 %v3331
  %v3413 = vunpack.c.l.bf16 %v3332
  %v3414 = vunpack.c.l.bf16 %v3333
  %v3415 = vunpack.c.l.bf16 %v3334
  %v3416 = vunpack.c.l.bf16 %v3335
  %v3417 = vunpack.c.l.bf16 %v3336
  %v3418 = vunpack.c.l.bf16 %v3337
  %v3419 = vunpack.c.l.bf16 %v3338
  %v3420 = vunpack.c.l.bf16 %v3339
  %v3421 = vunpack.c.l.bf16 %v3340
  %v3422 = vunpack.c.l.bf16 %v3341
  %v3423 = vunpack.c.l.bf16 %v3342
  %v3424 = vunpack.c.l.bf16 %v3343
  %v3425 = vunpack.c.l.bf16 %v3344
  %v3426 = vunpack.c.l.bf16 %v3345
  %v3427 = vunpack.c.l.bf16 %v3346
  %v3428 = vunpack.c.l.bf16 %v3347
  %v3429 = vunpack.c.l.bf16 %v3348
  %v3430 = vunpack.c.l.bf16 %v3349
  %v3431 = vunpack.c.l.bf16 %v3350
  %v3432 = vunpack.c.l.bf16 %v3351
  %v3433 = vunpack.c.l.bf16 %v3352
  %v3434 = vunpack.c.l.bf16 %v3353
  %v3435 = vunpack.c.l.bf16 %v3354
  %v3436 = vunpack.c.l.bf16 %v3355
  %v3437 = vunpack.c.l.bf16 %v3356
  %v3438 = vunpack.c.l.bf16 %v3357
  %v3439 = vunpack.c.l.bf16 %v3358
  %v3440 = vunpack.c.l.bf16 %v3359
  %v3441 = vunpack.c.l.bf16 %v3360
  %v3442 = vunpack.c.l.bf16 %v3361
  %v3443 = vunpack.c.l.bf16 %v3362
  %v3444 = vunpack.c.l.bf16 %v3363
  %v3445 = vunpack.c.l.bf16 %v3364
  %v3446 = vunpack.c.l.bf16 %v3365
  %v3447 = vunpack.c.l.bf16 %v3366
  %v3448 = vunpack.c.l.bf16 %v3367
  %v3449 = vunpack.c.l.bf16 %v3368
  %v3450 = vunpack.c.l.bf16 %v3369
  %v3451 = vunpack.c.l.bf16 %v3370
  %v3452 = vunpack.c.l.bf16 %v3371
  %v3453 = vunpack.c.l.bf16 %v3372
  %v3454 = vunpack.c.l.bf16 %v3373
  %v3455 = vunpack.c.l.bf16 %v3374
  %v3456 = vunpack.c.l.bf16 %v3375
  %v3457 = vunpack.c.l.bf16 %v3376
  %v3458 = vunpack.c.l.bf16 %v3377
  %v3459 = vunpack.c.l.bf16 %v3378
  %v3460 = vunpack.c.l.bf16 %v3379
  %v3461 = vunpack.c.l.bf16 %v3380
  %v3462 = vunpack.c.l.bf16 %v3381
  %v3463 = vunpack.c.l.bf16 %v3382
  %v3464 = vunpack.c.l.bf16 %v3383
  %v3465 = vunpack.c.l.bf16 %v3384
  %v3466 = vunpack.c.l.bf16 %v3385
  %v3467 = vunpack.c.l.bf16 %v3386
  %v3468 = vunpack.c.l.bf16 %v3387
  %v3469 = vunpack.c.l.bf16 %v3388
  %v3470 = vunpack.c.l.bf16 %v3389
  %v3471 = vunpack.c.l.bf16 %v3390
  %v3472 = vunpack.c.l.bf16 %v3391
  %v3473 = vunpack.c.l.bf16 %v3392
  %v3474 = vunpack.c.l.bf16 %v3393
  %v3475 = vunpack.c.l.bf16 %v3394
  %v3476 = vunpack.c.l.bf16 %v3395
  %v3477 = vunpack.c.l.bf16 %v3396
  %v3478 = vunpack.c.l.bf16 %v3397
  %v3479 = vunpack.c.l.bf16 %v3398
  %v3480 = vunpack.c.l.bf16 %v3399
  %vm3481 = vcmask 457728
  %v3483 = vsel %vm3481, %v3400, 0
  %v3486 = vsel %vm3481, %v3401, 0
  %v3489 = vsel %vm3481, %v3402, 0
  %v3492 = vsel %vm3481, %v3403, 0
  %v3495 = vsel %vm3481, %v3404, 0
  %v3498 = vsel %vm3481, %v3405, 0
  %v3501 = vsel %vm3481, %v3406, 0
  %v3504 = vsel %vm3481, %v3407, 0
  %v3507 = vsel %vm3481, %v3408, 0
  %v3510 = vsel %vm3481, %v3409, 0
  %v3513 = vsel %vm3481, %v3410, 0
  %v3516 = vsel %vm3481, %v3411, 0
  %v3519 = vsel %vm3481, %v3412, 0
  %v3522 = vsel %vm3481, %v3413, 0
  %v3525 = vsel %vm3481, %v3414, 0
  %v3528 = vsel %vm3481, %v3415, 0
  %v3531 = vsel %vm3481, %v3416, 0
  %v3534 = vsel %vm3481, %v3417, 0
  %v3537 = vsel %vm3481, %v3418, 0
  %v3540 = vsel %vm3481, %v3419, 0
  %v3543 = vsel %vm3481, %v3420, 0
  %v3546 = vsel %vm3481, %v3421, 0
  %v3549 = vsel %vm3481, %v3422, 0
  %v3552 = vsel %vm3481, %v3423, 0
  %v3555 = vsel %vm3481, %v3424, 0
  %v3558 = vsel %vm3481, %v3425, 0
  %v3561 = vsel %vm3481, %v3426, 0
  %v3564 = vsel %vm3481, %v3427, 0
  %v3567 = vsel %vm3481, %v3428, 0
  %v3570 = vsel %vm3481, %v3429, 0
  %v3573 = vsel %vm3481, %v3430, 0
  %v3576 = vsel %vm3481, %v3431, 0
  %v3579 = vsel %vm3481, %v3432, 0
  %v3582 = vsel %vm3481, %v3433, 0
  %v3585 = vsel %vm3481, %v3434, 0
  %v3588 = vsel %vm3481, %v3435, 0
  %v3591 = vsel %vm3481, %v3436, 0
  %v3594 = vsel %vm3481, %v3437, 0
  %v3597 = vsel %vm3481, %v3438, 0
  %v3600 = vsel %vm3481, %v3439, 0
  %v3603 = vsel %vm3481, %v3440, 0
  %v3606 = vsel %vm3481, %v3441, 0
  %v3609 = vsel %vm3481, %v3442, 0
  %v3612 = vsel %vm3481, %v3443, 0
  %v3615 = vsel %vm3481, %v3444, 0
  %v3618 = vsel %vm3481, %v3445, 0
  %v3621 = vsel %vm3481, %v3446, 0
  %v3624 = vsel %vm3481, %v3447, 0
  %v3627 = vsel %vm3481, %v3448, 0
  %v3630 = vsel %vm3481, %v3449, 0
  %v3633 = vsel %vm3481, %v3450, 0
  %v3636 = vsel %vm3481, %v3451, 0
  %v3639 = vsel %vm3481, %v3452, 0
  %v3642 = vsel %vm3481, %v3453, 0
  %v3645 = vsel %vm3481, %v3454, 0
  %v3648 = vsel %vm3481, %v3455, 0
  %v3651 = vsel %vm3481, %v3456, 0
  %v3654 = vsel %vm3481, %v3457, 0
  %v3657 = vsel %vm3481, %v3458, 0
  %v3660 = vsel %vm3481, %v3459, 0
  %v3663 = vsel %vm3481, %v3460, 0
  %v3666 = vsel %vm3481, %v3461, 0
  %v3669 = vsel %vm3481, %v3462, 0
  %v3672 = vsel %vm3481, %v3463, 0
  %v3675 = vsel %vm3481, %v3464, 0
  %v3678 = vsel %vm3481, %v3465, 0
  %v3681 = vsel %vm3481, %v3466, 0
  %v3684 = vsel %vm3481, %v3467, 0
  %v3687 = vsel %vm3481, %v3468, 0
  %v3690 = vsel %vm3481, %v3469, 0
  %v3693 = vsel %vm3481, %v3470, 0
  %v3696 = vsel %vm3481, %v3471, 0
  %v3699 = vsel %vm3481, %v3472, 0
  %v3702 = vsel %vm3481, %v3473, 0
  %v3705 = vsel %vm3481, %v3474, 0
  %v3708 = vsel %vm3481, %v3475, 0
  %v3711 = vsel %vm3481, %v3476, 0
  %v3714 = vsel %vm3481, %v3477, 0
  %v3717 = vsel %vm3481, %v3478, 0
  %v3720 = vsel %vm3481, %v3479, 0
  %v3723 = vsel %vm3481, %v3480, 0
  %3725 = vmatprep.subr.mxu0 0.0
  %3726 = vmatpush1.msra.mxu0 %v3312
  %3727 = vmatprep.subr.mxu0 0.0
  %3728 = vmatpush1.msra.mxu0 %v3313
  %3729 = vmatprep.subr.mxu0 0.0
  %3730 = vmatpush1.msra.mxu0 %v3314
  %3731 = vmatprep.subr.mxu0 0.0
  %3732 = vmatpush1.msra.mxu0 %v3315
  %3733 = vmatprep.subr.mxu0 0.0
  %3734 = vmatpush1.msra.mxu0 %v3316
  %3735 = vmatprep.subr.mxu0 0.0
  %3736 = vmatpush1.msra.mxu0 %v3317
  %3737 = vmatprep.subr.mxu0 0.0
  %3738 = vmatpush1.msra.mxu0 %v3318
  %3739 = vmatprep.subr.mxu0 0.0
  %3740 = vmatpush1.msra.mxu0 0.0
  %3741 = vmatprep.subr.mxu0 0.0
  %3742 = vmatpush1.msra.mxu0 0.0
  %3743 = vmatprep.subr.mxu0 0.0
  %3744 = vmatpush1.msra.mxu0 0.0
  %3745 = vmatprep.subr.mxu0 0.0
  %3746 = vmatpush1.msra.mxu0 0.0
  %3747 = vmatprep.subr.mxu0 0.0
  %3748 = vmatpush1.msra.mxu0 0.0
  %3749 = vmatprep.subr.mxu0 0.0
  %3750 = vmatpush1.msra.mxu0 0.0
  %3751 = vmatprep.subr.mxu0 0.0
  %3752 = vmatpush1.msra.mxu0 0.0
  %3753 = vmatprep.subr.mxu0 0.0
  %3754 = vmatpush1.msra.mxu0 0.0
  %3755 = vmatprep.subr.mxu0 0.0
  %3756 = vmatpush1.msra.mxu0 0.0
  %3757 = vmatprep.subr.mxu0 0.0
  %3758 = vmatpush1.msra.mxu0 0.0
  %3759 = vmatprep.subr.mxu0 0.0
  %3760 = vmatpush1.msra.mxu0 0.0
  %3761 = vmatprep.subr.mxu0 0.0
  %3762 = vmatpush1.msra.mxu0 0.0
  %3763 = vmatprep.subr.mxu0 0.0
  %3764 = vmatpush1.msra.mxu0 0.0
  %3765 = vmatprep.subr.mxu0 0.0
  %3766 = vmatpush1.msra.mxu0 0.0
  %3767 = vmatprep.subr.mxu0 0.0
  %3768 = vmatpush1.msra.mxu0 0.0
  %3769 = vmatprep.subr.mxu0 0.0
  %3770 = vmatpush1.msra.mxu0 0.0
  %3771 = vmatprep.subr.mxu0 0.0
  %3772 = vmatpush1.msra.mxu0 0.0
  %3773 = vmatprep.subr.mxu0 0.0
  %3774 = vmatpush1.msra.mxu0 0.0
  %3775 = vmatprep.subr.mxu0 0.0
  %3776 = vmatpush1.msra.mxu0 0.0
  %3777 = vmatprep.subr.mxu0 0.0
  %3778 = vmatpush1.msra.mxu0 0.0
  %3779 = vmatprep.subr.mxu0 0.0
  %3780 = vmatpush1.msra.mxu0 0.0
  %3781 = vmatprep.subr.mxu0 0.0
  %3782 = vmatpush1.msra.mxu0 0.0
  %3783 = vmatprep.subr.mxu0 0.0
  %3784 = vmatpush1.msra.mxu0 0.0
  %3785 = vmatprep.subr.mxu0 0.0
  %3786 = vmatpush1.msra.mxu0 0.0
  %3787 = vmatprep.subr.mxu0 0.0
  %3788 = vmatpush1.msra.mxu0 0.0
  %3789 = vmatprep.mubr.f32.mxu0 0.0
  %3790 = vmatmul.mubr.f32.gmra.mrb[0].mxu0 %v3483
  %v3791 = vpop.f32.mrb[0].mxu0
  %v3792 = vadd.f32 0.0, %v3791
  %v3793 = vpop.f32.mrb[0].mxu0
  %3794 = vmatprep.mubr.f32.mxu0 0.0
  %3795 = vmatmul.mubr.f32.gmra.mrb[0].mxu0 %v3486
  %v3796 = vpop.f32.mrb[0].mxu0
  %v3797 = vadd.f32 0.0, %v3796
  %v3798 = vpop.f32.mrb[0].mxu0
  %3799 = vmatprep.mubr.f32.mxu0 0.0
  %3800 = vmatmul.mubr.f32.gmra.mrb[0].mxu0 %v3489
  %v3801 = vpop.f32.mrb[0].mxu0
  %v3802 = vadd.f32 0.0, %v3801
  %v3803 = vpop.f32.mrb[0].mxu0
  %3804 = vmatprep.mubr.f32.mxu0 0.0
  %3805 = vmatmul.mubr.f32.gmra.mrb[0].mxu0 %v3492
  %v3806 = vpop.f32.mrb[0].mxu0
  %v3807 = vadd.f32 0.0, %v3806
  %v3808 = vpop.f32.mrb[0].mxu0
  %3809 = vmatprep.mubr.f32.mxu0 0.0
  %3810 = vmatmul.mubr.f32.gmra.mrb[0].mxu0 %v3495
  %v3811 = vpop.f32.mrb[0].mxu0
  %v3812 = vadd.f32 0.0, %v3811
  %v3813 = vpop.f32.mrb[0].mxu0
  %3814 = vmatprep.mubr.f32.mxu0 0.0
  %3815 = vmatmul.mubr.f32.gmra.mrb[0].mxu0 %v3498
  %v3816 = vpop.f32.mrb[0].mxu0
  %v3817 = vadd.f32 0.0, %v3816
  %v3818 = vpop.f32.mrb[0].mxu0
  %3819 = vmatprep.mubr.f32.mxu0 0.0
  %3820 = vmatmul.mubr.f32.gmra.mrb[0].mxu0 %v3501
  %v3821 = vpop.f32.mrb[0].mxu0
  %v3822 = vadd.f32 0.0, %v3821
  %v3823 = vpop.f32.mrb[0].mxu0
  %3824 = vmatprep.mubr.f32.mxu0 0.0
  %3825 = vmatmul.mubr.f32.gmra.mrb[0].mxu0 %v3504
  %v3826 = vpop.f32.mrb[0].mxu0
  %v3827 = vadd.f32 0.0, %v3826
  %v3828 = vpop.f32.mrb[0].mxu0
  %3829 = vmatprep.mubr.f32.mxu0 0.0
  %3830 = vmatmul.mubr.f32.gmra.mrb[0].mxu0 %v3507
  %v3831 = vpop.f32.mrb[0].mxu0
  %v3832 = vadd.f32 0.0, %v3831
  %v3833 = vpop.f32.mrb[0].mxu0
  %3834 = vmatprep.mubr.f32.mxu0 0.0
  %3835 = vmatmul.mubr.f32.gmra.mrb[0].mxu0 %v3510
  %v3836 = vpop.f32.mrb[0].mxu0
  %v3837 = vadd.f32 0.0, %v3836
  %v3838 = vpop.f32.mrb[0].mxu0
  %3839 = vmatprep.mubr.f32.mxu0 0.0
  %3840 = vmatmul.mubr.f32.gmra.mrb[0].mxu0 %v3513
  %v3841 = vpop.f32.mrb[0].mxu0
  %v3842 = vadd.f32 0.0, %v3841
  %v3843 = vpop.f32.mrb[0].mxu0
  %3844 = vmatprep.mubr.f32.mxu0 0.0
  %3845 = vmatmul.mubr.f32.gmra.mrb[0].mxu0 %v3516
  %v3846 = vpop.f32.mrb[0].mxu0
  %v3847 = vadd.f32 0.0, %v3846
  %v3848 = vpop.f32.mrb[0].mxu0
  %3849 = vmatprep.mubr.f32.mxu0 0.0
  %3850 = vmatmul.mubr.f32.gmra.mrb[0].mxu0 %v3519
  %v3851 = vpop.f32.mrb[0].mxu0
  %v3852 = vadd.f32 0.0, %v3851
  %v3853 = vpop.f32.mrb[0].mxu0
  %3854 = vmatprep.mubr.f32.mxu0 0.0
  %3855 = vmatmul.mubr.f32.gmra.mrb[0].mxu0 %v3522
  %v3856 = vpop.f32.mrb[0].mxu0
  %v3857 = vadd.f32 0.0, %v3856
  %v3858 = vpop.f32.mrb[0].mxu0
  %3859 = vmatprep.mubr.f32.mxu0 0.0
  %3860 = vmatmul.mubr.f32.gmra.mrb[0].mxu0 %v3525
  %v3861 = vpop.f32.mrb[0].mxu0
  %v3862 = vadd.f32 0.0, %v3861
  %v3863 = vpop.f32.mrb[0].mxu0
  %3864 = vmatprep.mubr.f32.mxu0 0.0
  %3865 = vmatmul.mubr.f32.gmra.mrb[0].mxu0 %v3528
  %v3866 = vpop.f32.mrb[0].mxu0
  %v3867 = vadd.f32 0.0, %v3866
  %v3868 = vpop.f32.mrb[0].mxu0
  %3869 = vmatprep.mubr.f32.mxu0 0.0
  %3870 = vmatmul.mubr.f32.gmra.mrb[0].mxu0 %v3531
  %v3871 = vpop.f32.mrb[0].mxu0
  %v3872 = vadd.f32 0.0, %v3871
  %v3873 = vpop.f32.mrb[0].mxu0
  %3874 = vmatprep.mubr.f32.mxu0 0.0
  %3875 = vmatmul.mubr.f32.gmra.mrb[0].mxu0 %v3534
  %v3876 = vpop.f32.mrb[0].mxu0
  %v3877 = vadd.f32 0.0, %v3876
  %v3878 = vpop.f32.mrb[0].mxu0
  %3879 = vmatprep.mubr.f32.mxu0 0.0
  %3880 = vmatmul.mubr.f32.gmra.mrb[0].mxu0 %v3537
  %v3881 = vpop.f32.mrb[0].mxu0
  %v3882 = vadd.f32 0.0, %v3881
  %v3883 = vpop.f32.mrb[0].mxu0
  %3884 = vmatprep.mubr.f32.mxu0 0.0
  %3885 = vmatmul.mubr.f32.gmra.mrb[0].mxu0 %v3540
  %v3886 = vpop.f32.mrb[0].mxu0
  %v3887 = vadd.f32 0.0, %v3886
  %v3888 = vpop.f32.mrb[0].mxu0
  %3889 = vmatprep.mubr.f32.mxu0 0.0
  %3890 = vmatmul.mubr.f32.gmra.mrb[0].mxu0 %v3543
  %v3891 = vpop.f32.mrb[0].mxu0
  %v3892 = vadd.f32 0.0, %v3891
  %v3893 = vpop.f32.mrb[0].mxu0
  %3894 = vmatprep.mubr.f32.mxu0 0.0
  %3895 = vmatmul.mubr.f32.gmra.mrb[0].mxu0 %v3546
  %v3896 = vpop.f32.mrb[0].mxu0
  %v3897 = vadd.f32 0.0, %v3896
  %v3898 = vpop.f32.mrb[0].mxu0
  %3899 = vmatprep.mubr.f32.mxu0 0.0
  %3900 = vmatmul.mubr.f32.gmra.mrb[0].mxu0 %v3549
  %v3901 = vpop.f32.mrb[0].mxu0
  %v3902 = vadd.f32 0.0, %v3901
  %v3903 = vpop.f32.mrb[0].mxu0
  %3904 = vmatprep.mubr.f32.mxu0 0.0
  %3905 = vmatmul.mubr.f32.gmra.mrb[0].mxu0 %v3552
  %v3906 = vpop.f32.mrb[0].mxu0
  %v3907 = vadd.f32 0.0, %v3906
  %v3908 = vpop.f32.mrb[0].mxu0
  %3909 = vmatprep.mubr.f32.mxu0 0.0
  %3910 = vmatmul.mubr.f32.gmra.mrb[0].mxu0 %v3555
  %v3911 = vpop.f32.mrb[0].mxu0
  %v3912 = vadd.f32 0.0, %v3911
  %v3913 = vpop.f32.mrb[0].mxu0
  %3914 = vmatprep.mubr.f32.mxu0 0.0
  %3915 = vmatmul.mubr.f32.gmra.mrb[0].mxu0 %v3558
  %v3916 = vpop.f32.mrb[0].mxu0
  %v3917 = vadd.f32 0.0, %v3916
  %v3918 = vpop.f32.mrb[0].mxu0
  %3919 = vmatprep.mubr.f32.mxu0 0.0
  %3920 = vmatmul.mubr.f32.gmra.mrb[0].mxu0 %v3561
  %v3921 = vpop.f32.mrb[0].mxu0
  %v3922 = vadd.f32 0.0, %v3921
  %v3923 = vpop.f32.mrb[0].mxu0
  %3924 = vmatprep.mubr.f32.mxu0 0.0
  %3925 = vmatmul.mubr.f32.gmra.mrb[0].mxu0 %v3564
  %v3926 = vpop.f32.mrb[0].mxu0
  %v3927 = vadd.f32 0.0, %v3926
  %v3928 = vpop.f32.mrb[0].mxu0
  %3929 = vmatprep.mubr.f32.mxu0 0.0
  %3930 = vmatmul.mubr.f32.gmra.mrb[0].mxu0 %v3567
  %v3931 = vpop.f32.mrb[0].mxu0
  %v3932 = vadd.f32 0.0, %v3931
  %v3933 = vpop.f32.mrb[0].mxu0
  %3934 = vmatprep.mubr.f32.mxu0 0.0
  %3935 = vmatmul.mubr.f32.gmra.mrb[0].mxu0 %v3570
  %v3936 = vpop.f32.mrb[0].mxu0
  %v3937 = vadd.f32 0.0, %v3936
  %v3938 = vpop.f32.mrb[0].mxu0
  %3939 = vmatprep.mubr.f32.mxu0 0.0
  %3940 = vmatmul.mubr.f32.gmra.mrb[0].mxu0 %v3573
  %v3941 = vpop.f32.mrb[0].mxu0
  %v3942 = vadd.f32 0.0, %v3941
  %v3943 = vpop.f32.mrb[0].mxu0
  %3944 = vmatprep.mubr.f32.mxu0 0.0
  %3945 = vmatmul.mubr.f32.gmra.mrb[0].mxu0 %v3576
  %v3946 = vpop.f32.mrb[0].mxu0
  %v3947 = vadd.f32 0.0, %v3946
  %v3948 = vpop.f32.mrb[0].mxu0
  %3949 = vmatprep.mubr.f32.mxu0 0.0
  %3950 = vmatmul.mubr.f32.gmra.mrb[0].mxu0 %v3579
  %v3951 = vpop.f32.mrb[0].mxu0
  %v3952 = vadd.f32 0.0, %v3951
  %v3953 = vpop.f32.mrb[0].mxu0
  %3954 = vmatprep.mubr.f32.mxu0 0.0
  %3955 = vmatmul.mubr.f32.gmra.mrb[0].mxu0 %v3582
  %v3956 = vpop.f32.mrb[0].mxu0
  %v3957 = vadd.f32 0.0, %v3956
  %v3958 = vpop.f32.mrb[0].mxu0
  %3959 = vmatprep.mubr.f32.mxu0 0.0
  %3960 = vmatmul.mubr.f32.gmra.mrb[0].mxu0 %v3585
  %v3961 = vpop.f32.mrb[0].mxu0
  %v3962 = vadd.f32 0.0, %v3961
  %v3963 = vpop.f32.mrb[0].mxu0
  %3964 = vmatprep.mubr.f32.mxu0 0.0
  %3965 = vmatmul.mubr.f32.gmra.mrb[0].mxu0 %v3588
  %v3966 = vpop.f32.mrb[0].mxu0
  %v3967 = vadd.f32 0.0, %v3966
  %v3968 = vpop.f32.mrb[0].mxu0
  %3969 = vmatprep.mubr.f32.mxu0 0.0
  %3970 = vmatmul.mubr.f32.gmra.mrb[0].mxu0 %v3591
  %v3971 = vpop.f32.mrb[0].mxu0
  %v3972 = vadd.f32 0.0, %v3971
  %v3973 = vpop.f32.mrb[0].mxu0
  %3974 = vmatprep.mubr.f32.mxu0 0.0
  %3975 = vmatmul.mubr.f32.gmra.mrb[0].mxu0 %v3594
  %v3976 = vpop.f32.mrb[0].mxu0
  %v3977 = vadd.f32 0.0, %v3976
  %v3978 = vpop.f32.mrb[0].mxu0
  %3979 = vmatprep.mubr.f32.mxu0 0.0
  %3980 = vmatmul.mubr.f32.gmra.mrb[0].mxu0 %v3597
  %v3981 = vpop.f32.mrb[0].mxu0
  %v3982 = vadd.f32 0.0, %v3981
  %v3983 = vpop.f32.mrb[0].mxu0
  %3984 = vmatprep.mubr.f32.mxu0 0.0
  %3985 = vmatmul.mubr.f32.gmra.mrb[0].mxu0 %v3600
  %v3986 = vpop.f32.mrb[0].mxu0
  %v3987 = vadd.f32 0.0, %v3986
  %v3988 = vpop.f32.mrb[0].mxu0
  %3989 = vmatprep.mubr.f32.mxu0 0.0
  %3990 = vmatmul.mubr.f32.gmra.mrb[0].mxu0 %v3603
  %v3991 = vpop.f32.mrb[0].mxu0
  %v3992 = vadd.f32 0.0, %v3991
  %v3993 = vpop.f32.mrb[0].mxu0
  %3994 = vmatprep.mubr.f32.mxu0 0.0
  %3995 = vmatmul.mubr.f32.gmra.mrb[0].mxu0 %v3606
  %v3996 = vpop.f32.mrb[0].mxu0
  %v3997 = vadd.f32 0.0, %v3996
  %v3998 = vpop.f32.mrb[0].mxu0
  %3999 = vmatprep.mubr.f32.mxu0 0.0
  %4000 = vmatmul.mubr.f32.gmra.mrb[0].mxu0 %v3609
  %v4001 = vpop.f32.mrb[0].mxu0
  %v4002 = vadd.f32 0.0, %v4001
  %v4003 = vpop.f32.mrb[0].mxu0
  %4004 = vmatprep.mubr.f32.mxu0 0.0
  %4005 = vmatmul.mubr.f32.gmra.mrb[0].mxu0 %v3612
  %v4006 = vpop.f32.mrb[0].mxu0
  %v4007 = vadd.f32 0.0, %v4006
  %v4008 = vpop.f32.mrb[0].mxu0
  %4009 = vmatprep.mubr.f32.mxu0 0.0
  %4010 = vmatmul.mubr.f32.gmra.mrb[0].mxu0 %v3615
  %v4011 = vpop.f32.mrb[0].mxu0
  %v4012 = vadd.f32 0.0, %v4011
  %v4013 = vpop.f32.mrb[0].mxu0
  %4014 = vmatprep.mubr.f32.mxu0 0.0
  %4015 = vmatmul.mubr.f32.gmra.mrb[0].mxu0 %v3618
  %v4016 = vpop.f32.mrb[0].mxu0
  %v4017 = vadd.f32 0.0, %v4016
  %v4018 = vpop.f32.mrb[0].mxu0
  %4019 = vmatprep.mubr.f32.mxu0 0.0
  %4020 = vmatmul.mubr.f32.gmra.mrb[0].mxu0 %v3621
  %v4021 = vpop.f32.mrb[0].mxu0
  %v4022 = vadd.f32 0.0, %v4021
  %v4023 = vpop.f32.mrb[0].mxu0
  %4024 = vmatprep.mubr.f32.mxu0 0.0
  %4025 = vmatmul.mubr.f32.gmra.mrb[0].mxu0 %v3624
  %v4026 = vpop.f32.mrb[0].mxu0
  %v4027 = vadd.f32 0.0, %v4026
  %v4028 = vpop.f32.mrb[0].mxu0
  %4029 = vmatprep.mubr.f32.mxu0 0.0
  %4030 = vmatmul.mubr.f32.gmra.mrb[0].mxu0 %v3627
  %v4031 = vpop.f32.mrb[0].mxu0
  %v4032 = vadd.f32 0.0, %v4031
  %v4033 = vpop.f32.mrb[0].mxu0
  %4034 = vmatprep.mubr.f32.mxu0 0.0
  %4035 = vmatmul.mubr.f32.gmra.mrb[0].mxu0 %v3630
  %v4036 = vpop.f32.mrb[0].mxu0
  %v4037 = vadd.f32 0.0, %v4036
  %v4038 = vpop.f32.mrb[0].mxu0
  %4039 = vmatprep.mubr.f32.mxu0 0.0
  %4040 = vmatmul.mubr.f32.gmra.mrb[0].mxu0 %v3633
  %v4041 = vpop.f32.mrb[0].mxu0
  %v4042 = vadd.f32 0.0, %v4041
  %v4043 = vpop.f32.mrb[0].mxu0
  %4044 = vmatprep.mubr.f32.mxu0 0.0
  %4045 = vmatmul.mubr.f32.gmra.mrb[0].mxu0 %v3636
  %v4046 = vpop.f32.mrb[0].mxu0
  %v4047 = vadd.f32 0.0, %v4046
  %v4048 = vpop.f32.mrb[0].mxu0
  %4049 = vmatprep.mubr.f32.mxu0 0.0
  %4050 = vmatmul.mubr.f32.gmra.mrb[0].mxu0 %v3639
  %v4051 = vpop.f32.mrb[0].mxu0
  %v4052 = vadd.f32 0.0, %v4051
  %v4053 = vpop.f32.mrb[0].mxu0
  %4054 = vmatprep.mubr.f32.mxu0 0.0
  %4055 = vmatmul.mubr.f32.gmra.mrb[0].mxu0 %v3642
  %v4056 = vpop.f32.mrb[0].mxu0
  %v4057 = vadd.f32 0.0, %v4056
  %v4058 = vpop.f32.mrb[0].mxu0
  %4059 = vmatprep.mubr.f32.mxu0 0.0
  %4060 = vmatmul.mubr.f32.gmra.mrb[0].mxu0 %v3645
  %v4061 = vpop.f32.mrb[0].mxu0
  %v4062 = vadd.f32 0.0, %v4061
  %v4063 = vpop.f32.mrb[0].mxu0
  %4064 = vmatprep.mubr.f32.mxu0 0.0
  %4065 = vmatmul.mubr.f32.gmra.mrb[0].mxu0 %v3648
  %v4066 = vpop.f32.mrb[0].mxu0
  %v4067 = vadd.f32 0.0, %v4066
  %v4068 = vpop.f32.mrb[0].mxu0
  %4069 = vmatprep.mubr.f32.mxu0 0.0
  %4070 = vmatmul.mubr.f32.gmra.mrb[0].mxu0 %v3651
  %v4071 = vpop.f32.mrb[0].mxu0
  %v4072 = vadd.f32 0.0, %v4071
  %v4073 = vpop.f32.mrb[0].mxu0
  %4074 = vmatprep.mubr.f32.mxu0 0.0
  %4075 = vmatmul.mubr.f32.gmra.mrb[0].mxu0 %v3654
  %v4076 = vpop.f32.mrb[0].mxu0
  %v4077 = vadd.f32 0.0, %v4076
  %v4078 = vpop.f32.mrb[0].mxu0
  %4079 = vmatprep.mubr.f32.mxu0 0.0
  %4080 = vmatmul.mubr.f32.gmra.mrb[0].mxu0 %v3657
  %v4081 = vpop.f32.mrb[0].mxu0
  %v4082 = vadd.f32 0.0, %v4081
  %v4083 = vpop.f32.mrb[0].mxu0
  %4084 = vmatprep.mubr.f32.mxu0 0.0
  %4085 = vmatmul.mubr.f32.gmra.mrb[0].mxu0 %v3660
  %v4086 = vpop.f32.mrb[0].mxu0
  %v4087 = vadd.f32 0.0, %v4086
  %v4088 = vpop.f32.mrb[0].mxu0
  %4089 = vmatprep.mubr.f32.mxu0 0.0
  %4090 = vmatmul.mubr.f32.gmra.mrb[0].mxu0 %v3663
  %v4091 = vpop.f32.mrb[0].mxu0
  %v4092 = vadd.f32 0.0, %v4091
  %v4093 = vpop.f32.mrb[0].mxu0
  %4094 = vmatprep.mubr.f32.mxu0 0.0
  %4095 = vmatmul.mubr.f32.gmra.mrb[0].mxu0 %v3666
  %v4096 = vpop.f32.mrb[0].mxu0
  %v4097 = vadd.f32 0.0, %v4096
  %v4098 = vpop.f32.mrb[0].mxu0
  %4099 = vmatprep.mubr.f32.mxu0 0.0
  %4100 = vmatmul.mubr.f32.gmra.mrb[0].mxu0 %v3669
  %v4101 = vpop.f32.mrb[0].mxu0
  %v4102 = vadd.f32 0.0, %v4101
  %v4103 = vpop.f32.mrb[0].mxu0
  %4104 = vmatprep.mubr.f32.mxu0 0.0
  %4105 = vmatmul.mubr.f32.gmra.mrb[0].mxu0 %v3672
  %v4106 = vpop.f32.mrb[0].mxu0
  %v4107 = vadd.f32 0.0, %v4106
  %v4108 = vpop.f32.mrb[0].mxu0
  %4109 = vmatprep.mubr.f32.mxu0 0.0
  %4110 = vmatmul.mubr.f32.gmra.mrb[0].mxu0 %v3675
  %v4111 = vpop.f32.mrb[0].mxu0
  %v4112 = vadd.f32 0.0, %v4111
  %v4113 = vpop.f32.mrb[0].mxu0
  %4114 = vmatprep.mubr.f32.mxu0 0.0
  %4115 = vmatmul.mubr.f32.gmra.mrb[0].mxu0 %v3678
  %v4116 = vpop.f32.mrb[0].mxu0
  %v4117 = vadd.f32 0.0, %v4116
  %v4118 = vpop.f32.mrb[0].mxu0
  %4119 = vmatprep.mubr.f32.mxu0 0.0
  %4120 = vmatmul.mubr.f32.gmra.mrb[0].mxu0 %v3681
  %v4121 = vpop.f32.mrb[0].mxu0
  %v4122 = vadd.f32 0.0, %v4121
  %v4123 = vpop.f32.mrb[0].mxu0
  %4124 = vmatprep.mubr.f32.mxu0 0.0
  %4125 = vmatmul.mubr.f32.gmra.mrb[0].mxu0 %v3684
  %v4126 = vpop.f32.mrb[0].mxu0
  %v4127 = vadd.f32 0.0, %v4126
  %v4128 = vpop.f32.mrb[0].mxu0
  %4129 = vmatprep.mubr.f32.mxu0 0.0
  %4130 = vmatmul.mubr.f32.gmra.mrb[0].mxu0 %v3687
  %v4131 = vpop.f32.mrb[0].mxu0
  %v4132 = vadd.f32 0.0, %v4131
  %v4133 = vpop.f32.mrb[0].mxu0
  %4134 = vmatprep.mubr.f32.mxu0 0.0
  %4135 = vmatmul.mubr.f32.gmra.mrb[0].mxu0 %v3690
  %v4136 = vpop.f32.mrb[0].mxu0
  %v4137 = vadd.f32 0.0, %v4136
  %v4138 = vpop.f32.mrb[0].mxu0
  %4139 = vmatprep.mubr.f32.mxu0 0.0
  %4140 = vmatmul.mubr.f32.gmra.mrb[0].mxu0 %v3693
  %v4141 = vpop.f32.mrb[0].mxu0
  %v4142 = vadd.f32 0.0, %v4141
  %v4143 = vpop.f32.mrb[0].mxu0
  %4144 = vmatprep.mubr.f32.mxu0 0.0
  %4145 = vmatmul.mubr.f32.gmra.mrb[0].mxu0 %v3696
  %v4146 = vpop.f32.mrb[0].mxu0
  %v4147 = vadd.f32 0.0, %v4146
  %v4148 = vpop.f32.mrb[0].mxu0
  %4149 = vmatprep.mubr.f32.mxu0 0.0
  %4150 = vmatmul.mubr.f32.gmra.mrb[0].mxu0 %v3699
  %v4151 = vpop.f32.mrb[0].mxu0
  %v4152 = vadd.f32 0.0, %v4151
  %v4153 = vpop.f32.mrb[0].mxu0
  %4154 = vmatprep.mubr.f32.mxu0 0.0
  %4155 = vmatmul.mubr.f32.gmra.mrb[0].mxu0 %v3702
  %v4156 = vpop.f32.mrb[0].mxu0
  %v4157 = vadd.f32 0.0, %v4156
  %v4158 = vpop.f32.mrb[0].mxu0
  %4159 = vmatprep.mubr.f32.mxu0 0.0
  %4160 = vmatmul.mubr.f32.gmra.mrb[0].mxu0 %v3705
  %v4161 = vpop.f32.mrb[0].mxu0
  %v4162 = vadd.f32 0.0, %v4161
  %v4163 = vpop.f32.mrb[0].mxu0
  %4164 = vmatprep.mubr.f32.mxu0 0.0
  %4165 = vmatmul.mubr.f32.gmra.mrb[0].mxu0 %v3708
  %v4166 = vpop.f32.mrb[0].mxu0
  %v4167 = vadd.f32 0.0, %v4166
  %v4168 = vpop.f32.mrb[0].mxu0
  %4169 = vmatprep.mubr.f32.mxu0 0.0
  %4170 = vmatmul.mubr.f32.gmra.mrb[0].mxu0 %v3711
  %v4171 = vpop.f32.mrb[0].mxu0
  %v4172 = vadd.f32 0.0, %v4171
  %v4173 = vpop.f32.mrb[0].mxu0
  %4174 = vmatprep.mubr.f32.mxu0 0.0
  %4175 = vmatmul.mubr.f32.gmra.mrb[0].mxu0 %v3714
  %v4176 = vpop.f32.mrb[0].mxu0
  %v4177 = vadd.f32 0.0, %v4176
  %v4178 = vpop.f32.mrb[0].mxu0
  %4179 = vmatprep.mubr.f32.mxu0 0.0
  %4180 = vmatmul.mubr.f32.gmra.mrb[0].mxu0 %v3717
  %v4181 = vpop.f32.mrb[0].mxu0
  %v4182 = vadd.f32 0.0, %v4181
  %v4183 = vpop.f32.mrb[0].mxu0
  %4184 = vmatprep.mubr.f32.mxu0 0.0
  %4185 = vmatmul.mubr.f32.gmra.mrb[0].mxu0 %v3720
  %v4186 = vpop.f32.mrb[0].mxu0
  %v4187 = vadd.f32 0.0, %v4186
  %v4188 = vpop.f32.mrb[0].mxu0
  %4189 = vmatprep.mubr.f32.mxu0 0.0
  %4190 = vmatmul.mubr.f32.gmra.mrb[0].mxu0 %v3723
  %v4191 = vpop.f32.mrb[0].mxu0
  %v4192 = vadd.f32 0.0, %v4191
  %v4193 = vpop.f32.mrb[0].mxu0
  %4194 = vdwg.mxu0
  %4204 = vrot.lane.b32.xlu0 %v3837, 64
  %v4205 = vpop.permute.xlu0 %4204
  %4206 = vrot.lane.b32.xlu0 %v3842, 64
  %v4207 = vpop.permute.xlu0 %4206
  %4208 = vrot.lane.b32.xlu0 %v3847, 64
  %v4209 = vpop.permute.xlu0 %4208
  %4210 = vrot.lane.b32.xlu0 %v3852, 64
  %v4211 = vpop.permute.xlu0 %4210
  %4212 = vrot.lane.b32.xlu0 %v3857, 64
  %v4213 = vpop.permute.xlu0 %4212
  %4214 = vrot.lane.b32.xlu0 %v3862, 64
  %v4215 = vpop.permute.xlu0 %4214
  %4216 = vrot.lane.b32.xlu0 %v3867, 64
  %v4217 = vpop.permute.xlu0 %4216
  %4218 = vrot.lane.b32.xlu0 %v3872, 64
  %v4219 = vpop.permute.xlu0 %4218
  %4220 = vrot.lane.b32.xlu0 %v3877, 64
  %v4221 = vpop.permute.xlu0 %4220
  %4240 = vrot.lane.b32.xlu0 %v3927, 64
  %v4241 = vpop.permute.xlu0 %4240
  %4242 = vrot.lane.b32.xlu0 %v3932, 64
  %v4243 = vpop.permute.xlu0 %4242
  %4244 = vrot.lane.b32.xlu0 %v3937, 64
  %v4245 = vpop.permute.xlu0 %4244
  %4246 = vrot.lane.b32.xlu0 %v3942, 64
  %v4247 = vpop.permute.xlu0 %4246
  %4248 = vrot.lane.b32.xlu0 %v3947, 64
  %v4249 = vpop.permute.xlu0 %4248
  %4250 = vrot.lane.b32.xlu0 %v3952, 64
  %v4251 = vpop.permute.xlu0 %4250
  %4252 = vrot.lane.b32.xlu0 %v3957, 64
  %v4253 = vpop.permute.xlu0 %4252
  %4254 = vrot.lane.b32.xlu0 %v3962, 64
  %v4255 = vpop.permute.xlu0 %4254
  %4256 = vrot.lane.b32.xlu0 %v3967, 64
  %v4257 = vpop.permute.xlu0 %4256
  %4276 = vrot.lane.b32.xlu0 %v4017, 64
  %v4277 = vpop.permute.xlu0 %4276
  %4278 = vrot.lane.b32.xlu0 %v4022, 64
  %v4279 = vpop.permute.xlu0 %4278
  %4280 = vrot.lane.b32.xlu0 %v4027, 64
  %v4281 = vpop.permute.xlu0 %4280
  %4282 = vrot.lane.b32.xlu0 %v4032, 64
  %v4283 = vpop.permute.xlu0 %4282
  %4284 = vrot.lane.b32.xlu0 %v4037, 64
  %v4285 = vpop.permute.xlu0 %4284
  %4286 = vrot.lane.b32.xlu0 %v4042, 64
  %v4287 = vpop.permute.xlu0 %4286
  %4288 = vrot.lane.b32.xlu0 %v4047, 64
  %v4289 = vpop.permute.xlu0 %4288
  %4290 = vrot.lane.b32.xlu0 %v4052, 64
  %v4291 = vpop.permute.xlu0 %4290
  %4292 = vrot.lane.b32.xlu0 %v4057, 64
  %v4293 = vpop.permute.xlu0 %4292
  %4312 = vrot.lane.b32.xlu0 %v4107, 64
  %v4313 = vpop.permute.xlu0 %4312
  %4314 = vrot.lane.b32.xlu0 %v4112, 64
  %v4315 = vpop.permute.xlu0 %4314
  %4316 = vrot.lane.b32.xlu0 %v4117, 64
  %v4317 = vpop.permute.xlu0 %4316
  %4318 = vrot.lane.b32.xlu0 %v4122, 64
  %v4319 = vpop.permute.xlu0 %4318
  %4320 = vrot.lane.b32.xlu0 %v4127, 64
  %v4321 = vpop.permute.xlu0 %4320
  %4322 = vrot.lane.b32.xlu0 %v4132, 64
  %v4323 = vpop.permute.xlu0 %4322
  %4324 = vrot.lane.b32.xlu0 %v4137, 64
  %v4325 = vpop.permute.xlu0 %4324
  %4326 = vrot.lane.b32.xlu0 %v4142, 64
  %v4327 = vpop.permute.xlu0 %4326
  %4328 = vrot.lane.b32.xlu0 %v4147, 64
  %v4329 = vpop.permute.xlu0 %4328
  %v4339 = vsel %vm2926, %v3792, %v4205
  %v4340 = vsel %vm2926, %v3797, %v4207
  %v4341 = vsel %vm2926, %v3802, %v4209
  %v4342 = vsel %vm2926, %v3807, %v4211
  %v4343 = vsel %vm2926, %v3812, %v4213
  %v4344 = vsel %vm2926, %v3817, %v4215
  %v4345 = vsel %vm2926, %v3822, %v4217
  %v4346 = vsel %vm2926, %v3827, %v4219
  %v4347 = vsel %vm2926, %v3832, %v4221
  %v4348 = vsel %vm2926, %v3882, %v4241
  %v4349 = vsel %vm2926, %v3887, %v4243
  %v4350 = vsel %vm2926, %v3892, %v4245
  %v4351 = vsel %vm2926, %v3897, %v4247
  %v4352 = vsel %vm2926, %v3902, %v4249
  %v4353 = vsel %vm2926, %v3907, %v4251
  %v4354 = vsel %vm2926, %v3912, %v4253
  %v4355 = vsel %vm2926, %v3917, %v4255
  %v4356 = vsel %vm2926, %v3922, %v4257
  %v4357 = vsel %vm2926, %v3972, %v4277
  %v4358 = vsel %vm2926, %v3977, %v4279
  %v4359 = vsel %vm2926, %v3982, %v4281
  %v4360 = vsel %vm2926, %v3987, %v4283
  %v4361 = vsel %vm2926, %v3992, %v4285
  %v4362 = vsel %vm2926, %v3997, %v4287
  %v4363 = vsel %vm2926, %v4002, %v4289
  %v4364 = vsel %vm2926, %v4007, %v4291
  %v4365 = vsel %vm2926, %v4012, %v4293
  %v4366 = vsel %vm2926, %v4062, %v4313
  %v4367 = vsel %vm2926, %v4067, %v4315
  %v4368 = vsel %vm2926, %v4072, %v4317
  %v4369 = vsel %vm2926, %v4077, %v4319
  %v4370 = vsel %vm2926, %v4082, %v4321
  %v4371 = vsel %vm2926, %v4087, %v4323
  %v4372 = vsel %vm2926, %v4092, %v4325
  %v4373 = vsel %vm2926, %v4097, %v4327
  %v4374 = vsel %vm2926, %v4102, %v4329
  %v4375 = vld [vmem:[%s7] sm:$0xff]
  %v4376 = vld [vmem:[%s7 + $0x8] sm:$0xff]
  %v4377 = vld [vmem:[%s7 + $0x10] sm:$0xff]
  %v4378 = vld [vmem:[%s7 + $0x18] sm:$0xff]
  %v4379 = vld [vmem:[%s7 + $0x20] sm:$0xff]
  %v4380 = vld [vmem:[%s7 + $0x28] sm:$0xff]
  %v4381 = vld [vmem:[%s7 + $0x30] sm:$0xff]
  %v4382 = vld [vmem:[%s7 + $0x38] sm:$0xff]
  %v4383 = vld [vmem:[%s7 + $0x40] sm:$0xff]
  %v4384 = vld [vmem:[%s7 + $0x48] sm:$0xff]
  %v4385 = vld [vmem:[%s7 + $0x50] sm:$0xff]
  %v4386 = vld [vmem:[%s7 + $0x58] sm:$0xff]
  %v4387 = vld [vmem:[%s7 + $0x60] sm:$0xff]
  %v4388 = vld [vmem:[%s7 + $0x68] sm:$0xff]
  %v4389 = vld [vmem:[%s7 + $0x70] sm:$0xff]
  %v4390 = vld [vmem:[%s7 + $0x78] sm:$0xff]
  %v4391 = vld [vmem:[%s7 + $0x80] sm:$0xff]
  %v4392 = vld [vmem:[%s7 + $0x88] sm:$0xff]
  %v4393 = vld [vmem:[%s7 + $0x90] sm:$0xff]
  %v4394 = vld [vmem:[%s7 + $0x98] sm:$0xff]
  %v4395 = vld [vmem:[%s7 + $0xa0] sm:$0xff]
  %v4396 = vld [vmem:[%s7 + $0xa8] sm:$0xff]
  %v4397 = vld [vmem:[%s7 + $0xb0] sm:$0xff]
  %v4398 = vld [vmem:[%s7 + $0xb8] sm:$0xff]
  %v4399 = vld [vmem:[%s7 + $0xc0] sm:$0xff]
  %v4400 = vld [vmem:[%s7 + $0xc8] sm:$0xff]
  %v4401 = vld [vmem:[%s7 + $0xd0] sm:$0xff]
  %v4402 = vld [vmem:[%s7 + $0xd8] sm:$0xff]
  %v4403 = vld [vmem:[%s7 + $0xe0] sm:$0xff]
  %v4404 = vld [vmem:[%s7 + $0xe8] sm:$0xff]
  %v4405 = vld [vmem:[%s7 + $0xf0] sm:$0xff]
  %v4406 = vld [vmem:[%s7 + $0xf8] sm:$0xff]
  %v4407 = vld [vmem:[%s7 + $0x100] sm:$0xff]
  %v4408 = vld [vmem:[%s7 + $0x108] sm:$0xff]
  %v4409 = vld [vmem:[%s7 + $0x110] sm:$0xff]
  %v4410 = vld [vmem:[%s7 + $0x118] sm:$0xff]
  %v4411 = vld [vmem:[%s7 + $0x120] sm:$0xff]
  %v4412 = vld [vmem:[%s7 + $0x128] sm:$0xff]
  %v4413 = vld [vmem:[%s7 + $0x130] sm:$0xff]
  %v4414 = vld [vmem:[%s7 + $0x138] sm:$0xff]
  %v4415 = vld [vmem:[%s7 + $0x140] sm:$0xff]
  %v4416 = vld [vmem:[%s7 + $0x148] sm:$0xff]
  %v4417 = vld [vmem:[%s7 + $0x150] sm:$0xff]
  %v4418 = vld [vmem:[%s7 + $0x158] sm:$0xff]
  %v4419 = vld [vmem:[%s7 + $0x160] sm:$0xff]
  %v4420 = vld [vmem:[%s7 + $0x168] sm:$0xff]
  %v4421 = vld [vmem:[%s7 + $0x170] sm:$0xff]
  %v4422 = vld [vmem:[%s7 + $0x178] sm:$0xff]
  %v4423 = vld [vmem:[%s7 + $0x180] sm:$0xff]
  %v4424 = vld [vmem:[%s7 + $0x188] sm:$0xff]
  %v4425 = vld [vmem:[%s7 + $0x190] sm:$0xff]
  %v4426 = vld [vmem:[%s7 + $0x198] sm:$0xff]
  %v4427 = vld [vmem:[%s7 + $0x1a0] sm:$0xff]
  %v4428 = vld [vmem:[%s7 + $0x1a8] sm:$0xff]
  %v4429 = vld [vmem:[%s7 + $0x1b0] sm:$0xff]
  %v4430 = vld [vmem:[%s7 + $0x1b8] sm:$0xff]
  %v4431 = vld [vmem:[%s7 + $0x1c0] sm:$0xff]
  %v4432 = vld [vmem:[%s7 + $0x1c8] sm:$0xff]
  %v4433 = vld [vmem:[%s7 + $0x1d0] sm:$0xff]
  %v4434 = vld [vmem:[%s7 + $0x1d8] sm:$0xff]
  %v4435 = vld [vmem:[%s7 + $0x1e0] sm:$0xff]
  %v4436 = vld [vmem:[%s7 + $0x1e8] sm:$0xff]
  %v4437 = vld [vmem:[%s7 + $0x1f0] sm:$0xff]
  %v4438 = vld [vmem:[%s7 + $0x1f8] sm:$0xff]
  %v4439 = vld [vmem:[%s7 + $0x200] sm:$0xff]
  %v4440 = vld [vmem:[%s7 + $0x208] sm:$0xff]
  %v4441 = vld [vmem:[%s7 + $0x210] sm:$0xff]
  %v4442 = vld [vmem:[%s7 + $0x218] sm:$0xff]
  %v4443 = vld [vmem:[%s7 + $0x220] sm:$0xff]
  %v4444 = vld [vmem:[%s7 + $0x228] sm:$0xff]
  %v4445 = vld [vmem:[%s7 + $0x230] sm:$0xff]
  %v4446 = vld [vmem:[%s7 + $0x238] sm:$0xff]
  %v4447 = vld [vmem:[%s8] sm:$0x1]
  %v4449 = vlaneseq
  %v4450 = vshrl.u32 %v4449, 7
  %v4451 = vsub.s32 0, %v4450
  %v4452 = vrot.slane %v4447, %v4451
  %v4455 = vsel %vm2926, %v4152, 0
  %v4458 = vsel %vm2926, %v4157, 0
  %v4461 = vsel %vm2926, %v4162, 0
  %v4464 = vsel %vm2926, %v4167, 0
  %v4467 = vsel %vm2926, %v4172, 0
  %v4470 = vsel %vm2926, %v4177, 0
  %v4473 = vsel %vm2926, %v4182, 0
  %v4476 = vsel %vm2926, %v4187, 0
  %v4479 = vsel %vm2926, %v4192, 0
  %4481 = vmatprep.subr.mxu0 0.0
  %4482 = vmatpush1.msra.mxu0 %v4375
  %4483 = vmatprep.subr.mxu0 0.0
  %4484 = vmatpush1.msra.mxu0 %v4376
  %4485 = vmatprep.subr.mxu0 0.0
  %4486 = vmatpush1.msra.mxu0 %v4377
  %4487 = vmatprep.subr.mxu0 0.0
  %4488 = vmatpush1.msra.mxu0 %v4378
  %4489 = vmatprep.subr.mxu0 0.0
  %4490 = vmatpush1.msra.mxu0 %v4379
  %4491 = vmatprep.subr.mxu0 0.0
  %4492 = vmatpush1.msra.mxu0 %v4380
  %4493 = vmatprep.subr.mxu0 0.0
  %4494 = vmatpush1.msra.mxu0 %v4381
  %4495 = vmatprep.subr.mxu0 0.0
  %4496 = vmatpush1.msra.mxu0 %v4382
  %4497 = vmatprep.subr.mxu0 0.0
  %4498 = vmatpush1.msra.mxu0 %v4383
  %4499 = vmatprep.subr.mxu0 0.0
  %4500 = vmatpush1.msra.mxu0 %v4384
  %4501 = vmatprep.subr.mxu0 0.0
  %4502 = vmatpush1.msra.mxu0 %v4385
  %4503 = vmatprep.subr.mxu0 0.0
  %4504 = vmatpush1.msra.mxu0 %v4386
  %4505 = vmatprep.subr.mxu0 0.0
  %4506 = vmatpush1.msra.mxu0 %v4387
  %4507 = vmatprep.subr.mxu0 0.0
  %4508 = vmatpush1.msra.mxu0 %v4388
  %4509 = vmatprep.subr.mxu0 0.0
  %4510 = vmatpush1.msra.mxu0 %v4389
  %4511 = vmatprep.subr.mxu0 0.0
  %4512 = vmatpush1.msra.mxu0 %v4390
  %4513 = vmatprep.subr.mxu0 0.0
  %4514 = vmatpush1.msra.mxu0 %v4391
  %4515 = vmatprep.subr.mxu0 0.0
  %4516 = vmatpush1.msra.mxu0 %v4392
  %4517 = vmatprep.subr.mxu0 0.0
  %4518 = vmatpush1.msra.mxu0 %v4393
  %4519 = vmatprep.subr.mxu0 0.0
  %4520 = vmatpush1.msra.mxu0 %v4394
  %4521 = vmatprep.subr.mxu0 0.0
  %4522 = vmatpush1.msra.mxu0 %v4395
  %4523 = vmatprep.subr.mxu0 0.0
  %4524 = vmatpush1.msra.mxu0 %v4396
  %4525 = vmatprep.subr.mxu0 0.0
  %4526 = vmatpush1.msra.mxu0 %v4397
  %4527 = vmatprep.subr.mxu0 0.0
  %4528 = vmatpush1.msra.mxu0 %v4398
  %4529 = vmatprep.subr.mxu0 0.0
  %4530 = vmatpush1.msra.mxu0 %v4399
  %4531 = vmatprep.subr.mxu0 0.0
  %4532 = vmatpush1.msra.mxu0 %v4400
  %4533 = vmatprep.subr.mxu0 0.0
  %4534 = vmatpush1.msra.mxu0 %v4401
  %4535 = vmatprep.subr.mxu0 0.0
  %4536 = vmatpush1.msra.mxu0 %v4402
  %4537 = vmatprep.subr.mxu0 0.0
  %4538 = vmatpush1.msra.mxu0 %v4403
  %4539 = vmatprep.subr.mxu0 0.0
  %4540 = vmatpush1.msra.mxu0 %v4404
  %4541 = vmatprep.subr.mxu0 0.0
  %4542 = vmatpush1.msra.mxu0 %v4405
  %4543 = vmatprep.subr.mxu0 0.0
  %4544 = vmatpush1.msra.mxu0 %v4406
  %4545 = vmatprep.mubr.f32.mxu0 %v4348
  %4546 = vmatmul.mubr.f32.gmra.mrb[0].mxu0 %v4339
  %v4547 = vpop.f32.mrb[0].mxu0
  %v4548 = vadd.f32 %v4452, %v4547
  %v4549 = vpop.f32.mrb[0].mxu0
  %4550 = vmatprep.mubr.f32.mxu0 %v4349
  %4551 = vmatmul.mubr.f32.gmra.mrb[0].mxu0 %v4340
  %v4552 = vpop.f32.mrb[0].mxu0
  %v4553 = vadd.f32 %v4452, %v4552
  %v4554 = vpop.f32.mrb[0].mxu0
  %4555 = vmatprep.mubr.f32.mxu0 %v4350
  %4556 = vmatmul.mubr.f32.gmra.mrb[0].mxu0 %v4341
  %v4557 = vpop.f32.mrb[0].mxu0
  %v4558 = vadd.f32 %v4452, %v4557
  %v4559 = vpop.f32.mrb[0].mxu0
  %4560 = vmatprep.mubr.f32.mxu0 %v4351
  %4561 = vmatmul.mubr.f32.gmra.mrb[0].mxu0 %v4342
  %v4562 = vpop.f32.mrb[0].mxu0
  %v4563 = vadd.f32 %v4452, %v4562
  %v4564 = vpop.f32.mrb[0].mxu0
  %4565 = vmatprep.mubr.f32.mxu0 %v4352
  %4566 = vmatmul.mubr.f32.gmra.mrb[0].mxu0 %v4343
  %v4567 = vpop.f32.mrb[0].mxu0
  %v4568 = vadd.f32 %v4452, %v4567
  %v4569 = vpop.f32.mrb[0].mxu0
  %4570 = vmatprep.mubr.f32.mxu0 %v4353
  %4571 = vmatmul.mubr.f32.gmra.mrb[0].mxu0 %v4344
  %v4572 = vpop.f32.mrb[0].mxu0
  %v4573 = vadd.f32 %v4452, %v4572
  %v4574 = vpop.f32.mrb[0].mxu0
  %4575 = vmatprep.mubr.f32.mxu0 %v4354
  %4576 = vmatmul.mubr.f32.gmra.mrb[0].mxu0 %v4345
  %v4577 = vpop.f32.mrb[0].mxu0
  %v4578 = vadd.f32 %v4452, %v4577
  %v4579 = vpop.f32.mrb[0].mxu0
  %4580 = vmatprep.mubr.f32.mxu0 %v4355
  %4581 = vmatmul.mubr.f32.gmra.mrb[0].mxu0 %v4346
  %v4582 = vpop.f32.mrb[0].mxu0
  %v4583 = vadd.f32 %v4452, %v4582
  %v4584 = vpop.f32.mrb[0].mxu0
  %4585 = vmatprep.mubr.f32.mxu0 %v4356
  %4586 = vmatmul.mubr.f32.gmra.mrb[0].mxu0 %v4347
  %v4587 = vpop.f32.mrb[0].mxu0
  %v4588 = vadd.f32 %v4452, %v4587
  %v4589 = vpop.f32.mrb[0].mxu0
  %4590 = vdwg.mxu0
  %4591 = vmatprep.subr.mxu0 0.0
  %4592 = vmatpush1.msra.mxu0 %v4407
  %4593 = vmatprep.subr.mxu0 0.0
  %4594 = vmatpush1.msra.mxu0 %v4408
  %4595 = vmatprep.subr.mxu0 0.0
  %4596 = vmatpush1.msra.mxu0 %v4409
  %4597 = vmatprep.subr.mxu0 0.0
  %4598 = vmatpush1.msra.mxu0 %v4410
  %4599 = vmatprep.subr.mxu0 0.0
  %4600 = vmatpush1.msra.mxu0 %v4411
  %4601 = vmatprep.subr.mxu0 0.0
  %4602 = vmatpush1.msra.mxu0 %v4412
  %4603 = vmatprep.subr.mxu0 0.0
  %4604 = vmatpush1.msra.mxu0 %v4413
  %4605 = vmatprep.subr.mxu0 0.0
  %4606 = vmatpush1.msra.mxu0 %v4414
  %4607 = vmatprep.subr.mxu0 0.0
  %4608 = vmatpush1.msra.mxu0 %v4415
  %4609 = vmatprep.subr.mxu0 0.0
  %4610 = vmatpush1.msra.mxu0 %v4416
  %4611 = vmatprep.subr.mxu0 0.0
  %4612 = vmatpush1.msra.mxu0 %v4417
  %4613 = vmatprep.subr.mxu0 0.0
  %4614 = vmatpush1.msra.mxu0 %v4418
  %4615 = vmatprep.subr.mxu0 0.0
  %4616 = vmatpush1.msra.mxu0 %v4419
  %4617 = vmatprep.subr.mxu0 0.0
  %4618 = vmatpush1.msra.mxu0 %v4420
  %4619 = vmatprep.subr.mxu0 0.0
  %4620 = vmatpush1.msra.mxu0 %v4421
  %4621 = vmatprep.subr.mxu0 0.0
  %4622 = vmatpush1.msra.mxu0 %v4422
  %4623 = vmatprep.subr.mxu0 0.0
  %4624 = vmatpush1.msra.mxu0 %v4423
  %4625 = vmatprep.subr.mxu0 0.0
  %4626 = vmatpush1.msra.mxu0 %v4424
  %4627 = vmatprep.subr.mxu0 0.0
  %4628 = vmatpush1.msra.mxu0 %v4425
  %4629 = vmatprep.subr.mxu0 0.0
  %4630 = vmatpush1.msra.mxu0 %v4426
  %4631 = vmatprep.subr.mxu0 0.0
  %4632 = vmatpush1.msra.mxu0 %v4427
  %4633 = vmatprep.subr.mxu0 0.0
  %4634 = vmatpush1.msra.mxu0 %v4428
  %4635 = vmatprep.subr.mxu0 0.0
  %4636 = vmatpush1.msra.mxu0 %v4429
  %4637 = vmatprep.subr.mxu0 0.0
  %4638 = vmatpush1.msra.mxu0 %v4430
  %4639 = vmatprep.subr.mxu0 0.0
  %4640 = vmatpush1.msra.mxu0 %v4431
  %4641 = vmatprep.subr.mxu0 0.0
  %4642 = vmatpush1.msra.mxu0 %v4432
  %4643 = vmatprep.subr.mxu0 0.0
  %4644 = vmatpush1.msra.mxu0 %v4433
  %4645 = vmatprep.subr.mxu0 0.0
  %4646 = vmatpush1.msra.mxu0 %v4434
  %4647 = vmatprep.subr.mxu0 0.0
  %4648 = vmatpush1.msra.mxu0 %v4435
  %4649 = vmatprep.subr.mxu0 0.0
  %4650 = vmatpush1.msra.mxu0 %v4436
  %4651 = vmatprep.subr.mxu0 0.0
  %4652 = vmatpush1.msra.mxu0 %v4437
  %4653 = vmatprep.subr.mxu0 0.0
  %4654 = vmatpush1.msra.mxu0 %v4438
  %4655 = vmatprep.mubr.f32.mxu0 %v4366
  %4656 = vmatmul.mubr.f32.gmra.mrb[0].mxu0 %v4357
  %v4657 = vpop.f32.mrb[0].mxu0
  %v4658 = vadd.f32 %v4548, %v4657
  %v4659 = vpop.f32.mrb[0].mxu0
  %4660 = vmatprep.mubr.f32.mxu0 %v4367
  %4661 = vmatmul.mubr.f32.gmra.mrb[0].mxu0 %v4358
  %v4662 = vpop.f32.mrb[0].mxu0
  %v4663 = vadd.f32 %v4553, %v4662
  %v4664 = vpop.f32.mrb[0].mxu0
  %4665 = vmatprep.mubr.f32.mxu0 %v4368
  %4666 = vmatmul.mubr.f32.gmra.mrb[0].mxu0 %v4359
  %v4667 = vpop.f32.mrb[0].mxu0
  %v4668 = vadd.f32 %v4558, %v4667
  %v4669 = vpop.f32.mrb[0].mxu0
  %4670 = vmatprep.mubr.f32.mxu0 %v4369
  %4671 = vmatmul.mubr.f32.gmra.mrb[0].mxu0 %v4360
  %v4672 = vpop.f32.mrb[0].mxu0
  %v4673 = vadd.f32 %v4563, %v4672
  %v4674 = vpop.f32.mrb[0].mxu0
  %4675 = vmatprep.mubr.f32.mxu0 %v4370
  %4676 = vmatmul.mubr.f32.gmra.mrb[0].mxu0 %v4361
  %v4677 = vpop.f32.mrb[0].mxu0
  %v4678 = vadd.f32 %v4568, %v4677
  %v4679 = vpop.f32.mrb[0].mxu0
  %4680 = vmatprep.mubr.f32.mxu0 %v4371
  %4681 = vmatmul.mubr.f32.gmra.mrb[0].mxu0 %v4362
  %v4682 = vpop.f32.mrb[0].mxu0
  %v4683 = vadd.f32 %v4573, %v4682
  %v4684 = vpop.f32.mrb[0].mxu0
  %4685 = vmatprep.mubr.f32.mxu0 %v4372
  %4686 = vmatmul.mubr.f32.gmra.mrb[0].mxu0 %v4363
  %v4687 = vpop.f32.mrb[0].mxu0
  %v4688 = vadd.f32 %v4578, %v4687
  %v4689 = vpop.f32.mrb[0].mxu0
  %4690 = vmatprep.mubr.f32.mxu0 %v4373
  %4691 = vmatmul.mubr.f32.gmra.mrb[0].mxu0 %v4364
  %v4692 = vpop.f32.mrb[0].mxu0
  %v4693 = vadd.f32 %v4583, %v4692
  %v4694 = vpop.f32.mrb[0].mxu0
  %4695 = vmatprep.mubr.f32.mxu0 %v4374
  %4696 = vmatmul.mubr.f32.gmra.mrb[0].mxu0 %v4365
  %v4697 = vpop.f32.mrb[0].mxu0
  %v4698 = vadd.f32 %v4588, %v4697
  %v4699 = vpop.f32.mrb[0].mxu0
  %4700 = vdwg.mxu0
  %4701 = vmatprep.subr.mxu0 0.0
  %4702 = vmatpush1.msra.mxu0 %v4439
  %4703 = vmatprep.subr.mxu0 0.0
  %4704 = vmatpush1.msra.mxu0 %v4440
  %4705 = vmatprep.subr.mxu0 0.0
  %4706 = vmatpush1.msra.mxu0 %v4441
  %4707 = vmatprep.subr.mxu0 0.0
  %4708 = vmatpush1.msra.mxu0 %v4442
  %4709 = vmatprep.subr.mxu0 0.0
  %4710 = vmatpush1.msra.mxu0 %v4443
  %4711 = vmatprep.subr.mxu0 0.0
  %4712 = vmatpush1.msra.mxu0 %v4444
  %4713 = vmatprep.subr.mxu0 0.0
  %4714 = vmatpush1.msra.mxu0 %v4445
  %4715 = vmatprep.subr.mxu0 0.0
  %4716 = vmatpush1.msra.mxu0 %v4446
  %4717 = vmatprep.subr.mxu0 0.0
  %4718 = vmatpush1.msra.mxu0 0.0
  %4719 = vmatprep.subr.mxu0 0.0
  %4720 = vmatpush1.msra.mxu0 0.0
  %4721 = vmatprep.subr.mxu0 0.0
  %4722 = vmatpush1.msra.mxu0 0.0
  %4723 = vmatprep.subr.mxu0 0.0
  %4724 = vmatpush1.msra.mxu0 0.0
  %4725 = vmatprep.subr.mxu0 0.0
  %4726 = vmatpush1.msra.mxu0 0.0
  %4727 = vmatprep.subr.mxu0 0.0
  %4728 = vmatpush1.msra.mxu0 0.0
  %4729 = vmatprep.subr.mxu0 0.0
  %4730 = vmatpush1.msra.mxu0 0.0
  %4731 = vmatprep.subr.mxu0 0.0
  %4732 = vmatpush1.msra.mxu0 0.0
  %4733 = vmatprep.subr.mxu0 0.0
  %4734 = vmatpush1.msra.mxu0 0.0
  %4735 = vmatprep.subr.mxu0 0.0
  %4736 = vmatpush1.msra.mxu0 0.0
  %4737 = vmatprep.subr.mxu0 0.0
  %4738 = vmatpush1.msra.mxu0 0.0
  %4739 = vmatprep.subr.mxu0 0.0
  %4740 = vmatpush1.msra.mxu0 0.0
  %4741 = vmatprep.subr.mxu0 0.0
  %4742 = vmatpush1.msra.mxu0 0.0
  %4743 = vmatprep.subr.mxu0 0.0
  %4744 = vmatpush1.msra.mxu0 0.0
  %4745 = vmatprep.subr.mxu0 0.0
  %4746 = vmatpush1.msra.mxu0 0.0
  %4747 = vmatprep.subr.mxu0 0.0
  %4748 = vmatpush1.msra.mxu0 0.0
  %4749 = vmatprep.subr.mxu0 0.0
  %4750 = vmatpush1.msra.mxu0 0.0
  %4751 = vmatprep.subr.mxu0 0.0
  %4752 = vmatpush1.msra.mxu0 0.0
  %4753 = vmatprep.subr.mxu0 0.0
  %4754 = vmatpush1.msra.mxu0 0.0
  %4755 = vmatprep.subr.mxu0 0.0
  %4756 = vmatpush1.msra.mxu0 0.0
  %4757 = vmatprep.subr.mxu0 0.0
  %4758 = vmatpush1.msra.mxu0 0.0
  %4759 = vmatprep.subr.mxu0 0.0
  %4760 = vmatpush1.msra.mxu0 0.0
  %4761 = vmatprep.subr.mxu0 0.0
  %4762 = vmatpush1.msra.mxu0 0.0
  %4763 = vmatprep.subr.mxu0 0.0
  %4764 = vmatpush1.msra.mxu0 0.0
  %4765 = vmatprep.mubr.f32.mxu0 0.0
  %4766 = vmatmul.mubr.f32.gmra.mrb[0].mxu0 %v4455
  %v4767 = vpop.f32.mrb[0].mxu0
  %v4768 = vadd.f32 %v4658, %v4767
  %v4769 = vpop.f32.mrb[0].mxu0
  %4770 = vmatprep.mubr.f32.mxu0 0.0
  %4771 = vmatmul.mubr.f32.gmra.mrb[0].mxu0 %v4458
  %v4772 = vpop.f32.mrb[0].mxu0
  %v4773 = vadd.f32 %v4663, %v4772
  %v4774 = vpop.f32.mrb[0].mxu0
  %4775 = vmatprep.mubr.f32.mxu0 0.0
  %4776 = vmatmul.mubr.f32.gmra.mrb[0].mxu0 %v4461
  %v4777 = vpop.f32.mrb[0].mxu0
  %v4778 = vadd.f32 %v4668, %v4777
  %v4779 = vpop.f32.mrb[0].mxu0
  %4780 = vmatprep.mubr.f32.mxu0 0.0
  %4781 = vmatmul.mubr.f32.gmra.mrb[0].mxu0 %v4464
  %v4782 = vpop.f32.mrb[0].mxu0
  %v4783 = vadd.f32 %v4673, %v4782
  %v4784 = vpop.f32.mrb[0].mxu0
  %4785 = vmatprep.mubr.f32.mxu0 0.0
  %4786 = vmatmul.mubr.f32.gmra.mrb[0].mxu0 %v4467
  %v4787 = vpop.f32.mrb[0].mxu0
  %v4788 = vadd.f32 %v4678, %v4787
  %v4789 = vpop.f32.mrb[0].mxu0
  %4790 = vmatprep.mubr.f32.mxu0 0.0
  %4791 = vmatmul.mubr.f32.gmra.mrb[0].mxu0 %v4470
  %v4792 = vpop.f32.mrb[0].mxu0
  %v4793 = vadd.f32 %v4683, %v4792
  %v4794 = vpop.f32.mrb[0].mxu0
  %4795 = vmatprep.mubr.f32.mxu0 0.0
  %4796 = vmatmul.mubr.f32.gmra.mrb[0].mxu0 %v4473
  %v4797 = vpop.f32.mrb[0].mxu0
  %v4798 = vadd.f32 %v4688, %v4797
  %v4799 = vpop.f32.mrb[0].mxu0
  %4800 = vmatprep.mubr.f32.mxu0 0.0
  %4801 = vmatmul.mubr.f32.gmra.mrb[0].mxu0 %v4476
  %v4802 = vpop.f32.mrb[0].mxu0
  %v4803 = vadd.f32 %v4693, %v4802
  %v4804 = vpop.f32.mrb[0].mxu0
  %4805 = vmatprep.mubr.f32.mxu0 0.0
  %4806 = vmatmul.mubr.f32.gmra.mrb[0].mxu0 %v4479
  %v4807 = vpop.f32.mrb[0].mxu0
  %v4808 = vadd.f32 %v4698, %v4807
  %v4809 = vpop.f32.mrb[0].mxu0
  %4810 = vdwg.mxu0
  %v4811 = vmax.f32 %v4768, 0.0
  %v4812 = vmax.f32 %v4773, 0.0
  %v4813 = vmax.f32 %v4778, 0.0
  %v4814 = vmax.f32 %v4783, 0.0
  %v4815 = vmax.f32 %v4788, 0.0
  %v4816 = vmax.f32 %v4793, 0.0
  %v4817 = vmax.f32 %v4798, 0.0
  %v4818 = vmax.f32 %v4803, 0.0
  %v4819 = vmax.f32 %v4808, 0.0
  %v4820 = vadd.s32 %v3284, 56
  %v4821 = vadd.s32 %v3284, 64
  %vm4822 = vcmp.lt.s32.totalorder %v3284, 0
  %v4823 = vsub.s32 0, %v3284
  %v4824 = vsel %vm4822, %v4823, %v3284
  %v4825 = vshrl.u32 %v4824, 3
  %v4826 = vand.u32 %v4824, 7
  %v4827 = vsub.s32 0, %v4826
  %v4828 = vsel %vm4822, %v4827, %v4826
  %vm4829 = vcmp.lt.s32.totalorder %v3285, 0
  %v4830 = vsub.s32 0, %v3285
  %v4831 = vsel %vm4829, %v4830, %v3285
  %v4832 = vshrl.u32 %v4831, 3
  %v4833 = vand.u32 %v4831, 7
  %v4834 = vsub.s32 0, %v4833
  %v4835 = vsel %vm4829, %v4834, %v4833
  %vm4836 = vcmp.lt.s32.totalorder %v3286, 0
  %v4837 = vsub.s32 0, %v3286
  %v4838 = vsel %vm4836, %v4837, %v3286
  %v4839 = vshrl.u32 %v4838, 3
  %v4840 = vand.u32 %v4838, 7
  %v4841 = vsub.s32 0, %v4840
  %v4842 = vsel %vm4836, %v4841, %v4840
  %vm4843 = vcmp.lt.s32.totalorder %v3287, 0
  %v4844 = vsub.s32 0, %v3287
  %v4845 = vsel %vm4843, %v4844, %v3287
  %v4846 = vshrl.u32 %v4845, 3
  %v4847 = vand.u32 %v4845, 7
  %v4848 = vsub.s32 0, %v4847
  %v4849 = vsel %vm4843, %v4848, %v4847
  %vm4850 = vcmp.lt.s32.totalorder %v3288, 0
  %v4851 = vsub.s32 0, %v3288
  %v4852 = vsel %vm4850, %v4851, %v3288
  %v4853 = vshrl.u32 %v4852, 3
  %v4854 = vand.u32 %v4852, 7
  %v4855 = vsub.s32 0, %v4854
  %v4856 = vsel %vm4850, %v4855, %v4854
  %vm4857 = vcmp.lt.s32.totalorder %v3289, 0
  %v4858 = vsub.s32 0, %v3289
  %v4859 = vsel %vm4857, %v4858, %v3289
  %v4860 = vshrl.u32 %v4859, 3
  %v4861 = vand.u32 %v4859, 7
  %v4862 = vsub.s32 0, %v4861
  %v4863 = vsel %vm4857, %v4862, %v4861
  %vm4864 = vcmp.lt.s32.totalorder %v3290, 0
  %v4865 = vsub.s32 0, %v3290
  %v4866 = vsel %vm4864, %v4865, %v3290
  %v4867 = vshrl.u32 %v4866, 3
  %v4868 = vand.u32 %v4866, 7
  %v4869 = vsub.s32 0, %v4868
  %v4870 = vsel %vm4864, %v4869, %v4868
  %vm4871 = vcmp.lt.s32.totalorder %v4820, 0
  %v4872 = vsub.s32 0, %v4820
  %v4873 = vsel %vm4871, %v4872, %v4820
  %v4874 = vshrl.u32 %v4873, 3
  %v4875 = vand.u32 %v4873, 7
  %v4876 = vsub.s32 0, %v4875
  %v4877 = vsel %vm4871, %v4876, %v4875
  %vm4878 = vcmp.lt.s32.totalorder %v4821, 0
  %v4879 = vsub.s32 0, %v4821
  %v4880 = vsel %vm4878, %v4879, %v4821
  %v4881 = vshrl.u32 %v4880, 3
  %v4882 = vand.u32 %v4880, 7
  %v4883 = vsub.s32 0, %v4882
  %v4884 = vsel %vm4878, %v4883, %v4882
  %vm4885 = vcmp.ne.s32.totalorder %v4828, 0
  %vm4886 = vcmp.ne.s32.totalorder %v4835, 0
  %vm4887 = vcmp.ne.s32.totalorder %v4842, 0
  %vm4888 = vcmp.ne.s32.totalorder %v4849, 0
  %vm4889 = vcmp.ne.s32.totalorder %v4856, 0
  %vm4890 = vcmp.ne.s32.totalorder %v4863, 0
  %vm4891 = vcmp.ne.s32.totalorder %v4870, 0
  %vm4892 = vcmp.ne.s32.totalorder %v4877, 0
  %vm4893 = vcmp.ne.s32.totalorder %v4884, 0
  %vm4894 = vcmp.lt.s32.totalorder %v4828, 0
  %vm4895 = vcmp.lt.s32.totalorder %v4835, 0
  %vm4896 = vcmp.lt.s32.totalorder %v4842, 0
  %vm4897 = vcmp.lt.s32.totalorder %v4849, 0
  %vm4898 = vcmp.lt.s32.totalorder %v4856, 0
  %vm4899 = vcmp.lt.s32.totalorder %v4863, 0
  %vm4900 = vcmp.lt.s32.totalorder %v4870, 0
  %vm4901 = vcmp.lt.s32.totalorder %v4877, 0
  %vm4902 = vcmp.lt.s32.totalorder %v4884, 0
  %vm4903 = vmand %vm4894, %vm4885
  %vm4904 = vmand %vm4895, %vm4886
  %vm4905 = vmand %vm4896, %vm4887
  %vm4906 = vmand %vm4897, %vm4888
  %vm4907 = vmand %vm4898, %vm4889
  %vm4908 = vmand %vm4899, %vm4890
  %vm4909 = vmand %vm4900, %vm4891
  %vm4910 = vmand %vm4901, %vm4892
  %vm4911 = vmand %vm4902, %vm4893
  %v4912 = vadd.s32 %v4828, 8
  %v4913 = vadd.s32 %v4835, 8
  %v4914 = vadd.s32 %v4842, 8
  %v4915 = vadd.s32 %v4849, 8
  %v4916 = vadd.s32 %v4856, 8
  %v4917 = vadd.s32 %v4863, 8
  %v4918 = vadd.s32 %v4870, 8
  %v4919 = vadd.s32 %v4877, 8
  %v4920 = vadd.s32 %v4884, 8
  %v4921 = vsel %vm4903, %v4912, %v4828
  %v4922 = vsel %vm4904, %v4913, %v4835
  %v4923 = vsel %vm4905, %v4914, %v4842
  %v4924 = vsel %vm4906, %v4915, %v4849
  %v4925 = vsel %vm4907, %v4916, %v4856
  %v4926 = vsel %vm4908, %v4917, %v4863
  %v4927 = vsel %vm4909, %v4918, %v4870
  %v4928 = vsel %vm4910, %v4919, %v4877
  %v4929 = vsel %vm4911, %v4920, %v4884
  %vm4930 = vcmp.lt.s32.totalorder %v4921, 2
  %vm4931 = vcmp.lt.s32.totalorder %v4922, 2
  %vm4932 = vcmp.lt.s32.totalorder %v4923, 2
  %vm4933 = vcmp.lt.s32.totalorder %v4924, 2
  %vm4934 = vcmp.lt.s32.totalorder %v4925, 2
  %vm4935 = vcmp.lt.s32.totalorder %v4926, 2
  %vm4936 = vcmp.lt.s32.totalorder %v4927, 2
  %vm4937 = vcmp.lt.s32.totalorder %v4928, 2
  %vm4938 = vcmp.lt.s32.totalorder %v4929, 2
  %v4939 = vsel %vm4930, 1, 0
  %v4940 = vsel %vm4931, 1, 0
  %v4941 = vsel %vm4932, 1, 0
  %v4942 = vsel %vm4933, 1, 0
  %v4943 = vsel %vm4934, 1, 0
  %v4944 = vsel %vm4935, 1, 0
  %v4945 = vsel %vm4936, 1, 0
  %v4946 = vsel %vm4937, 1, 0
  %v4947 = vsel %vm4938, 1, 0
  %vm4948 = vcmp.eq.s32.totalorder %v4939, 1
  %vm4949 = vcmp.eq.s32.totalorder %v4940, 1
  %vm4950 = vcmp.eq.s32.totalorder %v4941, 1
  %vm4951 = vcmp.eq.s32.totalorder %v4942, 1
  %vm4952 = vcmp.eq.s32.totalorder %v4943, 1
  %vm4953 = vcmp.eq.s32.totalorder %v4944, 1
  %vm4954 = vcmp.eq.s32.totalorder %v4945, 1
  %vm4955 = vcmp.eq.s32.totalorder %v4946, 1
  %vm4956 = vcmp.eq.s32.totalorder %v4947, 1
  %v4957 = vsel %vm4948, %v4811, 0.0
  %v4958 = vsel %vm4949, %v4812, 0.0
  %v4959 = vsel %vm4950, %v4813, 0.0
  %v4960 = vsel %vm4951, %v4814, 0.0
  %v4961 = vsel %vm4952, %v4815, 0.0
  %v4962 = vsel %vm4953, %v4816, 0.0
  %v4963 = vsel %vm4954, %v4817, 0.0
  %v4964 = vsel %vm4955, %v4818, 0.0
  %v4965 = vsel %vm4956, %v4819, 0.0
  %4967 = vrot.lane.b32.xlu0 %v4958, 64
  %v4968 = vpop.permute.xlu0 %4967
  %4971 = vrot.lane.b32.xlu0 %v4960, 64
  %v4972 = vpop.permute.xlu0 %4971
  %4975 = vrot.lane.b32.xlu0 %v4962, 64
  %v4976 = vpop.permute.xlu0 %4975
  %4979 = vrot.lane.b32.xlu0 %v4964, 64
  %v4980 = vpop.permute.xlu0 %4979
  %v4982 = vsel %vm2926, %v4957, %v4968
  %v4983 = vsel %vm2926, %v4959, %v4972
  %v4984 = vsel %vm2926, %v4961, %v4976
  %v4985 = vsel %vm2926, %v4963, %v4980
  %v4986 = vld [vmem:[%s9] sm:$0xff]
  %v4987 = vld [vmem:[%s9 + $0x8] sm:$0xff]
  %v4988 = vld [vmem:[%s9 + $0x10] sm:$0xff]
  %v4989 = vld [vmem:[%s9 + $0x18] sm:$0xff]
  %v4990 = vld [vmem:[%s9 + $0x20] sm:$0xff]
  %v4991 = vld [vmem:[%s9 + $0x28] sm:$0xff]
  %v4992 = vld [vmem:[%s9 + $0x30] sm:$0xff]
  %v4993 = vld [vmem:[%s9 + $0x38] sm:$0xff]
  %v4994 = vld [vmem:[%s9 + $0x40] sm:$0xff]
  %v4995 = vld [vmem:[%s9 + $0x48] sm:$0xff]
  %v4996 = vld [vmem:[%s9 + $0x50] sm:$0xff]
  %v4997 = vld [vmem:[%s9 + $0x58] sm:$0xff]
  %v4998 = vld [vmem:[%s9 + $0x60] sm:$0xff]
  %v4999 = vld [vmem:[%s9 + $0x68] sm:$0xff]
  %v5000 = vld [vmem:[%s9 + $0x70] sm:$0xff]
  %v5001 = vld [vmem:[%s9 + $0x78] sm:$0xff]
  %v5002 = vld [vmem:[%s9 + $0x80] sm:$0xff]
  %v5003 = vld [vmem:[%s9 + $0x88] sm:$0xff]
  %v5004 = vld [vmem:[%s9 + $0x90] sm:$0xff]
  %v5005 = vld [vmem:[%s9 + $0x98] sm:$0xff]
  %v5006 = vld [vmem:[%s9 + $0xa0] sm:$0xff]
  %v5007 = vld [vmem:[%s9 + $0xa8] sm:$0xff]
  %v5008 = vld [vmem:[%s9 + $0xb0] sm:$0xff]
  %v5009 = vld [vmem:[%s9 + $0xb8] sm:$0xff]
  %v5010 = vld [vmem:[%s9 + $0xc0] sm:$0xff]
  %v5011 = vld [vmem:[%s9 + $0xc8] sm:$0xff]
  %v5012 = vld [vmem:[%s9 + $0xd0] sm:$0xff]
  %v5013 = vld [vmem:[%s9 + $0xd8] sm:$0xff]
  %v5014 = vld [vmem:[%s9 + $0xe0] sm:$0xff]
  %v5015 = vld [vmem:[%s9 + $0xe8] sm:$0xff]
  %v5016 = vld [vmem:[%s9 + $0xf0] sm:$0xff]
  %v5017 = vld [vmem:[%s9 + $0xf8] sm:$0xff]
  %v5018 = vld [vmem:[%s9 + $0x100] sm:$0xff]
  %v5019 = vld [vmem:[%s9 + $0x108] sm:$0xff]
  %v5020 = vld [vmem:[%s9 + $0x110] sm:$0xff]
  %v5021 = vld [vmem:[%s9 + $0x118] sm:$0xff]
  %v5022 = vld [vmem:[%s9 + $0x120] sm:$0xff]
  %v5023 = vld [vmem:[%s9 + $0x128] sm:$0xff]
  %v5024 = vld [vmem:[%s9 + $0x130] sm:$0xff]
  %v5025 = vld [vmem:[%s9 + $0x138] sm:$0xff]
  %v5026 = vld [vmem:[%s9 + $0x140] sm:$0xff]
  %v5027 = vld [vmem:[%s9 + $0x148] sm:$0xff]
  %v5028 = vld [vmem:[%s9 + $0x150] sm:$0xff]
  %v5029 = vld [vmem:[%s9 + $0x158] sm:$0xff]
  %v5030 = vld [vmem:[%s9 + $0x160] sm:$0xff]
  %v5031 = vld [vmem:[%s9 + $0x168] sm:$0xff]
  %v5032 = vld [vmem:[%s9 + $0x170] sm:$0xff]
  %v5033 = vld [vmem:[%s9 + $0x178] sm:$0xff]
  %v5034 = vld [vmem:[%s9 + $0x180] sm:$0xff]
  %v5035 = vld [vmem:[%s9 + $0x188] sm:$0xff]
  %v5036 = vld [vmem:[%s9 + $0x190] sm:$0xff]
  %v5037 = vld [vmem:[%s9 + $0x198] sm:$0xff]
  %v5038 = vld [vmem:[%s9 + $0x1a0] sm:$0xff]
  %v5039 = vld [vmem:[%s9 + $0x1a8] sm:$0xff]
  %v5040 = vld [vmem:[%s9 + $0x1b0] sm:$0xff]
  %v5041 = vld [vmem:[%s9 + $0x1b8] sm:$0xff]
  %v5042 = vld [vmem:[%s9 + $0x1c0] sm:$0xff]
  %v5043 = vld [vmem:[%s9 + $0x1c8] sm:$0xff]
  %v5044 = vld [vmem:[%s9 + $0x1d0] sm:$0xff]
  %v5045 = vld [vmem:[%s9 + $0x1d8] sm:$0xff]
  %v5046 = vld [vmem:[%s9 + $0x1e0] sm:$0xff]
  %v5047 = vld [vmem:[%s9 + $0x1e8] sm:$0xff]
  %v5048 = vld [vmem:[%s9 + $0x1f0] sm:$0xff]
  %v5049 = vld [vmem:[%s9 + $0x1f8] sm:$0xff]
  %v5050 = vld [vmem:[%s9 + $0x200] sm:$0xff]
  %v5051 = vld [vmem:[%s9 + $0x208] sm:$0xff]
  %v5052 = vld [vmem:[%s9 + $0x210] sm:$0xff]
  %v5053 = vld [vmem:[%s9 + $0x218] sm:$0xff]
  %v5054 = vld [vmem:[%s9 + $0x220] sm:$0xff]
  %v5055 = vld [vmem:[%s9 + $0x228] sm:$0xff]
  %v5056 = vld [vmem:[%s9 + $0x230] sm:$0xff]
  %v5057 = vld [vmem:[%s9 + $0x238] sm:$0xff]
  %v5058 = vld [vmem:[%s9 + $0x240] sm:$0xff]
  %v5059 = vld [vmem:[%s9 + $0x248] sm:$0xff]
  %v5060 = vld [vmem:[%s9 + $0x250] sm:$0xff]
  %v5061 = vld [vmem:[%s9 + $0x258] sm:$0xff]
  %v5062 = vld [vmem:[%s9 + $0x260] sm:$0xff]
  %v5063 = vld [vmem:[%s9 + $0x268] sm:$0xff]
  %v5064 = vld [vmem:[%s9 + $0x270] sm:$0xff]
  %v5065 = vld [vmem:[%s9 + $0x278] sm:$0xff]
  %v5066 = vld [vmem:[%s9 + $0x280] sm:$0xff]
  %v5067 = vld [vmem:[%s9 + $0x288] sm:$0xff]
  %v5068 = vld [vmem:[%s9 + $0x290] sm:$0xff]
  %v5069 = vld [vmem:[%s9 + $0x298] sm:$0xff]
  %v5070 = vld [vmem:[%s9 + $0x2a0] sm:$0xff]
  %v5071 = vld [vmem:[%s9 + $0x2a8] sm:$0xff]
  %v5072 = vld [vmem:[%s9 + $0x2b0] sm:$0xff]
  %v5073 = vld [vmem:[%s9 + $0x2b8] sm:$0xff]
  %v5074 = vld [vmem:[%s9 + $0x2c0] sm:$0xff]
  %v5075 = vld [vmem:[%s9 + $0x2c8] sm:$0xff]
  %v5076 = vld [vmem:[%s9 + $0x2d0] sm:$0xff]
  %v5077 = vld [vmem:[%s9 + $0x2d8] sm:$0xff]
  %v5078 = vld [vmem:[%s9 + $0x2e0] sm:$0xff]
  %v5079 = vld [vmem:[%s9 + $0x2e8] sm:$0xff]
  %v5080 = vld [vmem:[%s9 + $0x2f0] sm:$0xff]
  %v5081 = vld [vmem:[%s9 + $0x2f8] sm:$0xff]
  %v5082 = vld [vmem:[%s9 + $0x300] sm:$0xff]
  %v5083 = vld [vmem:[%s9 + $0x308] sm:$0xff]
  %v5084 = vld [vmem:[%s9 + $0x310] sm:$0xff]
  %v5085 = vld [vmem:[%s9 + $0x318] sm:$0xff]
  %v5086 = vld [vmem:[%s9 + $0x320] sm:$0xff]
  %v5087 = vld [vmem:[%s9 + $0x328] sm:$0xff]
  %v5088 = vld [vmem:[%s9 + $0x330] sm:$0xff]
  %v5089 = vld [vmem:[%s9 + $0x338] sm:$0xff]
  %v5090 = vld [vmem:[%s9 + $0x340] sm:$0xff]
  %v5091 = vld [vmem:[%s9 + $0x348] sm:$0xff]
  %v5092 = vld [vmem:[%s9 + $0x350] sm:$0xff]
  %v5093 = vld [vmem:[%s9 + $0x358] sm:$0xff]
  %v5094 = vld [vmem:[%s9 + $0x360] sm:$0xff]
  %v5095 = vld [vmem:[%s9 + $0x368] sm:$0xff]
  %v5096 = vld [vmem:[%s9 + $0x370] sm:$0xff]
  %v5097 = vld [vmem:[%s9 + $0x378] sm:$0xff]
  %v5098 = vld [vmem:[%s9 + $0x380] sm:$0xff]
  %v5099 = vld [vmem:[%s9 + $0x388] sm:$0xff]
  %v5100 = vld [vmem:[%s9 + $0x390] sm:$0xff]
  %v5101 = vld [vmem:[%s9 + $0x398] sm:$0xff]
  %v5102 = vld [vmem:[%s9 + $0x3a0] sm:$0xff]
  %v5103 = vld [vmem:[%s9 + $0x3a8] sm:$0xff]
  %v5104 = vld [vmem:[%s9 + $0x3b0] sm:$0xff]
  %v5105 = vld [vmem:[%s9 + $0x3b8] sm:$0xff]
  %v5106 = vld [vmem:[%s9 + $0x3c0] sm:$0xff]
  %v5107 = vld [vmem:[%s9 + $0x3c8] sm:$0xff]
  %v5108 = vld [vmem:[%s9 + $0x3d0] sm:$0xff]
  %v5109 = vld [vmem:[%s9 + $0x3d8] sm:$0xff]
  %v5110 = vld [vmem:[%s9 + $0x3e0] sm:$0xff]
  %v5111 = vld [vmem:[%s9 + $0x3e8] sm:$0xff]
  %v5112 = vld [vmem:[%s9 + $0x3f0] sm:$0xff]
  %v5113 = vld [vmem:[%s9 + $0x3f8] sm:$0xff]
  %v5114 = vld [vmem:[%s9 + $0x400] sm:$0xff]
  %v5115 = vld [vmem:[%s9 + $0x408] sm:$0xff]
  %v5116 = vld [vmem:[%s9 + $0x410] sm:$0xff]
  %v5117 = vld [vmem:[%s9 + $0x418] sm:$0xff]
  %v5118 = vld [vmem:[%s9 + $0x420] sm:$0xff]
  %v5119 = vld [vmem:[%s9 + $0x428] sm:$0xff]
  %v5120 = vld [vmem:[%s9 + $0x430] sm:$0xff]
  %v5121 = vld [vmem:[%s9 + $0x438] sm:$0xff]
  %v5122 = vld [vmem:[%s9 + $0x440] sm:$0xff]
  %v5123 = vld [vmem:[%s9 + $0x448] sm:$0xff]
  %v5124 = vld [vmem:[%s9 + $0x450] sm:$0xff]
  %v5125 = vld [vmem:[%s9 + $0x458] sm:$0xff]
  %v5126 = vld [vmem:[%s9 + $0x460] sm:$0xff]
  %v5127 = vld [vmem:[%s9 + $0x468] sm:$0xff]
  %v5128 = vld [vmem:[%s9 + $0x470] sm:$0xff]
  %v5129 = vld [vmem:[%s9 + $0x478] sm:$0xff]
  %v5130 = vld [vmem:[%s9 + $0x480] sm:$0xff]
  %v5131 = vld [vmem:[%s9 + $0x488] sm:$0xff]
  %v5132 = vld [vmem:[%s9 + $0x490] sm:$0xff]
  %v5133 = vld [vmem:[%s9 + $0x498] sm:$0xff]
  %v5134 = vld [vmem:[%s9 + $0x4a0] sm:$0xff]
  %v5135 = vld [vmem:[%s9 + $0x4a8] sm:$0xff]
  %v5136 = vld [vmem:[%s9 + $0x4b0] sm:$0xff]
  %v5137 = vld [vmem:[%s9 + $0x4b8] sm:$0xff]
  %v5138 = vld [vmem:[%s9 + $0x4c0] sm:$0xff]
  %v5139 = vld [vmem:[%s9 + $0x4c8] sm:$0xff]
  %v5140 = vld [vmem:[%s9 + $0x4d0] sm:$0xff]
  %v5141 = vld [vmem:[%s9 + $0x4d8] sm:$0xff]
  %v5142 = vld [vmem:[%s9 + $0x4e0] sm:$0xff]
  %v5143 = vld [vmem:[%s9 + $0x4e8] sm:$0xff]
  %v5144 = vld [vmem:[%s9 + $0x4f0] sm:$0xff]
  %v5145 = vld [vmem:[%s9 + $0x4f8] sm:$0xff]
  %v5146 = vld [vmem:[%s9 + $0x500] sm:$0xff]
  %v5147 = vld [vmem:[%s9 + $0x508] sm:$0xff]
  %v5148 = vld [vmem:[%s9 + $0x510] sm:$0xff]
  %v5149 = vld [vmem:[%s9 + $0x518] sm:$0xff]
  %v5150 = vld [vmem:[%s9 + $0x520] sm:$0xff]
  %v5151 = vld [vmem:[%s9 + $0x528] sm:$0xff]
  %v5152 = vld [vmem:[%s9 + $0x530] sm:$0xff]
  %v5153 = vld [vmem:[%s9 + $0x538] sm:$0xff]
  %v5154 = vld [vmem:[%s9 + $0x540] sm:$0xff]
  %v5155 = vld [vmem:[%s9 + $0x548] sm:$0xff]
  %v5156 = vld [vmem:[%s9 + $0x550] sm:$0xff]
  %v5157 = vld [vmem:[%s9 + $0x558] sm:$0xff]
  %v5158 = vld [vmem:[%s9 + $0x560] sm:$0xff]
  %v5159 = vld [vmem:[%s9 + $0x568] sm:$0xff]
  %v5160 = vld [vmem:[%s9 + $0x570] sm:$0xff]
  %v5161 = vld [vmem:[%s9 + $0x578] sm:$0xff]
  %v5162 = vld [vmem:[%s9 + $0x580] sm:$0xff]
  %v5163 = vld [vmem:[%s9 + $0x588] sm:$0xff]
  %v5164 = vld [vmem:[%s9 + $0x590] sm:$0xff]
  %v5165 = vld [vmem:[%s9 + $0x598] sm:$0xff]
  %v5166 = vld [vmem:[%s9 + $0x5a0] sm:$0xff]
  %v5167 = vld [vmem:[%s9 + $0x5a8] sm:$0xff]
  %v5168 = vld [vmem:[%s9 + $0x5b0] sm:$0xff]
  %v5169 = vld [vmem:[%s9 + $0x5b8] sm:$0xff]
  %v5170 = vld [vmem:[%s9 + $0x5c0] sm:$0xff]
  %v5171 = vld [vmem:[%s9 + $0x5c8] sm:$0xff]
  %v5172 = vld [vmem:[%s9 + $0x5d0] sm:$0xff]
  %v5173 = vld [vmem:[%s9 + $0x5d8] sm:$0xff]
  %v5174 = vld [vmem:[%s9 + $0x5e0] sm:$0xff]
  %v5175 = vld [vmem:[%s9 + $0x5e8] sm:$0xff]
  %v5176 = vld [vmem:[%s9 + $0x5f0] sm:$0xff]
  %v5177 = vld [vmem:[%s9 + $0x5f8] sm:$0xff]
  %v5178 = vld [vmem:[%s9 + $0x600] sm:$0xff]
  %v5179 = vld [vmem:[%s9 + $0x608] sm:$0xff]
  %v5180 = vld [vmem:[%s9 + $0x610] sm:$0xff]
  %v5181 = vld [vmem:[%s9 + $0x618] sm:$0xff]
  %v5182 = vld [vmem:[%s9 + $0x620] sm:$0xff]
  %v5183 = vld [vmem:[%s9 + $0x628] sm:$0xff]
  %v5184 = vld [vmem:[%s9 + $0x630] sm:$0xff]
  %v5185 = vld [vmem:[%s9 + $0x638] sm:$0xff]
  %v5186 = vld [vmem:[%s9 + $0x640] sm:$0xff]
  %v5187 = vld [vmem:[%s9 + $0x648] sm:$0xff]
  %v5188 = vld [vmem:[%s9 + $0x650] sm:$0xff]
  %v5189 = vld [vmem:[%s9 + $0x658] sm:$0xff]
  %v5190 = vld [vmem:[%s9 + $0x660] sm:$0xff]
  %v5191 = vld [vmem:[%s9 + $0x668] sm:$0xff]
  %v5192 = vld [vmem:[%s9 + $0x670] sm:$0xff]
  %v5193 = vld [vmem:[%s9 + $0x678] sm:$0xff]
  %v5194 = vld [vmem:[%s9 + $0x680] sm:$0xff]
  %v5195 = vld [vmem:[%s9 + $0x688] sm:$0xff]
  %v5196 = vld [vmem:[%s9 + $0x690] sm:$0xff]
  %v5197 = vld [vmem:[%s9 + $0x698] sm:$0xff]
  %v5198 = vld [vmem:[%s9 + $0x6a0] sm:$0xff]
  %v5199 = vld [vmem:[%s9 + $0x6a8] sm:$0xff]
  %v5200 = vld [vmem:[%s9 + $0x6b0] sm:$0xff]
  %v5201 = vld [vmem:[%s9 + $0x6b8] sm:$0xff]
  %v5202 = vld [vmem:[%s9 + $0x6c0] sm:$0xff]
  %v5203 = vld [vmem:[%s9 + $0x6c8] sm:$0xff]
  %v5204 = vld [vmem:[%s9 + $0x6d0] sm:$0xff]
  %v5205 = vld [vmem:[%s9 + $0x6d8] sm:$0xff]
  %v5206 = vld [vmem:[%s9 + $0x6e0] sm:$0xff]
  %v5207 = vld [vmem:[%s9 + $0x6e8] sm:$0xff]
  %v5208 = vld [vmem:[%s9 + $0x6f0] sm:$0xff]
  %v5209 = vld [vmem:[%s9 + $0x6f8] sm:$0xff]
  %v5210 = vld [vmem:[%s9 + $0x700] sm:$0xff]
  %v5211 = vld [vmem:[%s9 + $0x708] sm:$0xff]
  %v5212 = vld [vmem:[%s9 + $0x710] sm:$0xff]
  %v5213 = vld [vmem:[%s9 + $0x718] sm:$0xff]
  %v5214 = vld [vmem:[%s9 + $0x720] sm:$0xff]
  %v5215 = vld [vmem:[%s9 + $0x728] sm:$0xff]
  %v5216 = vld [vmem:[%s9 + $0x730] sm:$0xff]
  %v5217 = vld [vmem:[%s9 + $0x738] sm:$0xff]
  %v5218 = vld [vmem:[%s9 + $0x740] sm:$0xff]
  %v5219 = vld [vmem:[%s9 + $0x748] sm:$0xff]
  %v5220 = vld [vmem:[%s9 + $0x750] sm:$0xff]
  %v5221 = vld [vmem:[%s9 + $0x758] sm:$0xff]
  %v5222 = vld [vmem:[%s9 + $0x760] sm:$0xff]
  %v5223 = vld [vmem:[%s9 + $0x768] sm:$0xff]
  %v5224 = vld [vmem:[%s9 + $0x770] sm:$0xff]
  %v5225 = vld [vmem:[%s9 + $0x778] sm:$0xff]
  %v5226 = vld [vmem:[%s9 + $0x780] sm:$0xff]
  %v5227 = vld [vmem:[%s9 + $0x788] sm:$0xff]
  %v5228 = vld [vmem:[%s9 + $0x790] sm:$0xff]
  %v5229 = vld [vmem:[%s9 + $0x798] sm:$0xff]
  %v5230 = vld [vmem:[%s9 + $0x7a0] sm:$0xff]
  %v5231 = vld [vmem:[%s9 + $0x7a8] sm:$0xff]
  %v5232 = vld [vmem:[%s9 + $0x7b0] sm:$0xff]
  %v5233 = vld [vmem:[%s9 + $0x7b8] sm:$0xff]
  %v5234 = vld [vmem:[%s9 + $0x7c0] sm:$0xff]
  %v5235 = vld [vmem:[%s9 + $0x7c8] sm:$0xff]
  %v5236 = vld [vmem:[%s9 + $0x7d0] sm:$0xff]
  %v5237 = vld [vmem:[%s9 + $0x7d8] sm:$0xff]
  %v5238 = vld [vmem:[%s9 + $0x7e0] sm:$0xff]
  %v5239 = vld [vmem:[%s9 + $0x7e8] sm:$0xff]
  %v5240 = vld [vmem:[%s9 + $0x7f0] sm:$0xff]
  %v5241 = vld [vmem:[%s9 + $0x7f8] sm:$0xff]
  %v5242 = vld [vmem:[%s9 + $0x800] sm:$0xff]
  %v5243 = vld [vmem:[%s9 + $0x808] sm:$0xff]
  %v5244 = vld [vmem:[%s9 + $0x810] sm:$0xff]
  %v5245 = vld [vmem:[%s9 + $0x818] sm:$0xff]
  %v5246 = vld [vmem:[%s9 + $0x820] sm:$0xff]
  %v5247 = vld [vmem:[%s9 + $0x828] sm:$0xff]
  %v5248 = vld [vmem:[%s9 + $0x830] sm:$0xff]
  %v5249 = vld [vmem:[%s9 + $0x838] sm:$0xff]
  %v5250 = vld [vmem:[%s9 + $0x840] sm:$0xff]
  %v5251 = vld [vmem:[%s9 + $0x848] sm:$0xff]
  %v5252 = vld [vmem:[%s9 + $0x850] sm:$0xff]
  %v5253 = vld [vmem:[%s9 + $0x858] sm:$0xff]
  %v5254 = vld [vmem:[%s9 + $0x860] sm:$0xff]
  %v5255 = vld [vmem:[%s9 + $0x868] sm:$0xff]
  %v5256 = vld [vmem:[%s9 + $0x870] sm:$0xff]
  %v5257 = vld [vmem:[%s9 + $0x878] sm:$0xff]
  %v5258 = vld [vmem:[%s9 + $0x880] sm:$0xff]
  %v5259 = vld [vmem:[%s9 + $0x888] sm:$0xff]
  %v5260 = vld [vmem:[%s9 + $0x890] sm:$0xff]
  %v5261 = vld [vmem:[%s9 + $0x898] sm:$0xff]
  %v5262 = vld [vmem:[%s9 + $0x8a0] sm:$0xff]
  %v5263 = vld [vmem:[%s9 + $0x8a8] sm:$0xff]
  %v5264 = vld [vmem:[%s9 + $0x8b0] sm:$0xff]
  %v5265 = vld [vmem:[%s9 + $0x8b8] sm:$0xff]
  %v5266 = vld [vmem:[%s9 + $0x8c0] sm:$0xff]
  %v5267 = vld [vmem:[%s9 + $0x8c8] sm:$0xff]
  %v5268 = vld [vmem:[%s9 + $0x8d0] sm:$0xff]
  %v5269 = vld [vmem:[%s9 + $0x8d8] sm:$0xff]
  %v5270 = vld [vmem:[%s9 + $0x8e0] sm:$0xff]
  %v5271 = vld [vmem:[%s9 + $0x8e8] sm:$0xff]
  %v5272 = vld [vmem:[%s9 + $0x8f0] sm:$0xff]
  %v5273 = vld [vmem:[%s9 + $0x8f8] sm:$0xff]
  %v5274 = vld [vmem:[%s10] sm:$0xf]
  %v5276 = vlaneseq
  %v5277 = vshrl.u32 %v5276, 7
  %v5278 = vsub.s32 0, %v5277
  %v5279 = vrot.slane %v5274, %v5278
  %v5280 = vlaneseq
  %v5281 = vshrl.u32 %v5280, 7
  %v5282 = vsub.s32 1, %v5281
  %v5283 = vrot.slane %v5274, %v5282
  %v5284 = vlaneseq
  %v5285 = vshrl.u32 %v5284, 7
  %v5286 = vsub.s32 2, %v5285
  %v5287 = vrot.slane %v5274, %v5286
  %v5288 = vlaneseq
  %v5289 = vshrl.u32 %v5288, 7
  %v5290 = vsub.s32 3, %v5289
  %v5291 = vrot.slane %v5274, %v5290
  %v5297 = vsel %vm2926, %v4965, 0
  %5299 = vmatprep.subr.mxu0 %v4987
  %5300 = vmatpush1.msra.mxu0 %v4986
  %5301 = vmatprep.subr.mxu0 %v4991
  %5302 = vmatpush1.msra.mxu0 %v4990
  %5303 = vmatprep.subr.mxu0 %v4995
  %5304 = vmatpush1.msra.mxu0 %v4994
  %5305 = vmatprep.subr.mxu0 %v4999
  %5306 = vmatpush1.msra.mxu0 %v4998
  %5307 = vmatprep.subr.mxu0 %v5003
  %5308 = vmatpush1.msra.mxu0 %v5002
  %5309 = vmatprep.subr.mxu0 %v5007
  %5310 = vmatpush1.msra.mxu0 %v5006
  %5311 = vmatprep.subr.mxu0 %v5011
  %5312 = vmatpush1.msra.mxu0 %v5010
  %5313 = vmatprep.subr.mxu0 %v5015
  %5314 = vmatpush1.msra.mxu0 %v5014
  %5315 = vmatprep.subr.mxu0 %v5019
  %5316 = vmatpush1.msra.mxu0 %v5018
  %5317 = vmatprep.subr.mxu0 %v5023
  %5318 = vmatpush1.msra.mxu0 %v5022
  %5319 = vmatprep.subr.mxu0 %v5027
  %5320 = vmatpush1.msra.mxu0 %v5026
  %5321 = vmatprep.subr.mxu0 %v5031
  %5322 = vmatpush1.msra.mxu0 %v5030
  %5323 = vmatprep.subr.mxu0 %v5035
  %5324 = vmatpush1.msra.mxu0 %v5034
  %5325 = vmatprep.subr.mxu0 %v5039
  %5326 = vmatpush1.msra.mxu0 %v5038
  %5327 = vmatprep.subr.mxu0 %v5043
  %5328 = vmatpush1.msra.mxu0 %v5042
  %5329 = vmatprep.subr.mxu0 %v5047
  %5330 = vmatpush1.msra.mxu0 %v5046
  %5331 = vmatprep.subr.mxu0 %v5051
  %5332 = vmatpush1.msra.mxu0 %v5050
  %5333 = vmatprep.subr.mxu0 %v5055
  %5334 = vmatpush1.msra.mxu0 %v5054
  %5335 = vmatprep.subr.mxu0 %v5059
  %5336 = vmatpush1.msra.mxu0 %v5058
  %5337 = vmatprep.subr.mxu0 %v5063
  %5338 = vmatpush1.msra.mxu0 %v5062
  %5339 = vmatprep.subr.mxu0 %v5067
  %5340 = vmatpush1.msra.mxu0 %v5066
  %5341 = vmatprep.subr.mxu0 %v5071
  %5342 = vmatpush1.msra.mxu0 %v5070
  %5343 = vmatprep.subr.mxu0 %v5075
  %5344 = vmatpush1.msra.mxu0 %v5074
  %5345 = vmatprep.subr.mxu0 %v5079
  %5346 = vmatpush1.msra.mxu0 %v5078
  %5347 = vmatprep.subr.mxu0 %v5083
  %5348 = vmatpush1.msra.mxu0 %v5082
  %5349 = vmatprep.subr.mxu0 %v5087
  %5350 = vmatpush1.msra.mxu0 %v5086
  %5351 = vmatprep.subr.mxu0 %v5091
  %5352 = vmatpush1.msra.mxu0 %v5090
  %5353 = vmatprep.subr.mxu0 %v5095
  %5354 = vmatpush1.msra.mxu0 %v5094
  %5355 = vmatprep.subr.mxu0 %v5099
  %5356 = vmatpush1.msra.mxu0 %v5098
  %5357 = vmatprep.subr.mxu0 %v5103
  %5358 = vmatpush1.msra.mxu0 %v5102
  %5359 = vmatprep.subr.mxu0 %v5107
  %5360 = vmatpush1.msra.mxu0 %v5106
  %5361 = vmatprep.subr.mxu0 %v5111
  %5362 = vmatpush1.msra.mxu0 %v5110
  %5363 = vmatprep.mubr.f32.mxu0 %v4983
  %5364 = vmatmul.mubr.f32.gmra.mrb[0].mxu0 %v4982
  %v5365 = vpop.f32.mrb[0].mxu0
  %v5366 = vadd.f32 %v5279, %v5365
  %v5367 = vpop.f32.mrb[0].mxu0
  %v5368 = vadd.f32 %v5283, %v5367
  %5369 = vdwg.mxu0
  %5370 = vmatprep.subr.mxu0 %v5115
  %5371 = vmatpush1.msra.mxu0 %v5114
  %5372 = vmatprep.subr.mxu0 %v5119
  %5373 = vmatpush1.msra.mxu0 %v5118
  %5374 = vmatprep.subr.mxu0 %v5123
  %5375 = vmatpush1.msra.mxu0 %v5122
  %5376 = vmatprep.subr.mxu0 %v5127
  %5377 = vmatpush1.msra.mxu0 %v5126
  %5378 = vmatprep.subr.mxu0 %v5131
  %5379 = vmatpush1.msra.mxu0 %v5130
  %5380 = vmatprep.subr.mxu0 %v5135
  %5381 = vmatpush1.msra.mxu0 %v5134
  %5382 = vmatprep.subr.mxu0 %v5139
  %5383 = vmatpush1.msra.mxu0 %v5138
  %5384 = vmatprep.subr.mxu0 %v5143
  %5385 = vmatpush1.msra.mxu0 %v5142
  %5386 = vmatprep.subr.mxu0 %v5147
  %5387 = vmatpush1.msra.mxu0 %v5146
  %5388 = vmatprep.subr.mxu0 %v5151
  %5389 = vmatpush1.msra.mxu0 %v5150
  %5390 = vmatprep.subr.mxu0 %v5155
  %5391 = vmatpush1.msra.mxu0 %v5154
  %5392 = vmatprep.subr.mxu0 %v5159
  %5393 = vmatpush1.msra.mxu0 %v5158
  %5394 = vmatprep.subr.mxu0 %v5163
  %5395 = vmatpush1.msra.mxu0 %v5162
  %5396 = vmatprep.subr.mxu0 %v5167
  %5397 = vmatpush1.msra.mxu0 %v5166
  %5398 = vmatprep.subr.mxu0 %v5171
  %5399 = vmatpush1.msra.mxu0 %v5170
  %5400 = vmatprep.subr.mxu0 %v5175
  %5401 = vmatpush1.msra.mxu0 %v5174
  %5402 = vmatprep.subr.mxu0 %v5179
  %5403 = vmatpush1.msra.mxu0 %v5178
  %5404 = vmatprep.subr.mxu0 %v5183
  %5405 = vmatpush1.msra.mxu0 %v5182
  %5406 = vmatprep.subr.mxu0 %v5187
  %5407 = vmatpush1.msra.mxu0 %v5186
  %5408 = vmatprep.subr.mxu0 %v5191
  %5409 = vmatpush1.msra.mxu0 %v5190
  %5410 = vmatprep.subr.mxu0 %v5195
  %5411 = vmatpush1.msra.mxu0 %v5194
  %5412 = vmatprep.subr.mxu0 %v5199
  %5413 = vmatpush1.msra.mxu0 %v5198
  %5414 = vmatprep.subr.mxu0 %v5203
  %5415 = vmatpush1.msra.mxu0 %v5202
  %5416 = vmatprep.subr.mxu0 %v5207
  %5417 = vmatpush1.msra.mxu0 %v5206
  %5418 = vmatprep.subr.mxu0 %v5211
  %5419 = vmatpush1.msra.mxu0 %v5210
  %5420 = vmatprep.subr.mxu0 %v5215
  %5421 = vmatpush1.msra.mxu0 %v5214
  %5422 = vmatprep.subr.mxu0 %v5219
  %5423 = vmatpush1.msra.mxu0 %v5218
  %5424 = vmatprep.subr.mxu0 %v5223
  %5425 = vmatpush1.msra.mxu0 %v5222
  %5426 = vmatprep.subr.mxu0 %v5227
  %5427 = vmatpush1.msra.mxu0 %v5226
  %5428 = vmatprep.subr.mxu0 %v5231
  %5429 = vmatpush1.msra.mxu0 %v5230
  %5430 = vmatprep.subr.mxu0 %v5235
  %5431 = vmatpush1.msra.mxu0 %v5234
  %5432 = vmatprep.subr.mxu0 %v5239
  %5433 = vmatpush1.msra.mxu0 %v5238
  %5434 = vmatprep.mubr.f32.mxu0 %v4985
  %5435 = vmatmul.mubr.f32.gmra.mrb[0].mxu0 %v4984
  %v5436 = vpop.f32.mrb[0].mxu0
  %v5437 = vadd.f32 %v5366, %v5436
  %v5438 = vpop.f32.mrb[0].mxu0
  %v5439 = vadd.f32 %v5368, %v5438
  %5440 = vdwg.mxu0
  %5441 = vmatprep.subr.mxu0 %v5243
  %5442 = vmatpush1.msra.mxu0 %v5242
  %5443 = vmatprep.subr.mxu0 %v5247
  %5444 = vmatpush1.msra.mxu0 %v5246
  %5445 = vmatprep.subr.mxu0 %v5251
  %5446 = vmatpush1.msra.mxu0 %v5250
  %5447 = vmatprep.subr.mxu0 %v5255
  %5448 = vmatpush1.msra.mxu0 %v5254
  %5449 = vmatprep.subr.mxu0 %v5259
  %5450 = vmatpush1.msra.mxu0 %v5258
  %5451 = vmatprep.subr.mxu0 %v5263
  %5452 = vmatpush1.msra.mxu0 %v5262
  %5453 = vmatprep.subr.mxu0 %v5267
  %5454 = vmatpush1.msra.mxu0 %v5266
  %5455 = vmatprep.subr.mxu0 %v5271
  %5456 = vmatpush1.msra.mxu0 %v5270
  %5457 = vmatprep.subr.mxu0 0.0
  %5458 = vmatpush1.msra.mxu0 0.0
  %5459 = vmatprep.subr.mxu0 0.0
  %5460 = vmatpush1.msra.mxu0 0.0
  %5461 = vmatprep.subr.mxu0 0.0
  %5462 = vmatpush1.msra.mxu0 0.0
  %5463 = vmatprep.subr.mxu0 0.0
  %5464 = vmatpush1.msra.mxu0 0.0
  %5465 = vmatprep.subr.mxu0 0.0
  %5466 = vmatpush1.msra.mxu0 0.0
  %5467 = vmatprep.subr.mxu0 0.0
  %5468 = vmatpush1.msra.mxu0 0.0
  %5469 = vmatprep.subr.mxu0 0.0
  %5470 = vmatpush1.msra.mxu0 0.0
  %5471 = vmatprep.subr.mxu0 0.0
  %5472 = vmatpush1.msra.mxu0 0.0
  %5473 = vmatprep.subr.mxu0 0.0
  %5474 = vmatpush1.msra.mxu0 0.0
  %5475 = vmatprep.subr.mxu0 0.0
  %5476 = vmatpush1.msra.mxu0 0.0
  %5477 = vmatprep.subr.mxu0 0.0
  %5478 = vmatpush1.msra.mxu0 0.0
  %5479 = vmatprep.subr.mxu0 0.0
  %5480 = vmatpush1.msra.mxu0 0.0
  %5481 = vmatprep.subr.mxu0 0.0
  %5482 = vmatpush1.msra.mxu0 0.0
  %5483 = vmatprep.subr.mxu0 0.0
  %5484 = vmatpush1.msra.mxu0 0.0
  %5485 = vmatprep.subr.mxu0 0.0
  %5486 = vmatpush1.msra.mxu0 0.0
  %5487 = vmatprep.subr.mxu0 0.0
  %5488 = vmatpush1.msra.mxu0 0.0
  %5489 = vmatprep.subr.mxu0 0.0
  %5490 = vmatpush1.msra.mxu0 0.0
  %5491 = vmatprep.subr.mxu0 0.0
  %5492 = vmatpush1.msra.mxu0 0.0
  %5493 = vmatprep.subr.mxu0 0.0
  %5494 = vmatpush1.msra.mxu0 0.0
  %5495 = vmatprep.subr.mxu0 0.0
  %5496 = vmatpush1.msra.mxu0 0.0
  %5497 = vmatprep.subr.mxu0 0.0
  %5498 = vmatpush1.msra.mxu0 0.0
  %5499 = vmatprep.subr.mxu0 0.0
  %5500 = vmatpush1.msra.mxu0 0.0
  %5501 = vmatprep.subr.mxu0 0.0
  %5502 = vmatpush1.msra.mxu0 0.0
  %5503 = vmatprep.subr.mxu0 0.0
  %5504 = vmatpush1.msra.mxu0 0.0
  %5505 = vmatprep.mubr.f32.mxu0 0.0
  %5506 = vmatmul.mubr.f32.gmra.mrb[0].mxu0 %v5297
  %v5507 = vpop.f32.mrb[0].mxu0
  %v5508 = vadd.f32 %v5437, %v5507
  %v5509 = vpop.f32.mrb[0].mxu0
  %v5510 = vadd.f32 %v5439, %v5509
  %5511 = vdwg.mxu0
  %5512 = vmatprep.subr.mxu0 %v4989
  %5513 = vmatpush1.msra.mxu0 %v4988
  %5514 = vmatprep.subr.mxu0 %v4993
  %5515 = vmatpush1.msra.mxu0 %v4992
  %5516 = vmatprep.subr.mxu0 %v4997
  %5517 = vmatpush1.msra.mxu0 %v4996
  %5518 = vmatprep.subr.mxu0 %v5001
  %5519 = vmatpush1.msra.mxu0 %v5000
  %5520 = vmatprep.subr.mxu0 %v5005
  %5521 = vmatpush1.msra.mxu0 %v5004
  %5522 = vmatprep.subr.mxu0 %v5009
  %5523 = vmatpush1.msra.mxu0 %v5008
  %5524 = vmatprep.subr.mxu0 %v5013
  %5525 = vmatpush1.msra.mxu0 %v5012
  %5526 = vmatprep.subr.mxu0 %v5017
  %5527 = vmatpush1.msra.mxu0 %v5016
  %5528 = vmatprep.subr.mxu0 %v5021
  %5529 = vmatpush1.msra.mxu0 %v5020
  %5530 = vmatprep.subr.mxu0 %v5025
  %5531 = vmatpush1.msra.mxu0 %v5024
  %5532 = vmatprep.subr.mxu0 %v5029
  %5533 = vmatpush1.msra.mxu0 %v5028
  %5534 = vmatprep.subr.mxu0 %v5033
  %5535 = vmatpush1.msra.mxu0 %v5032
  %5536 = vmatprep.subr.mxu0 %v5037
  %5537 = vmatpush1.msra.mxu0 %v5036
  %5538 = vmatprep.subr.mxu0 %v5041
  %5539 = vmatpush1.msra.mxu0 %v5040
  %5540 = vmatprep.subr.mxu0 %v5045
  %5541 = vmatpush1.msra.mxu0 %v5044
  %5542 = vmatprep.subr.mxu0 %v5049
  %5543 = vmatpush1.msra.mxu0 %v5048
  %5544 = vmatprep.subr.mxu0 %v5053
  %5545 = vmatpush1.msra.mxu0 %v5052
  %5546 = vmatprep.subr.mxu0 %v5057
  %5547 = vmatpush1.msra.mxu0 %v5056
  %5548 = vmatprep.subr.mxu0 %v5061
  %5549 = vmatpush1.msra.mxu0 %v5060
  %5550 = vmatprep.subr.mxu0 %v5065
  %5551 = vmatpush1.msra.mxu0 %v5064
  %5552 = vmatprep.subr.mxu0 %v5069
  %5553 = vmatpush1.msra.mxu0 %v5068
  %5554 = vmatprep.subr.mxu0 %v5073
  %5555 = vmatpush1.msra.mxu0 %v5072
  %5556 = vmatprep.subr.mxu0 %v5077
  %5557 = vmatpush1.msra.mxu0 %v5076
  %5558 = vmatprep.subr.mxu0 %v5081
  %5559 = vmatpush1.msra.mxu0 %v5080
  %5560 = vmatprep.subr.mxu0 %v5085
  %5561 = vmatpush1.msra.mxu0 %v5084
  %5562 = vmatprep.subr.mxu0 %v5089
  %5563 = vmatpush1.msra.mxu0 %v5088
  %5564 = vmatprep.subr.mxu0 %v5093
  %5565 = vmatpush1.msra.mxu0 %v5092
  %5566 = vmatprep.subr.mxu0 %v5097
  %5567 = vmatpush1.msra.mxu0 %v5096
  %5568 = vmatprep.subr.mxu0 %v5101
  %5569 = vmatpush1.msra.mxu0 %v5100
  %5570 = vmatprep.subr.mxu0 %v5105
  %5571 = vmatpush1.msra.mxu0 %v5104
  %5572 = vmatprep.subr.mxu0 %v5109
  %5573 = vmatpush1.msra.mxu0 %v5108
  %5574 = vmatprep.subr.mxu0 %v5113
  %5575 = vmatpush1.msra.mxu0 %v5112
  %5576 = vmatprep.mubr.f32.mxu0 %v4983
  %5577 = vmatmul.mubr.f32.gmra.mrb[0].mxu0 %v4982
  %v5578 = vpop.f32.mrb[0].mxu0
  %v5579 = vadd.f32 %v5287, %v5578
  %v5580 = vpop.f32.mrb[0].mxu0
  %v5581 = vadd.f32 %v5291, %v5580
  %5582 = vdwg.mxu0
  %5583 = vmatprep.subr.mxu0 %v5117
  %5584 = vmatpush1.msra.mxu0 %v5116
  %5585 = vmatprep.subr.mxu0 %v5121
  %5586 = vmatpush1.msra.mxu0 %v5120
  %5587 = vmatprep.subr.mxu0 %v5125
  %5588 = vmatpush1.msra.mxu0 %v5124
  %5589 = vmatprep.subr.mxu0 %v5129
  %5590 = vmatpush1.msra.mxu0 %v5128
  %5591 = vmatprep.subr.mxu0 %v5133
  %5592 = vmatpush1.msra.mxu0 %v5132
  %5593 = vmatprep.subr.mxu0 %v5137
  %5594 = vmatpush1.msra.mxu0 %v5136
  %5595 = vmatprep.subr.mxu0 %v5141
  %5596 = vmatpush1.msra.mxu0 %v5140
  %5597 = vmatprep.subr.mxu0 %v5145
  %5598 = vmatpush1.msra.mxu0 %v5144
  %5599 = vmatprep.subr.mxu0 %v5149
  %5600 = vmatpush1.msra.mxu0 %v5148
  %5601 = vmatprep.subr.mxu0 %v5153
  %5602 = vmatpush1.msra.mxu0 %v5152
  %5603 = vmatprep.subr.mxu0 %v5157
  %5604 = vmatpush1.msra.mxu0 %v5156
  %5605 = vmatprep.subr.mxu0 %v5161
  %5606 = vmatpush1.msra.mxu0 %v5160
  %5607 = vmatprep.subr.mxu0 %v5165
  %5608 = vmatpush1.msra.mxu0 %v5164
  %5609 = vmatprep.subr.mxu0 %v5169
  %5610 = vmatpush1.msra.mxu0 %v5168
  %5611 = vmatprep.subr.mxu0 %v5173
  %5612 = vmatpush1.msra.mxu0 %v5172
  %5613 = vmatprep.subr.mxu0 %v5177
  %5614 = vmatpush1.msra.mxu0 %v5176
  %5615 = vmatprep.subr.mxu0 %v5181
  %5616 = vmatpush1.msra.mxu0 %v5180
  %5617 = vmatprep.subr.mxu0 %v5185
  %5618 = vmatpush1.msra.mxu0 %v5184
  %5619 = vmatprep.subr.mxu0 %v5189
  %5620 = vmatpush1.msra.mxu0 %v5188
  %5621 = vmatprep.subr.mxu0 %v5193
  %5622 = vmatpush1.msra.mxu0 %v5192
  %5623 = vmatprep.subr.mxu0 %v5197
  %5624 = vmatpush1.msra.mxu0 %v5196
  %5625 = vmatprep.subr.mxu0 %v5201
  %5626 = vmatpush1.msra.mxu0 %v5200
  %5627 = vmatprep.subr.mxu0 %v5205
  %5628 = vmatpush1.msra.mxu0 %v5204
  %5629 = vmatprep.subr.mxu0 %v5209
  %5630 = vmatpush1.msra.mxu0 %v5208
  %5631 = vmatprep.subr.mxu0 %v5213
  %5632 = vmatpush1.msra.mxu0 %v5212
  %5633 = vmatprep.subr.mxu0 %v5217
  %5634 = vmatpush1.msra.mxu0 %v5216
  %5635 = vmatprep.subr.mxu0 %v5221
  %5636 = vmatpush1.msra.mxu0 %v5220
  %5637 = vmatprep.subr.mxu0 %v5225
  %5638 = vmatpush1.msra.mxu0 %v5224
  %5639 = vmatprep.subr.mxu0 %v5229
  %5640 = vmatpush1.msra.mxu0 %v5228
  %5641 = vmatprep.subr.mxu0 %v5233
  %5642 = vmatpush1.msra.mxu0 %v5232
  %5643 = vmatprep.subr.mxu0 %v5237
  %5644 = vmatpush1.msra.mxu0 %v5236
  %5645 = vmatprep.subr.mxu0 %v5241
  %5646 = vmatpush1.msra.mxu0 %v5240
  %5647 = vmatprep.mubr.f32.mxu0 %v4985
  %5648 = vmatmul.mubr.f32.gmra.mrb[0].mxu0 %v4984
  %v5649 = vpop.f32.mrb[0].mxu0
  %v5650 = vadd.f32 %v5579, %v5649
  %v5651 = vpop.f32.mrb[0].mxu0
  %v5652 = vadd.f32 %v5581, %v5651
  %5653 = vdwg.mxu0
  %5654 = vmatprep.subr.mxu0 %v5245
  %5655 = vmatpush1.msra.mxu0 %v5244
  %5656 = vmatprep.subr.mxu0 %v5249
  %5657 = vmatpush1.msra.mxu0 %v5248
  %5658 = vmatprep.subr.mxu0 %v5253
  %5659 = vmatpush1.msra.mxu0 %v5252
  %5660 = vmatprep.subr.mxu0 %v5257
  %5661 = vmatpush1.msra.mxu0 %v5256
  %5662 = vmatprep.subr.mxu0 %v5261
  %5663 = vmatpush1.msra.mxu0 %v5260
  %5664 = vmatprep.subr.mxu0 %v5265
  %5665 = vmatpush1.msra.mxu0 %v5264
  %5666 = vmatprep.subr.mxu0 %v5269
  %5667 = vmatpush1.msra.mxu0 %v5268
  %5668 = vmatprep.subr.mxu0 %v5273
  %5669 = vmatpush1.msra.mxu0 %v5272
  %5670 = vmatprep.subr.mxu0 0.0
  %5671 = vmatpush1.msra.mxu0 0.0
  %5672 = vmatprep.subr.mxu0 0.0
  %5673 = vmatpush1.msra.mxu0 0.0
  %5674 = vmatprep.subr.mxu0 0.0
  %5675 = vmatpush1.msra.mxu0 0.0
  %5676 = vmatprep.subr.mxu0 0.0
  %5677 = vmatpush1.msra.mxu0 0.0
  %5678 = vmatprep.subr.mxu0 0.0
  %5679 = vmatpush1.msra.mxu0 0.0
  %5680 = vmatprep.subr.mxu0 0.0
  %5681 = vmatpush1.msra.mxu0 0.0
  %5682 = vmatprep.subr.mxu0 0.0
  %5683 = vmatpush1.msra.mxu0 0.0
  %5684 = vmatprep.subr.mxu0 0.0
  %5685 = vmatpush1.msra.mxu0 0.0
  %5686 = vmatprep.subr.mxu0 0.0
  %5687 = vmatpush1.msra.mxu0 0.0
  %5688 = vmatprep.subr.mxu0 0.0
  %5689 = vmatpush1.msra.mxu0 0.0
  %5690 = vmatprep.subr.mxu0 0.0
  %5691 = vmatpush1.msra.mxu0 0.0
  %5692 = vmatprep.subr.mxu0 0.0
  %5693 = vmatpush1.msra.mxu0 0.0
  %5694 = vmatprep.subr.mxu0 0.0
  %5695 = vmatpush1.msra.mxu0 0.0
  %5696 = vmatprep.subr.mxu0 0.0
  %5697 = vmatpush1.msra.mxu0 0.0
  %5698 = vmatprep.subr.mxu0 0.0
  %5699 = vmatpush1.msra.mxu0 0.0
  %5700 = vmatprep.subr.mxu0 0.0
  %5701 = vmatpush1.msra.mxu0 0.0
  %5702 = vmatprep.subr.mxu0 0.0
  %5703 = vmatpush1.msra.mxu0 0.0
  %5704 = vmatprep.subr.mxu0 0.0
  %5705 = vmatpush1.msra.mxu0 0.0
  %5706 = vmatprep.subr.mxu0 0.0
  %5707 = vmatpush1.msra.mxu0 0.0
  %5708 = vmatprep.subr.mxu0 0.0
  %5709 = vmatpush1.msra.mxu0 0.0
  %5710 = vmatprep.subr.mxu0 0.0
  %5711 = vmatpush1.msra.mxu0 0.0
  %5712 = vmatprep.subr.mxu0 0.0
  %5713 = vmatpush1.msra.mxu0 0.0
  %5714 = vmatprep.subr.mxu0 0.0
  %5715 = vmatpush1.msra.mxu0 0.0
  %5716 = vmatprep.subr.mxu0 0.0
  %5717 = vmatpush1.msra.mxu0 0.0
  %5718 = vmatprep.mubr.f32.mxu0 0.0
  %5719 = vmatmul.mubr.f32.gmra.mrb[0].mxu0 %v5297
  %v5720 = vpop.f32.mrb[0].mxu0
  %v5721 = vadd.f32 %v5650, %v5720
  %v5722 = vpop.f32.mrb[0].mxu0
  %v5723 = vadd.f32 %v5652, %v5722
  %5724 = vdwg.mxu0
  %v5725 = vmax.f32 %v5508, 0.0
  %v5726 = vmax.f32 %v5510, 0.0
  %v5727 = vmax.f32 %v5721, 0.0
  %v5728 = vmax.f32 %v5723, 0.0
  %v5729 = vld [vmem:[%s11] sm:$0xff]
  %v5730 = vld [vmem:[%s11 + $0x8] sm:$0xff]
  %v5731 = vld [vmem:[%s11 + $0x10] sm:$0xff]
  %v5732 = vld [vmem:[%s11 + $0x18] sm:$0xff]
  %v5733 = vld [vmem:[%s11 + $0x20] sm:$0xff]
  %v5734 = vld [vmem:[%s11 + $0x28] sm:$0xff]
  %v5735 = vld [vmem:[%s11 + $0x30] sm:$0xff]
  %v5736 = vld [vmem:[%s11 + $0x38] sm:$0xff]
  %v5737 = vld [vmem:[%s11 + $0x40] sm:$0xff]
  %v5738 = vld [vmem:[%s11 + $0x48] sm:$0xff]
  %v5739 = vld [vmem:[%s11 + $0x50] sm:$0xff]
  %v5740 = vld [vmem:[%s11 + $0x58] sm:$0xff]
  %v5741 = vld [vmem:[%s11 + $0x60] sm:$0xff]
  %v5742 = vld [vmem:[%s11 + $0x68] sm:$0xff]
  %v5743 = vld [vmem:[%s11 + $0x70] sm:$0xff]
  %v5744 = vld [vmem:[%s11 + $0x78] sm:$0xff]
  %v5745 = vld [vmem:[%s11 + $0x80] sm:$0xff]
  %v5746 = vld [vmem:[%s11 + $0x88] sm:$0xff]
  %v5747 = vld [vmem:[%s11 + $0x90] sm:$0xff]
  %v5748 = vld [vmem:[%s11 + $0x98] sm:$0xff]
  %v5749 = vld [vmem:[%s11 + $0xa0] sm:$0xff]
  %v5750 = vld [vmem:[%s11 + $0xa8] sm:$0xff]
  %v5751 = vld [vmem:[%s11 + $0xb0] sm:$0xff]
  %v5752 = vld [vmem:[%s11 + $0xb8] sm:$0xff]
  %v5753 = vld [vmem:[%s11 + $0xc0] sm:$0xff]
  %v5754 = vld [vmem:[%s11 + $0xc8] sm:$0xff]
  %v5755 = vld [vmem:[%s11 + $0xd0] sm:$0xff]
  %v5756 = vld [vmem:[%s11 + $0xd8] sm:$0xff]
  %v5757 = vld [vmem:[%s11 + $0xe0] sm:$0xff]
  %v5758 = vld [vmem:[%s11 + $0xe8] sm:$0xff]
  %v5759 = vld [vmem:[%s11 + $0xf0] sm:$0xff]
  %v5760 = vld [vmem:[%s11 + $0xf8] sm:$0xff]
  %v5761 = vld [vmem:[%s11 + $0x100] sm:$0xff]
  %v5762 = vld [vmem:[%s11 + $0x108] sm:$0xff]
  %v5763 = vld [vmem:[%s11 + $0x110] sm:$0xff]
  %v5764 = vld [vmem:[%s11 + $0x118] sm:$0xff]
  %v5765 = vld [vmem:[%s11 + $0x120] sm:$0xff]
  %v5766 = vld [vmem:[%s11 + $0x128] sm:$0xff]
  %v5767 = vld [vmem:[%s11 + $0x130] sm:$0xff]
  %v5768 = vld [vmem:[%s11 + $0x138] sm:$0xff]
  %v5769 = vld [vmem:[%s11 + $0x140] sm:$0xff]
  %v5770 = vld [vmem:[%s11 + $0x148] sm:$0xff]
  %v5771 = vld [vmem:[%s11 + $0x150] sm:$0xff]
  %v5772 = vld [vmem:[%s11 + $0x158] sm:$0xff]
  %v5773 = vld [vmem:[%s11 + $0x160] sm:$0xff]
  %v5774 = vld [vmem:[%s11 + $0x168] sm:$0xff]
  %v5775 = vld [vmem:[%s11 + $0x170] sm:$0xff]
  %v5776 = vld [vmem:[%s11 + $0x178] sm:$0xff]
  %v5777 = vld [vmem:[%s11 + $0x180] sm:$0xff]
  %v5778 = vld [vmem:[%s11 + $0x188] sm:$0xff]
  %v5779 = vld [vmem:[%s11 + $0x190] sm:$0xff]
  %v5780 = vld [vmem:[%s11 + $0x198] sm:$0xff]
  %v5781 = vld [vmem:[%s11 + $0x1a0] sm:$0xff]
  %v5782 = vld [vmem:[%s11 + $0x1a8] sm:$0xff]
  %v5783 = vld [vmem:[%s11 + $0x1b0] sm:$0xff]
  %v5784 = vld [vmem:[%s11 + $0x1b8] sm:$0xff]
  %v5785 = vld [vmem:[%s11 + $0x1c0] sm:$0xff]
  %v5786 = vld [vmem:[%s11 + $0x1c8] sm:$0xff]
  %v5787 = vld [vmem:[%s11 + $0x1d0] sm:$0xff]
  %v5788 = vld [vmem:[%s11 + $0x1d8] sm:$0xff]
  %v5789 = vld [vmem:[%s11 + $0x1e0] sm:$0xff]
  %v5790 = vld [vmem:[%s11 + $0x1e8] sm:$0xff]
  %v5791 = vld [vmem:[%s11 + $0x1f0] sm:$0xff]
  %v5792 = vld [vmem:[%s11 + $0x1f8] sm:$0xff]
  %v5793 = vld [vmem:[%s12] sm:$0x1]
  %v5795 = vlaneseq
  %v5796 = vshrl.u32 %v5795, 7
  %v5797 = vsub.s32 0, %v5796
  %v5798 = vrot.slane %v5793, %v5797
  %5800 = vmatprep.subr.mxu0 0.0
  %5801 = vmatpush1.msra.mxu0 %v5729
  %5802 = vmatprep.subr.mxu0 0.0
  %5803 = vmatpush1.msra.mxu0 %v5730
  %5804 = vmatprep.subr.mxu0 0.0
  %5805 = vmatpush1.msra.mxu0 %v5731
  %5806 = vmatprep.subr.mxu0 0.0
  %5807 = vmatpush1.msra.mxu0 %v5732
  %5808 = vmatprep.subr.mxu0 0.0
  %5809 = vmatpush1.msra.mxu0 %v5733
  %5810 = vmatprep.subr.mxu0 0.0
  %5811 = vmatpush1.msra.mxu0 %v5734
  %5812 = vmatprep.subr.mxu0 0.0
  %5813 = vmatpush1.msra.mxu0 %v5735
  %5814 = vmatprep.subr.mxu0 0.0
  %5815 = vmatpush1.msra.mxu0 %v5736
  %5816 = vmatprep.subr.mxu0 0.0
  %5817 = vmatpush1.msra.mxu0 %v5737
  %5818 = vmatprep.subr.mxu0 0.0
  %5819 = vmatpush1.msra.mxu0 %v5738
  %5820 = vmatprep.subr.mxu0 0.0
  %5821 = vmatpush1.msra.mxu0 %v5739
  %5822 = vmatprep.subr.mxu0 0.0
  %5823 = vmatpush1.msra.mxu0 %v5740
  %5824 = vmatprep.subr.mxu0 0.0
  %5825 = vmatpush1.msra.mxu0 %v5741
  %5826 = vmatprep.subr.mxu0 0.0
  %5827 = vmatpush1.msra.mxu0 %v5742
  %5828 = vmatprep.subr.mxu0 0.0
  %5829 = vmatpush1.msra.mxu0 %v5743
  %5830 = vmatprep.subr.mxu0 0.0
  %5831 = vmatpush1.msra.mxu0 %v5744
  %5832 = vmatprep.subr.mxu0 0.0
  %5833 = vmatpush1.msra.mxu0 %v5745
  %5834 = vmatprep.subr.mxu0 0.0
  %5835 = vmatpush1.msra.mxu0 %v5746
  %5836 = vmatprep.subr.mxu0 0.0
  %5837 = vmatpush1.msra.mxu0 %v5747
  %5838 = vmatprep.subr.mxu0 0.0
  %5839 = vmatpush1.msra.mxu0 %v5748
  %5840 = vmatprep.subr.mxu0 0.0
  %5841 = vmatpush1.msra.mxu0 %v5749
  %5842 = vmatprep.subr.mxu0 0.0
  %5843 = vmatpush1.msra.mxu0 %v5750
  %5844 = vmatprep.subr.mxu0 0.0
  %5845 = vmatpush1.msra.mxu0 %v5751
  %5846 = vmatprep.subr.mxu0 0.0
  %5847 = vmatpush1.msra.mxu0 %v5752
  %5848 = vmatprep.subr.mxu0 0.0
  %5849 = vmatpush1.msra.mxu0 %v5753
  %5850 = vmatprep.subr.mxu0 0.0
  %5851 = vmatpush1.msra.mxu0 %v5754
  %5852 = vmatprep.subr.mxu0 0.0
  %5853 = vmatpush1.msra.mxu0 %v5755
  %5854 = vmatprep.subr.mxu0 0.0
  %5855 = vmatpush1.msra.mxu0 %v5756
  %5856 = vmatprep.subr.mxu0 0.0
  %5857 = vmatpush1.msra.mxu0 %v5757
  %5858 = vmatprep.subr.mxu0 0.0
  %5859 = vmatpush1.msra.mxu0 %v5758
  %5860 = vmatprep.subr.mxu0 0.0
  %5861 = vmatpush1.msra.mxu0 %v5759
  %5862 = vmatprep.subr.mxu0 0.0
  %5863 = vmatpush1.msra.mxu0 %v5760
  %5864 = vmatprep.mubr.f32.mxu0 %v5726
  %5865 = vmatmul.mubr.f32.gmra.mrb[0].mxu0 %v5725
  %v5866 = vpop.f32.mrb[0].mxu0
  %v5867 = vadd.f32 %v5798, %v5866
  %v5868 = vpop.f32.mrb[0].mxu0
  %5869 = vdwg.mxu0
  %5870 = vmatprep.subr.mxu0 0.0
  %5871 = vmatpush1.msra.mxu0 %v5761
  %5872 = vmatprep.subr.mxu0 0.0
  %5873 = vmatpush1.msra.mxu0 %v5762
  %5874 = vmatprep.subr.mxu0 0.0
  %5875 = vmatpush1.msra.mxu0 %v5763
  %5876 = vmatprep.subr.mxu0 0.0
  %5877 = vmatpush1.msra.mxu0 %v5764
  %5878 = vmatprep.subr.mxu0 0.0
  %5879 = vmatpush1.msra.mxu0 %v5765
  %5880 = vmatprep.subr.mxu0 0.0
  %5881 = vmatpush1.msra.mxu0 %v5766
  %5882 = vmatprep.subr.mxu0 0.0
  %5883 = vmatpush1.msra.mxu0 %v5767
  %5884 = vmatprep.subr.mxu0 0.0
  %5885 = vmatpush1.msra.mxu0 %v5768
  %5886 = vmatprep.subr.mxu0 0.0
  %5887 = vmatpush1.msra.mxu0 %v5769
  %5888 = vmatprep.subr.mxu0 0.0
  %5889 = vmatpush1.msra.mxu0 %v5770
  %5890 = vmatprep.subr.mxu0 0.0
  %5891 = vmatpush1.msra.mxu0 %v5771
  %5892 = vmatprep.subr.mxu0 0.0
  %5893 = vmatpush1.msra.mxu0 %v5772
  %5894 = vmatprep.subr.mxu0 0.0
  %5895 = vmatpush1.msra.mxu0 %v5773
  %5896 = vmatprep.subr.mxu0 0.0
  %5897 = vmatpush1.msra.mxu0 %v5774
  %5898 = vmatprep.subr.mxu0 0.0
  %5899 = vmatpush1.msra.mxu0 %v5775
  %5900 = vmatprep.subr.mxu0 0.0
  %5901 = vmatpush1.msra.mxu0 %v5776
  %5902 = vmatprep.subr.mxu0 0.0
  %5903 = vmatpush1.msra.mxu0 %v5777
  %5904 = vmatprep.subr.mxu0 0.0
  %5905 = vmatpush1.msra.mxu0 %v5778
  %5906 = vmatprep.subr.mxu0 0.0
  %5907 = vmatpush1.msra.mxu0 %v5779
  %5908 = vmatprep.subr.mxu0 0.0
  %5909 = vmatpush1.msra.mxu0 %v5780
  %5910 = vmatprep.subr.mxu0 0.0
  %5911 = vmatpush1.msra.mxu0 %v5781
  %5912 = vmatprep.subr.mxu0 0.0
  %5913 = vmatpush1.msra.mxu0 %v5782
  %5914 = vmatprep.subr.mxu0 0.0
  %5915 = vmatpush1.msra.mxu0 %v5783
  %5916 = vmatprep.subr.mxu0 0.0
  %5917 = vmatpush1.msra.mxu0 %v5784
  %5918 = vmatprep.subr.mxu0 0.0
  %5919 = vmatpush1.msra.mxu0 %v5785
  %5920 = vmatprep.subr.mxu0 0.0
  %5921 = vmatpush1.msra.mxu0 %v5786
  %5922 = vmatprep.subr.mxu0 0.0
  %5923 = vmatpush1.msra.mxu0 %v5787
  %5924 = vmatprep.subr.mxu0 0.0
  %5925 = vmatpush1.msra.mxu0 %v5788
  %5926 = vmatprep.subr.mxu0 0.0
  %5927 = vmatpush1.msra.mxu0 %v5789
  %5928 = vmatprep.subr.mxu0 0.0
  %5929 = vmatpush1.msra.mxu0 %v5790
  %5930 = vmatprep.subr.mxu0 0.0
  %5931 = vmatpush1.msra.mxu0 %v5791
  %5932 = vmatprep.subr.mxu0 0.0
  %5933 = vmatpush1.msra.mxu0 %v5792
  %5934 = vmatprep.mubr.f32.mxu0 %v5728
  %5935 = vmatmul.mubr.f32.gmra.mrb[0].mxu0 %v5727
  %v5936 = vpop.f32.mrb[0].mxu0
  %v5937 = vadd.f32 %v5867, %v5936
  %v5938 = vpop.f32.mrb[0].mxu0
  %5939 = vdwg.mxu0
  %5940 = vst [vmem:[%s13] sm:$0xff] %v5937
  // Predicated region
  $region54: #{dqn_forward.1} parent=0 // pred_check
    _
  $region55: #{dqn_forward.1} parent=0 // pred_check_branch
    %5942 = sbr.rel (0) target = $region57
  $region56: #{dqn_forward.1} parent=0 // pred_region
    _
  $region57: #{dqn_forward.1} parent=0 // pred_fallthru
    _
  // Predicated region
  $region58: #{dqn_forward.1} parent=0 // pred_check
    _
  $region59: #{dqn_forward.1} parent=0 // pred_check_branch
    %5944 = sbr.rel (0) target = $region61
  $region60: #{dqn_forward.1} parent=0 // pred_region
    _
  $region61: #{dqn_forward.1} parent=0 // pred_fallthru
    _

</llo_original>
